<compile_context>
chip_gen: v7x
topology: tpu7x:2x2x1
jax: 0.10.0
libtpu: 0.0.40
codegen_flags: <defaults>
</compile_context>

<pallas_src>
import numpy as np
import jax
import jax.numpy as jnp
from jax.experimental import pallas as pl
from jax.experimental.pallas import tpu as pltpu


def _make_filters() -> np.ndarray:
    """Deterministic filters exactly as in the PyTorch script."""
    filter_vals = np.array(
        [[-1, -1, 1, 1],
         [-1, -1, 1, 1],
         [-1, -1, 1, 1],
         [-1, -1, 1, 1]], dtype=np.float32)
    filter_1 = filter_vals
    filter_2 = -filter_1
    filter_3 = filter_1.T
    filter_4 = -filter_3
    filters = np.stack([filter_1, filter_2, filter_3, filter_4], axis=0)  # (4, 4, 4)
    return filters.astype(np.float32)


def _make_conv_relu_kernel(emit_conv: bool):
    """Valid 2D conv (C_in=1) + ReLU over one batch tile, batch on the lane axis.

    x_ref:    (H, W, TN)         f32, VMEM   (W on sublanes, batch on lanes)
    w_ref:    (CO*KH*KW,)        f32, SMEM   (flat scalar taps)
    conv_ref: (CO, OH, OW, TN)   f32, VMEM   (only when emit_conv)
    relu_ref: (CO, OH, OW, TN)   f32, VMEM
    """
    def kernel(x_ref, w_ref, *out_refs):
        if emit_conv:
            conv_ref, relu_ref = out_refs
        else:
            (relu_ref,) = out_refs
            conv_ref = None

        H, W, TN = x_ref.shape
        CO, OH, OW, _ = relu_ref.shape
        KH = H - OH + 1
        KW = W - OW + 1

        x = x_ref[...]  # load the tile once

        # Tap-outer / channel-inner: each shifted window is computed once and reused
        # by all CO channels. Shifts are on leading/sublane axes only (lanes untouched).
        accs = [jnp.zeros((OH, OW, TN), dtype=jnp.float32) for _ in range(CO)]
        for kh in range(KH):
            for kw in range(KW):
                window = x[kh:kh + OH, kw:kw + OW, :]
                base = kh * KW + kw
                for co in range(CO):
                    tap = w_ref[co * KH * KW + base]     # scalar from flat SMEM
                    accs[co] = accs[co] + window * tap

        # Direct per-channel stores: each is a contiguous lane-dense (OH, OW, TN) plane,
        # so no jnp.stack copy and no masked/strided writes.
        for co in range(CO):
            if emit_conv:
                conv_ref[co] = accs[co]
            relu_ref[co] = jnp.maximum(accs[co], 0.0)

    return kernel


def _round_up(v: int, m: int) -> int:
    return -(-v // m) * m


def _vmem_budgets():
    """(pipeline_buffer_budget_bytes, vmem_limit_bytes).

    Generation-aware: v7x has 64 MiB physical VMEM, v5e/v6e have 128 MiB. Fallback is
    v7x-safe so the kernel never over-commits VMEM on any generation.
    """
    try:
        cap = int(pltpu.get_tpu_info().vmem_capacity_bytes)
    except Exception:
        cap = 64 * 1024 * 1024  # v7x-safe fallback
    budget = max(24 * 1024 * 1024, min(int(0.35 * cap), 48 * 1024 * 1024))
    limit = min(int(0.75 * cap), 96 * 1024 * 1024)
    limit = max(limit, budget + 16 * 1024 * 1024)  # headroom for in-kernel scratch/spills
    return budget, limit


def _pick_tile_n(N, H, W, CO, OH, OW, n_outputs, budget_bytes):
    """Batch-tile (lane-axis) size from the PHYSICAL (8,128)-padded, double-buffered
    VMEM footprint of one grid step (input block + n_outputs output blocks)."""
    if N <= 128:
        # Tiny batch: single block whose last dim equals the full array dim (allowed by
        # the (8,128) rule). Lane under-fill is unavoidable at this batch size.
        return N
    # Padded bytes for one 128-lane slab: sublane dim rounds to 8, lane dim to 128.
    in_plane = H * _round_up(W, 8)                 # (W, tile_n) are the padded dims
    out_plane = CO * OH * _round_up(OW, 8)         # (OW, tile_n) are the padded dims
    bytes_per_slab = 2 * 4 * 128 * (in_plane + n_outputs * out_plane)  # x2 double-buffer
    slabs = max(1, budget_bytes // bytes_per_slab)
    tile = slabs * 128
    # Keep >= 4 grid steps: lets v7x shard the "parallel" batch axis across both
    # TensorCores and keeps the DMA/compute pipeline overlapping.
    tile = min(tile, max(128, _round_up(pl.cdiv(N, 4), 128)))
    return int(min(tile, _round_up(N, 128)))


def convnet_forward(x_nchw: jax.Array, weight: jax.Array, return_pre_activation: bool = True):
    """Equivalent of ConvNet.forward. x_nchw: (N, 1, H, W), weight: (CO, 1, KH, KW)."""
    assert x_nchw.shape[1] == 1, "ConvNet expects a single input channel"
    N, _, H, W = x_nchw.shape
    CO, CI, KH, KW = weight.shape
    assert CI == 1
    OH, OW = H - KH + 1, W - KW + 1

    # Lane-dense layout: batch on the lane (last) axis (layout plumbing in the wrapper).
    x_hwn = jnp.transpose(jnp.squeeze(x_nchw, axis=1).astype(jnp.float32), (1, 2, 0))  # (H,W,N)
    w_flat = weight.astype(jnp.float32).reshape(-1)  # (CO*KH*KW,) flat SMEM taps

    n_outputs = 2 if return_pre_activation else 1
    budget_bytes, vmem_limit = _vmem_budgets()
    tile_n = _pick_tile_n(N, H, W, CO, OH, OW, n_outputs, budget_bytes)
    grid = (pl.cdiv(N, tile_n),)
    # NOTE: when N % tile_n != 0 the last block reads padded input lanes; Pallas discards
    # the corresponding output lanes, so the valid region is unaffected (relied upon).

    out_shape = tuple(jax.ShapeDtypeStruct((CO, OH, OW, N), jnp.float32)
                      for _ in range(n_outputs))
    out_specs = tuple(pl.BlockSpec((CO, OH, OW, tile_n), lambda i: (0, 0, 0, i))
                      for _ in range(n_outputs))

    outs = pl.pallas_call(
        _make_conv_relu_kernel(return_pre_activation),
        out_shape=out_shape,
        grid=grid,
        in_specs=[
            pl.BlockSpec((H, W, tile_n), lambda i: (0, 0, i)),          # image tile (VMEM)
            pl.BlockSpec(w_flat.shape, lambda i: (0,),
                         memory_space=pltpu.MemorySpace.SMEM),           # taps (SMEM)
        ],
        out_specs=out_specs,
        compiler_params=pltpu.CompilerParams(
            dimension_semantics=("parallel",),   # batch axis: megacore-shardable on v7x
            vmem_limit_bytes=vmem_limit,
        ),
    )(x_hwn, w_flat)

    # Back to the module's NCHW convention.
    outs_nchw = tuple(jnp.transpose(o, (3, 0, 1, 2)) for o in outs)
    if return_pre_activation:
        conv_x, activated_x = outs_nchw
        return conv_x, activated_x
    return outs_nchw[0]


if __name__ == "__main__":
    # Deterministic parameters (same construction as the PyTorch script).
    filters = _make_filters()                      # (4, 4, 4)
    weight = jnp.asarray(filters)[:, None, :, :]   # (4, 1, 4, 4) == torch unsqueeze(dim=1)

    # Small deterministic input, NCHW with 1 channel (grayscale image).
    key = jax.random.PRNGKey(0)
    x = jax.random.normal(key, (2, 1, 16, 16), dtype=jnp.float32)

    conv_x, activated_x = convnet_forward(x, weight)
    conv_x = jax.block_until_ready(conv_x)
    activated_x = jax.block_until_ready(activated_x)

    # Reference check against XLA's conv (same semantics as nn.Conv2d, valid, no bias).
    ref_conv = jax.lax.conv_general_dilated(
        x, weight, window_strides=(1, 1), padding="VALID",
        dimension_numbers=("NCHW", "OIHW", "NCHW"))
    ref_relu = jnp.maximum(ref_conv, 0.0)

    assert conv_x.shape == (2, 4, 13, 13) and activated_x.shape == (2, 4, 13, 13)
    np.testing.assert_allclose(np.asarray(conv_x), np.asarray(ref_conv), rtol=1e-5, atol=1e-5)
    np.testing.assert_allclose(np.asarray(activated_x), np.asarray(ref_relu), rtol=1e-5, atol=1e-5)

    # Also exercise the reduced-HBM-traffic path (ReLU output only).
    act_only = jax.block_until_ready(convnet_forward(x, weight, return_pre_activation=False))
    np.testing.assert_allclose(np.asarray(act_only), np.asarray(ref_relu), rtol=1e-5, atol=1e-5)

    print("KERNEL_OK")
</pallas_src>

<mosaic_0001>
module attributes {stable_mosaic.version = 11 : i64} {
  func.func @kernel(%arg0: i32, %arg1: memref<16x16x2xf32, #tpu.memory_space<vmem>>, %arg2: memref<64xf32, #tpu.memory_space<smem>>, %arg3: memref<4x13x13x2xf32, #tpu.memory_space<vmem>>, %arg4: memref<4x13x13x2xf32, #tpu.memory_space<vmem>>) attributes {dimension_semantics = [#tpu.dimension_semantics<parallel>], iteration_bounds = array<i64: 1>, scalar_prefetch = 0 : i64, scratch_operands = 0 : i64, tpu.core_type = #tpu.core_type<tc>, window_params = [{transform_indices = @transform_0, window_bounds = array<i64: 16, 16, 2>}, {transform_indices = @transform_1, window_bounds = array<i64: 64>}, {transform_indices = @transform_2, window_bounds = array<i64: 4, 13, 13, 2>}, {transform_indices = @transform_3, window_bounds = array<i64: 4, 13, 13, 2>}]} {
    %c0 = arith.constant 0 : index
    %c0_0 = arith.constant 0 : index
    %c0_1 = arith.constant 0 : index
    %0 = vector.load %arg1[%c0, %c0_0, %c0_1] : memref<16x16x2xf32, #tpu.memory_space<vmem>>, vector<16x16x2xf32>
    %cst = arith.constant 0.000000e+00 : f32
    %1 = vector.broadcast %cst : f32 to vector<13x13x2xf32>
    %cst_2 = arith.constant 0.000000e+00 : f32
    %2 = vector.broadcast %cst_2 : f32 to vector<13x13x2xf32>
    %cst_3 = arith.constant 0.000000e+00 : f32
    %3 = vector.broadcast %cst_3 : f32 to vector<13x13x2xf32>
    %cst_4 = arith.constant 0.000000e+00 : f32
    %4 = vector.broadcast %cst_4 : f32 to vector<13x13x2xf32>
    %5 = vector.extract_strided_slice %0 {offsets = [0, 0, 0], sizes = [13, 13, 2], strides = [1, 1, 1]} : vector<16x16x2xf32> to vector<13x13x2xf32>
    %c0_5 = arith.constant 0 : index
    %6 = memref.load %arg2[%c0_5] : memref<64xf32, #tpu.memory_space<smem>>
    %7 = vector.broadcast %6 : f32 to vector<13x13x2xf32>
    %8 = arith.mulf %5, %7 : vector<13x13x2xf32>
    %9 = arith.addf %1, %8 : vector<13x13x2xf32>
    %c16 = arith.constant 16 : index
    %10 = memref.load %arg2[%c16] : memref<64xf32, #tpu.memory_space<smem>>
    %11 = vector.broadcast %10 : f32 to vector<13x13x2xf32>
    %12 = arith.mulf %5, %11 : vector<13x13x2xf32>
    %13 = arith.addf %2, %12 : vector<13x13x2xf32>
    %c32 = arith.constant 32 : index
    %14 = memref.load %arg2[%c32] : memref<64xf32, #tpu.memory_space<smem>>
    %15 = vector.broadcast %14 : f32 to vector<13x13x2xf32>
    %16 = arith.mulf %5, %15 : vector<13x13x2xf32>
    %17 = arith.addf %3, %16 : vector<13x13x2xf32>
    %c48 = arith.constant 48 : index
    %18 = memref.load %arg2[%c48] : memref<64xf32, #tpu.memory_space<smem>>
    %19 = vector.broadcast %18 : f32 to vector<13x13x2xf32>
    %20 = arith.mulf %5, %19 : vector<13x13x2xf32>
    %21 = arith.addf %4, %20 : vector<13x13x2xf32>
    %22 = vector.extract_strided_slice %0 {offsets = [0, 1, 0], sizes = [13, 13, 2], strides = [1, 1, 1]} : vector<16x16x2xf32> to vector<13x13x2xf32>
    %c1 = arith.constant 1 : index
    %23 = memref.load %arg2[%c1] : memref<64xf32, #tpu.memory_space<smem>>
    %24 = vector.broadcast %23 : f32 to vector<13x13x2xf32>
    %25 = arith.mulf %22, %24 : vector<13x13x2xf32>
    %26 = arith.addf %9, %25 : vector<13x13x2xf32>
    %c17 = arith.constant 17 : index
    %27 = memref.load %arg2[%c17] : memref<64xf32, #tpu.memory_space<smem>>
    %28 = vector.broadcast %27 : f32 to vector<13x13x2xf32>
    %29 = arith.mulf %22, %28 : vector<13x13x2xf32>
    %30 = arith.addf %13, %29 : vector<13x13x2xf32>
    %c33 = arith.constant 33 : index
    %31 = memref.load %arg2[%c33] : memref<64xf32, #tpu.memory_space<smem>>
    %32 = vector.broadcast %31 : f32 to vector<13x13x2xf32>
    %33 = arith.mulf %22, %32 : vector<13x13x2xf32>
    %34 = arith.addf %17, %33 : vector<13x13x2xf32>
    %c49 = arith.constant 49 : index
    %35 = memref.load %arg2[%c49] : memref<64xf32, #tpu.memory_space<smem>>
    %36 = vector.broadcast %35 : f32 to vector<13x13x2xf32>
    %37 = arith.mulf %22, %36 : vector<13x13x2xf32>
    %38 = arith.addf %21, %37 : vector<13x13x2xf32>
    %39 = vector.extract_strided_slice %0 {offsets = [0, 2, 0], sizes = [13, 13, 2], strides = [1, 1, 1]} : vector<16x16x2xf32> to vector<13x13x2xf32>
    %c2 = arith.constant 2 : index
    %40 = memref.load %arg2[%c2] : memref<64xf32, #tpu.memory_space<smem>>
    %41 = vector.broadcast %40 : f32 to vector<13x13x2xf32>
    %42 = arith.mulf %39, %41 : vector<13x13x2xf32>
    %43 = arith.addf %26, %42 : vector<13x13x2xf32>
    %c18 = arith.constant 18 : index
    %44 = memref.load %arg2[%c18] : memref<64xf32, #tpu.memory_space<smem>>
    %45 = vector.broadcast %44 : f32 to vector<13x13x2xf32>
    %46 = arith.mulf %39, %45 : vector<13x13x2xf32>
    %47 = arith.addf %30, %46 : vector<13x13x2xf32>
    %c34 = arith.constant 34 : index
    %48 = memref.load %arg2[%c34] : memref<64xf32, #tpu.memory_space<smem>>
    %49 = vector.broadcast %48 : f32 to vector<13x13x2xf32>
    %50 = arith.mulf %39, %49 : vector<13x13x2xf32>
    %51 = arith.addf %34, %50 : vector<13x13x2xf32>
    %c50 = arith.constant 50 : index
    %52 = memref.load %arg2[%c50] : memref<64xf32, #tpu.memory_space<smem>>
    %53 = vector.broadcast %52 : f32 to vector<13x13x2xf32>
    %54 = arith.mulf %39, %53 : vector<13x13x2xf32>
    %55 = arith.addf %38, %54 : vector<13x13x2xf32>
    %56 = vector.extract_strided_slice %0 {offsets = [0, 3, 0], sizes = [13, 13, 2], strides = [1, 1, 1]} : vector<16x16x2xf32> to vector<13x13x2xf32>
    %c3 = arith.constant 3 : index
    %57 = memref.load %arg2[%c3] : memref<64xf32, #tpu.memory_space<smem>>
    %58 = vector.broadcast %57 : f32 to vector<13x13x2xf32>
    %59 = arith.mulf %56, %58 : vector<13x13x2xf32>
    %60 = arith.addf %43, %59 : vector<13x13x2xf32>
    %c19 = arith.constant 19 : index
    %61 = memref.load %arg2[%c19] : memref<64xf32, #tpu.memory_space<smem>>
    %62 = vector.broadcast %61 : f32 to vector<13x13x2xf32>
    %63 = arith.mulf %56, %62 : vector<13x13x2xf32>
    %64 = arith.addf %47, %63 : vector<13x13x2xf32>
    %c35 = arith.constant 35 : index
    %65 = memref.load %arg2[%c35] : memref<64xf32, #tpu.memory_space<smem>>
    %66 = vector.broadcast %65 : f32 to vector<13x13x2xf32>
    %67 = arith.mulf %56, %66 : vector<13x13x2xf32>
    %68 = arith.addf %51, %67 : vector<13x13x2xf32>
    %c51 = arith.constant 51 : index
    %69 = memref.load %arg2[%c51] : memref<64xf32, #tpu.memory_space<smem>>
    %70 = vector.broadcast %69 : f32 to vector<13x13x2xf32>
    %71 = arith.mulf %56, %70 : vector<13x13x2xf32>
    %72 = arith.addf %55, %71 : vector<13x13x2xf32>
    %73 = vector.extract_strided_slice %0 {offsets = [1, 0, 0], sizes = [13, 13, 2], strides = [1, 1, 1]} : vector<16x16x2xf32> to vector<13x13x2xf32>
    %c4 = arith.constant 4 : index
    %74 = memref.load %arg2[%c4] : memref<64xf32, #tpu.memory_space<smem>>
    %75 = vector.broadcast %74 : f32 to vector<13x13x2xf32>
    %76 = arith.mulf %73, %75 : vector<13x13x2xf32>
    %77 = arith.addf %60, %76 : vector<13x13x2xf32>
    %c20 = arith.constant 20 : index
    %78 = memref.load %arg2[%c20] : memref<64xf32, #tpu.memory_space<smem>>
    %79 = vector.broadcast %78 : f32 to vector<13x13x2xf32>
    %80 = arith.mulf %73, %79 : vector<13x13x2xf32>
    %81 = arith.addf %64, %80 : vector<13x13x2xf32>
    %c36 = arith.constant 36 : index
    %82 = memref.load %arg2[%c36] : memref<64xf32, #tpu.memory_space<smem>>
    %83 = vector.broadcast %82 : f32 to vector<13x13x2xf32>
    %84 = arith.mulf %73, %83 : vector<13x13x2xf32>
    %85 = arith.addf %68, %84 : vector<13x13x2xf32>
    %c52 = arith.constant 52 : index
    %86 = memref.load %arg2[%c52] : memref<64xf32, #tpu.memory_space<smem>>
    %87 = vector.broadcast %86 : f32 to vector<13x13x2xf32>
    %88 = arith.mulf %73, %87 : vector<13x13x2xf32>
    %89 = arith.addf %72, %88 : vector<13x13x2xf32>
    %90 = vector.extract_strided_slice %0 {offsets = [1, 1, 0], sizes = [13, 13, 2], strides = [1, 1, 1]} : vector<16x16x2xf32> to vector<13x13x2xf32>
    %c5 = arith.constant 5 : index
    %91 = memref.load %arg2[%c5] : memref<64xf32, #tpu.memory_space<smem>>
    %92 = vector.broadcast %91 : f32 to vector<13x13x2xf32>
    %93 = arith.mulf %90, %92 : vector<13x13x2xf32>
    %94 = arith.addf %77, %93 : vector<13x13x2xf32>
    %c21 = arith.constant 21 : index
    %95 = memref.load %arg2[%c21] : memref<64xf32, #tpu.memory_space<smem>>
    %96 = vector.broadcast %95 : f32 to vector<13x13x2xf32>
    %97 = arith.mulf %90, %96 : vector<13x13x2xf32>
    %98 = arith.addf %81, %97 : vector<13x13x2xf32>
    %c37 = arith.constant 37 : index
    %99 = memref.load %arg2[%c37] : memref<64xf32, #tpu.memory_space<smem>>
    %100 = vector.broadcast %99 : f32 to vector<13x13x2xf32>
    %101 = arith.mulf %90, %100 : vector<13x13x2xf32>
    %102 = arith.addf %85, %101 : vector<13x13x2xf32>
    %c53 = arith.constant 53 : index
    %103 = memref.load %arg2[%c53] : memref<64xf32, #tpu.memory_space<smem>>
    %104 = vector.broadcast %103 : f32 to vector<13x13x2xf32>
    %105 = arith.mulf %90, %104 : vector<13x13x2xf32>
    %106 = arith.addf %89, %105 : vector<13x13x2xf32>
    %107 = vector.extract_strided_slice %0 {offsets = [1, 2, 0], sizes = [13, 13, 2], strides = [1, 1, 1]} : vector<16x16x2xf32> to vector<13x13x2xf32>
    %c6 = arith.constant 6 : index
    %108 = memref.load %arg2[%c6] : memref<64xf32, #tpu.memory_space<smem>>
    %109 = vector.broadcast %108 : f32 to vector<13x13x2xf32>
    %110 = arith.mulf %107, %109 : vector<13x13x2xf32>
    %111 = arith.addf %94, %110 : vector<13x13x2xf32>
    %c22 = arith.constant 22 : index
    %112 = memref.load %arg2[%c22] : memref<64xf32, #tpu.memory_space<smem>>
    %113 = vector.broadcast %112 : f32 to vector<13x13x2xf32>
    %114 = arith.mulf %107, %113 : vector<13x13x2xf32>
    %115 = arith.addf %98, %114 : vector<13x13x2xf32>
    %c38 = arith.constant 38 : index
    %116 = memref.load %arg2[%c38] : memref<64xf32, #tpu.memory_space<smem>>
    %117 = vector.broadcast %116 : f32 to vector<13x13x2xf32>
    %118 = arith.mulf %107, %117 : vector<13x13x2xf32>
    %119 = arith.addf %102, %118 : vector<13x13x2xf32>
    %c54 = arith.constant 54 : index
    %120 = memref.load %arg2[%c54] : memref<64xf32, #tpu.memory_space<smem>>
    %121 = vector.broadcast %120 : f32 to vector<13x13x2xf32>
    %122 = arith.mulf %107, %121 : vector<13x13x2xf32>
    %123 = arith.addf %106, %122 : vector<13x13x2xf32>
    %124 = vector.extract_strided_slice %0 {offsets = [1, 3, 0], sizes = [13, 13, 2], strides = [1, 1, 1]} : vector<16x16x2xf32> to vector<13x13x2xf32>
    %c7 = arith.constant 7 : index
    %125 = memref.load %arg2[%c7] : memref<64xf32, #tpu.memory_space<smem>>
    %126 = vector.broadcast %125 : f32 to vector<13x13x2xf32>
    %127 = arith.mulf %124, %126 : vector<13x13x2xf32>
    %128 = arith.addf %111, %127 : vector<13x13x2xf32>
    %c23 = arith.constant 23 : index
    %129 = memref.load %arg2[%c23] : memref<64xf32, #tpu.memory_space<smem>>
    %130 = vector.broadcast %129 : f32 to vector<13x13x2xf32>
    %131 = arith.mulf %124, %130 : vector<13x13x2xf32>
    %132 = arith.addf %115, %131 : vector<13x13x2xf32>
    %c39 = arith.constant 39 : index
    %133 = memref.load %arg2[%c39] : memref<64xf32, #tpu.memory_space<smem>>
    %134 = vector.broadcast %133 : f32 to vector<13x13x2xf32>
    %135 = arith.mulf %124, %134 : vector<13x13x2xf32>
    %136 = arith.addf %119, %135 : vector<13x13x2xf32>
    %c55 = arith.constant 55 : index
    %137 = memref.load %arg2[%c55] : memref<64xf32, #tpu.memory_space<smem>>
    %138 = vector.broadcast %137 : f32 to vector<13x13x2xf32>
    %139 = arith.mulf %124, %138 : vector<13x13x2xf32>
    %140 = arith.addf %123, %139 : vector<13x13x2xf32>
    %141 = vector.extract_strided_slice %0 {offsets = [2, 0, 0], sizes = [13, 13, 2], strides = [1, 1, 1]} : vector<16x16x2xf32> to vector<13x13x2xf32>
    %c8 = arith.constant 8 : index
    %142 = memref.load %arg2[%c8] : memref<64xf32, #tpu.memory_space<smem>>
    %143 = vector.broadcast %142 : f32 to vector<13x13x2xf32>
    %144 = arith.mulf %141, %143 : vector<13x13x2xf32>
    %145 = arith.addf %128, %144 : vector<13x13x2xf32>
    %c24 = arith.constant 24 : index
    %146 = memref.load %arg2[%c24] : memref<64xf32, #tpu.memory_space<smem>>
    %147 = vector.broadcast %146 : f32 to vector<13x13x2xf32>
    %148 = arith.mulf %141, %147 : vector<13x13x2xf32>
    %149 = arith.addf %132, %148 : vector<13x13x2xf32>
    %c40 = arith.constant 40 : index
    %150 = memref.load %arg2[%c40] : memref<64xf32, #tpu.memory_space<smem>>
    %151 = vector.broadcast %150 : f32 to vector<13x13x2xf32>
    %152 = arith.mulf %141, %151 : vector<13x13x2xf32>
    %153 = arith.addf %136, %152 : vector<13x13x2xf32>
    %c56 = arith.constant 56 : index
    %154 = memref.load %arg2[%c56] : memref<64xf32, #tpu.memory_space<smem>>
    %155 = vector.broadcast %154 : f32 to vector<13x13x2xf32>
    %156 = arith.mulf %141, %155 : vector<13x13x2xf32>
    %157 = arith.addf %140, %156 : vector<13x13x2xf32>
    %158 = vector.extract_strided_slice %0 {offsets = [2, 1, 0], sizes = [13, 13, 2], strides = [1, 1, 1]} : vector<16x16x2xf32> to vector<13x13x2xf32>
    %c9 = arith.constant 9 : index
    %159 = memref.load %arg2[%c9] : memref<64xf32, #tpu.memory_space<smem>>
    %160 = vector.broadcast %159 : f32 to vector<13x13x2xf32>
    %161 = arith.mulf %158, %160 : vector<13x13x2xf32>
    %162 = arith.addf %145, %161 : vector<13x13x2xf32>
    %c25 = arith.constant 25 : index
    %163 = memref.load %arg2[%c25] : memref<64xf32, #tpu.memory_space<smem>>
    %164 = vector.broadcast %163 : f32 to vector<13x13x2xf32>
    %165 = arith.mulf %158, %164 : vector<13x13x2xf32>
    %166 = arith.addf %149, %165 : vector<13x13x2xf32>
    %c41 = arith.constant 41 : index
    %167 = memref.load %arg2[%c41] : memref<64xf32, #tpu.memory_space<smem>>
    %168 = vector.broadcast %167 : f32 to vector<13x13x2xf32>
    %169 = arith.mulf %158, %168 : vector<13x13x2xf32>
    %170 = arith.addf %153, %169 : vector<13x13x2xf32>
    %c57 = arith.constant 57 : index
    %171 = memref.load %arg2[%c57] : memref<64xf32, #tpu.memory_space<smem>>
    %172 = vector.broadcast %171 : f32 to vector<13x13x2xf32>
    %173 = arith.mulf %158, %172 : vector<13x13x2xf32>
    %174 = arith.addf %157, %173 : vector<13x13x2xf32>
    %175 = vector.extract_strided_slice %0 {offsets = [2, 2, 0], sizes = [13, 13, 2], strides = [1, 1, 1]} : vector<16x16x2xf32> to vector<13x13x2xf32>
    %c10 = arith.constant 10 : index
    %176 = memref.load %arg2[%c10] : memref<64xf32, #tpu.memory_space<smem>>
    %177 = vector.broadcast %176 : f32 to vector<13x13x2xf32>
    %178 = arith.mulf %175, %177 : vector<13x13x2xf32>
    %179 = arith.addf %162, %178 : vector<13x13x2xf32>
    %c26 = arith.constant 26 : index
    %180 = memref.load %arg2[%c26] : memref<64xf32, #tpu.memory_space<smem>>
    %181 = vector.broadcast %180 : f32 to vector<13x13x2xf32>
    %182 = arith.mulf %175, %181 : vector<13x13x2xf32>
    %183 = arith.addf %166, %182 : vector<13x13x2xf32>
    %c42 = arith.constant 42 : index
    %184 = memref.load %arg2[%c42] : memref<64xf32, #tpu.memory_space<smem>>
    %185 = vector.broadcast %184 : f32 to vector<13x13x2xf32>
    %186 = arith.mulf %175, %185 : vector<13x13x2xf32>
    %187 = arith.addf %170, %186 : vector<13x13x2xf32>
    %c58 = arith.constant 58 : index
    %188 = memref.load %arg2[%c58] : memref<64xf32, #tpu.memory_space<smem>>
    %189 = vector.broadcast %188 : f32 to vector<13x13x2xf32>
    %190 = arith.mulf %175, %189 : vector<13x13x2xf32>
    %191 = arith.addf %174, %190 : vector<13x13x2xf32>
    %192 = vector.extract_strided_slice %0 {offsets = [2, 3, 0], sizes = [13, 13, 2], strides = [1, 1, 1]} : vector<16x16x2xf32> to vector<13x13x2xf32>
    %c11 = arith.constant 11 : index
    %193 = memref.load %arg2[%c11] : memref<64xf32, #tpu.memory_space<smem>>
    %194 = vector.broadcast %193 : f32 to vector<13x13x2xf32>
    %195 = arith.mulf %192, %194 : vector<13x13x2xf32>
    %196 = arith.addf %179, %195 : vector<13x13x2xf32>
    %c27 = arith.constant 27 : index
    %197 = memref.load %arg2[%c27] : memref<64xf32, #tpu.memory_space<smem>>
    %198 = vector.broadcast %197 : f32 to vector<13x13x2xf32>
    %199 = arith.mulf %192, %198 : vector<13x13x2xf32>
    %200 = arith.addf %183, %199 : vector<13x13x2xf32>
    %c43 = arith.constant 43 : index
    %201 = memref.load %arg2[%c43] : memref<64xf32, #tpu.memory_space<smem>>
    %202 = vector.broadcast %201 : f32 to vector<13x13x2xf32>
    %203 = arith.mulf %192, %202 : vector<13x13x2xf32>
    %204 = arith.addf %187, %203 : vector<13x13x2xf32>
    %c59 = arith.constant 59 : index
    %205 = memref.load %arg2[%c59] : memref<64xf32, #tpu.memory_space<smem>>
    %206 = vector.broadcast %205 : f32 to vector<13x13x2xf32>
    %207 = arith.mulf %192, %206 : vector<13x13x2xf32>
    %208 = arith.addf %191, %207 : vector<13x13x2xf32>
    %209 = vector.extract_strided_slice %0 {offsets = [3, 0, 0], sizes = [13, 13, 2], strides = [1, 1, 1]} : vector<16x16x2xf32> to vector<13x13x2xf32>
    %c12 = arith.constant 12 : index
    %210 = memref.load %arg2[%c12] : memref<64xf32, #tpu.memory_space<smem>>
    %211 = vector.broadcast %210 : f32 to vector<13x13x2xf32>
    %212 = arith.mulf %209, %211 : vector<13x13x2xf32>
    %213 = arith.addf %196, %212 : vector<13x13x2xf32>
    %c28 = arith.constant 28 : index
    %214 = memref.load %arg2[%c28] : memref<64xf32, #tpu.memory_space<smem>>
    %215 = vector.broadcast %214 : f32 to vector<13x13x2xf32>
    %216 = arith.mulf %209, %215 : vector<13x13x2xf32>
    %217 = arith.addf %200, %216 : vector<13x13x2xf32>
    %c44 = arith.constant 44 : index
    %218 = memref.load %arg2[%c44] : memref<64xf32, #tpu.memory_space<smem>>
    %219 = vector.broadcast %218 : f32 to vector<13x13x2xf32>
    %220 = arith.mulf %209, %219 : vector<13x13x2xf32>
    %221 = arith.addf %204, %220 : vector<13x13x2xf32>
    %c60 = arith.constant 60 : index
    %222 = memref.load %arg2[%c60] : memref<64xf32, #tpu.memory_space<smem>>
    %223 = vector.broadcast %222 : f32 to vector<13x13x2xf32>
    %224 = arith.mulf %209, %223 : vector<13x13x2xf32>
    %225 = arith.addf %208, %224 : vector<13x13x2xf32>
    %226 = vector.extract_strided_slice %0 {offsets = [3, 1, 0], sizes = [13, 13, 2], strides = [1, 1, 1]} : vector<16x16x2xf32> to vector<13x13x2xf32>
    %c13 = arith.constant 13 : index
    %227 = memref.load %arg2[%c13] : memref<64xf32, #tpu.memory_space<smem>>
    %228 = vector.broadcast %227 : f32 to vector<13x13x2xf32>
    %229 = arith.mulf %226, %228 : vector<13x13x2xf32>
    %230 = arith.addf %213, %229 : vector<13x13x2xf32>
    %c29 = arith.constant 29 : index
    %231 = memref.load %arg2[%c29] : memref<64xf32, #tpu.memory_space<smem>>
    %232 = vector.broadcast %231 : f32 to vector<13x13x2xf32>
    %233 = arith.mulf %226, %232 : vector<13x13x2xf32>
    %234 = arith.addf %217, %233 : vector<13x13x2xf32>
    %c45 = arith.constant 45 : index
    %235 = memref.load %arg2[%c45] : memref<64xf32, #tpu.memory_space<smem>>
    %236 = vector.broadcast %235 : f32 to vector<13x13x2xf32>
    %237 = arith.mulf %226, %236 : vector<13x13x2xf32>
    %238 = arith.addf %221, %237 : vector<13x13x2xf32>
    %c61 = arith.constant 61 : index
    %239 = memref.load %arg2[%c61] : memref<64xf32, #tpu.memory_space<smem>>
    %240 = vector.broadcast %239 : f32 to vector<13x13x2xf32>
    %241 = arith.mulf %226, %240 : vector<13x13x2xf32>
    %242 = arith.addf %225, %241 : vector<13x13x2xf32>
    %243 = vector.extract_strided_slice %0 {offsets = [3, 2, 0], sizes = [13, 13, 2], strides = [1, 1, 1]} : vector<16x16x2xf32> to vector<13x13x2xf32>
    %c14 = arith.constant 14 : index
    %244 = memref.load %arg2[%c14] : memref<64xf32, #tpu.memory_space<smem>>
    %245 = vector.broadcast %244 : f32 to vector<13x13x2xf32>
    %246 = arith.mulf %243, %245 : vector<13x13x2xf32>
    %247 = arith.addf %230, %246 : vector<13x13x2xf32>
    %c30 = arith.constant 30 : index
    %248 = memref.load %arg2[%c30] : memref<64xf32, #tpu.memory_space<smem>>
    %249 = vector.broadcast %248 : f32 to vector<13x13x2xf32>
    %250 = arith.mulf %243, %249 : vector<13x13x2xf32>
    %251 = arith.addf %234, %250 : vector<13x13x2xf32>
    %c46 = arith.constant 46 : index
    %252 = memref.load %arg2[%c46] : memref<64xf32, #tpu.memory_space<smem>>
    %253 = vector.broadcast %252 : f32 to vector<13x13x2xf32>
    %254 = arith.mulf %243, %253 : vector<13x13x2xf32>
    %255 = arith.addf %238, %254 : vector<13x13x2xf32>
    %c62 = arith.constant 62 : index
    %256 = memref.load %arg2[%c62] : memref<64xf32, #tpu.memory_space<smem>>
    %257 = vector.broadcast %256 : f32 to vector<13x13x2xf32>
    %258 = arith.mulf %243, %257 : vector<13x13x2xf32>
    %259 = arith.addf %242, %258 : vector<13x13x2xf32>
    %260 = vector.extract_strided_slice %0 {offsets = [3, 3, 0], sizes = [13, 13, 2], strides = [1, 1, 1]} : vector<16x16x2xf32> to vector<13x13x2xf32>
    %c15 = arith.constant 15 : index
    %261 = memref.load %arg2[%c15] : memref<64xf32, #tpu.memory_space<smem>>
    %262 = vector.broadcast %261 : f32 to vector<13x13x2xf32>
    %263 = arith.mulf %260, %262 : vector<13x13x2xf32>
    %264 = arith.addf %247, %263 : vector<13x13x2xf32>
    %c31 = arith.constant 31 : index
    %265 = memref.load %arg2[%c31] : memref<64xf32, #tpu.memory_space<smem>>
    %266 = vector.broadcast %265 : f32 to vector<13x13x2xf32>
    %267 = arith.mulf %260, %266 : vector<13x13x2xf32>
    %268 = arith.addf %251, %267 : vector<13x13x2xf32>
    %c47 = arith.constant 47 : index
    %269 = memref.load %arg2[%c47] : memref<64xf32, #tpu.memory_space<smem>>
    %270 = vector.broadcast %269 : f32 to vector<13x13x2xf32>
    %271 = arith.mulf %260, %270 : vector<13x13x2xf32>
    %272 = arith.addf %255, %271 : vector<13x13x2xf32>
    %c63 = arith.constant 63 : index
    %273 = memref.load %arg2[%c63] : memref<64xf32, #tpu.memory_space<smem>>
    %274 = vector.broadcast %273 : f32 to vector<13x13x2xf32>
    %275 = arith.mulf %260, %274 : vector<13x13x2xf32>
    %276 = arith.addf %259, %275 : vector<13x13x2xf32>
    %c0_6 = arith.constant 0 : index
    %c0_7 = arith.constant 0 : index
    %c0_8 = arith.constant 0 : index
    %c0_9 = arith.constant 0 : index
    %277 = vector.load %arg3[%c0_6, %c0_7, %c0_8, %c0_9] : memref<4x13x13x2xf32, #tpu.memory_space<vmem>>, vector<1x13x13x2xf32>
    %278 = vector.shape_cast %277 : vector<1x13x13x2xf32> to vector<13x13x2xf32>
    %279 = vector.shape_cast %264 : vector<13x13x2xf32> to vector<1x13x13x2xf32>
    tpu.vector_store %arg3[%c0_6, %c0_7, %c0_8, %c0_9], %279 {strides = array<i32>} : memref<4x13x13x2xf32, #tpu.memory_space<vmem>>, vector<1x13x13x2xf32>,
    %cst_10 = arith.constant 0.000000e+00 : f32
    %280 = vector.broadcast %cst_10 : f32 to vector<13x13x2xf32>
    %281 = arith.maximumf %264, %280 : vector<13x13x2xf32>
    %c0_11 = arith.constant 0 : index
    %c0_12 = arith.constant 0 : index
    %c0_13 = arith.constant 0 : index
    %c0_14 = arith.constant 0 : index
    %282 = vector.load %arg4[%c0_11, %c0_12, %c0_13, %c0_14] : memref<4x13x13x2xf32, #tpu.memory_space<vmem>>, vector<1x13x13x2xf32>
    %283 = vector.shape_cast %282 : vector<1x13x13x2xf32> to vector<13x13x2xf32>
    %284 = vector.shape_cast %281 : vector<13x13x2xf32> to vector<1x13x13x2xf32>
    tpu.vector_store %arg4[%c0_11, %c0_12, %c0_13, %c0_14], %284 {strides = array<i32>} : memref<4x13x13x2xf32, #tpu.memory_space<vmem>>, vector<1x13x13x2xf32>,
    %c1_15 = arith.constant 1 : index
    %c0_16 = arith.constant 0 : index
    %c0_17 = arith.constant 0 : index
    %c0_18 = arith.constant 0 : index
    %285 = vector.load %arg3[%c1_15, %c0_16, %c0_17, %c0_18] : memref<4x13x13x2xf32, #tpu.memory_space<vmem>>, vector<1x13x13x2xf32>
    %286 = vector.shape_cast %285 : vector<1x13x13x2xf32> to vector<13x13x2xf32>
    %287 = vector.shape_cast %268 : vector<13x13x2xf32> to vector<1x13x13x2xf32>
    tpu.vector_store %arg3[%c1_15, %c0_16, %c0_17, %c0_18], %287 {strides = array<i32>} : memref<4x13x13x2xf32, #tpu.memory_space<vmem>>, vector<1x13x13x2xf32>,
    %cst_19 = arith.constant 0.000000e+00 : f32
    %288 = vector.broadcast %cst_19 : f32 to vector<13x13x2xf32>
    %289 = arith.maximumf %268, %288 : vector<13x13x2xf32>
    %c1_20 = arith.constant 1 : index
    %c0_21 = arith.constant 0 : index
    %c0_22 = arith.constant 0 : index
    %c0_23 = arith.constant 0 : index
    %290 = vector.load %arg4[%c1_20, %c0_21, %c0_22, %c0_23] : memref<4x13x13x2xf32, #tpu.memory_space<vmem>>, vector<1x13x13x2xf32>
    %291 = vector.shape_cast %290 : vector<1x13x13x2xf32> to vector<13x13x2xf32>
    %292 = vector.shape_cast %289 : vector<13x13x2xf32> to vector<1x13x13x2xf32>
    tpu.vector_store %arg4[%c1_20, %c0_21, %c0_22, %c0_23], %292 {strides = array<i32>} : memref<4x13x13x2xf32, #tpu.memory_space<vmem>>, vector<1x13x13x2xf32>,
    %c2_24 = arith.constant 2 : index
    %c0_25 = arith.constant 0 : index
    %c0_26 = arith.constant 0 : index
    %c0_27 = arith.constant 0 : index
    %293 = vector.load %arg3[%c2_24, %c0_25, %c0_26, %c0_27] : memref<4x13x13x2xf32, #tpu.memory_space<vmem>>, vector<1x13x13x2xf32>
    %294 = vector.shape_cast %293 : vector<1x13x13x2xf32> to vector<13x13x2xf32>
    %295 = vector.shape_cast %272 : vector<13x13x2xf32> to vector<1x13x13x2xf32>
    tpu.vector_store %arg3[%c2_24, %c0_25, %c0_26, %c0_27], %295 {strides = array<i32>} : memref<4x13x13x2xf32, #tpu.memory_space<vmem>>, vector<1x13x13x2xf32>,
    %cst_28 = arith.constant 0.000000e+00 : f32
    %296 = vector.broadcast %cst_28 : f32 to vector<13x13x2xf32>
    %297 = arith.maximumf %272, %296 : vector<13x13x2xf32>
    %c2_29 = arith.constant 2 : index
    %c0_30 = arith.constant 0 : index
    %c0_31 = arith.constant 0 : index
    %c0_32 = arith.constant 0 : index
    %298 = vector.load %arg4[%c2_29, %c0_30, %c0_31, %c0_32] : memref<4x13x13x2xf32, #tpu.memory_space<vmem>>, vector<1x13x13x2xf32>
    %299 = vector.shape_cast %298 : vector<1x13x13x2xf32> to vector<13x13x2xf32>
    %300 = vector.shape_cast %297 : vector<13x13x2xf32> to vector<1x13x13x2xf32>
    tpu.vector_store %arg4[%c2_29, %c0_30, %c0_31, %c0_32], %300 {strides = array<i32>} : memref<4x13x13x2xf32, #tpu.memory_space<vmem>>, vector<1x13x13x2xf32>,
    %c3_33 = arith.constant 3 : index
    %c0_34 = arith.constant 0 : index
    %c0_35 = arith.constant 0 : index
    %c0_36 = arith.constant 0 : index
    %301 = vector.load %arg3[%c3_33, %c0_34, %c0_35, %c0_36] : memref<4x13x13x2xf32, #tpu.memory_space<vmem>>, vector<1x13x13x2xf32>
    %302 = vector.shape_cast %301 : vector<1x13x13x2xf32> to vector<13x13x2xf32>
    %303 = vector.shape_cast %276 : vector<13x13x2xf32> to vector<1x13x13x2xf32>
    tpu.vector_store %arg3[%c3_33, %c0_34, %c0_35, %c0_36], %303 {strides = array<i32>} : memref<4x13x13x2xf32, #tpu.memory_space<vmem>>, vector<1x13x13x2xf32>,
    %cst_37 = arith.constant 0.000000e+00 : f32
    %304 = vector.broadcast %cst_37 : f32 to vector<13x13x2xf32>
    %305 = arith.maximumf %276, %304 : vector<13x13x2xf32>
    %c3_38 = arith.constant 3 : index
    %c0_39 = arith.constant 0 : index
    %c0_40 = arith.constant 0 : index
    %c0_41 = arith.constant 0 : index
    %306 = vector.load %arg4[%c3_38, %c0_39, %c0_40, %c0_41] : memref<4x13x13x2xf32, #tpu.memory_space<vmem>>, vector<1x13x13x2xf32>
    %307 = vector.shape_cast %306 : vector<1x13x13x2xf32> to vector<13x13x2xf32>
    %308 = vector.shape_cast %305 : vector<13x13x2xf32> to vector<1x13x13x2xf32>
    tpu.vector_store %arg4[%c3_38, %c0_39, %c0_40, %c0_41], %308 {strides = array<i32>} : memref<4x13x13x2xf32, #tpu.memory_space<vmem>>, vector<1x13x13x2xf32>,
    return
  }
  func.func @transform_0(%arg0: i32) -> (i32, i32, i32) {
    %c0_i32 = arith.constant 0 : i32
    %c0_i32_0 = arith.constant 0 : i32
    %c0_i32_1 = arith.constant 0 : i32
    return %c0_i32, %c0_i32_0, %arg0 : i32, i32, i32
  }
  func.func @transform_1(%arg0: i32) -> i32 {
    %c0_i32 = arith.constant 0 : i32
    %c0_i32_0 = arith.constant 0 : i32
    return %c0_i32 : i32
  }
  func.func @transform_2(%arg0: i32) -> (i32, i32, i32, i32) {
    %c0_i32 = arith.constant 0 : i32
    %c0_i32_0 = arith.constant 0 : i32
    %c0_i32_1 = arith.constant 0 : i32
    %c0_i32_2 = arith.constant 0 : i32
    return %c0_i32, %c0_i32_0, %c0_i32_1, %arg0 : i32, i32, i32, i32
  }
  func.func @transform_3(%arg0: i32) -> (i32, i32, i32, i32) {
    %c0_i32 = arith.constant 0 : i32
    %c0_i32_0 = arith.constant 0 : i32
    %c0_i32_1 = arith.constant 0 : i32
    %c0_i32_2 = arith.constant 0 : i32
    return %c0_i32, %c0_i32_0, %c0_i32_1, %arg0 : i32, i32, i32, i32
  }
}

</mosaic_0001>

<llo_original>
// kernel: tpu_custom_call.1
$region0: #{tpu_custom_call.1}
  #allocation0 [shape = 'u32[]', space=smem, size = 0x4, offset = 0x4, fixed_abs, tag = 'smem constant byte address 0x4 - core index']
  #allocation1 [shape = 'u32[144,128]{1,0:T(1,128)}', space=vmem, size = 0x12000, scoped, tag = 'internal scratch']
  %s0 = inlined_call_operand.vmem [shape: f32[16,16,2], index: 0, kind: input, shape index: {}]
  %s1 = inlined_call_operand.vmem [shape: f32[64], index: 1, kind: input, shape index: {}]
  %s2 = inlined_call_operand.vmem [shape: f32[4,13,13,2], index: 2, kind: output, shape index: {0}]
  %s3 = inlined_call_operand.vmem [shape: f32[4,13,13,2], index: 3, kind: output, shape index: {1}]
  %4 = xla_tuple %s2, %s3
  %s5 = sld [smem:[#allocation0]]
  $region30: #{tpu_custom_call.1} parent=0
    _
  %s7 = ssub.s32 1, %s5
  %s8 = scalar_select 0, %s7, %s5
  $region1: #{tpu_custom_call.1} parent=0
    #allocation2 [shape = 'u8[512]{0}', space=smem, size = 0x200, scoped, tag = 'input window, operand 1, single buffered']
    #allocation3 [shape = 's32[1]{0}', space=sflag, size = 0x4, scoped, tag = 'scoped memory for tpu_custom_call.1']
    %9 = vsyncpa [#allocation3], 0
    // Predicated region
    $region2: #{tpu_custom_call.1} parent=1 // pred_check
      _
    $region3: #{tpu_custom_call.1} parent=1 // pred_check_branch
      %11 = sbr.rel (0) target = $region5
    $region4: #{tpu_custom_call.1} parent=1 // pred_region
      _
    $region5: #{tpu_custom_call.1} parent=1 // pred_fallthru
      _
    // Predicated region
    $region6: #{tpu_custom_call.1} parent=1 // pred_check
      _
    $region7: #{tpu_custom_call.1} parent=1 // pred_check_branch
      %13 = sbr.rel (0) target = $region9
    $region8: #{tpu_custom_call.1} parent=1 // pred_region
      %s15 = ssub.s32 16, 16
      %16 = vsyncadd [#allocation3], %s15
      %s18 = sshll.u32 %s1, 4
      %s19 = int_to_ptr.vmem [resolvable:$true] %s18
      %21 = dma.vmem_to_smem %s19, 16, [#allocation2], [#allocation3]
    $region9: #{tpu_custom_call.1} parent=1 // pred_fallthru
      _
    // Predicated region
    $region10: #{tpu_custom_call.1} parent=1 // pred_check
      _
    $region11: #{tpu_custom_call.1} parent=1 // pred_check_branch
      %23 = sbr.rel (0) target = $region13
    $region12: #{tpu_custom_call.1} parent=1 // pred_region
      %24 = dma.done [#allocation3], 16
    $region13: #{tpu_custom_call.1} parent=1 // pred_fallthru
      _
    %25 = sfence
    %v26 = vld [vmem:[%s0] sm:$0xff]
    %v27 = vld [vmem:[%s0 + $0x8] sm:$0xff]
    %v28 = vld [vmem:[%s0 + $0x10] sm:$0xff]
    %v29 = vld [vmem:[%s0 + $0x18] sm:$0xff]
    %v30 = vld [vmem:[%s0 + $0x20] sm:$0xff]
    %v31 = vld [vmem:[%s0 + $0x28] sm:$0xff]
    %v32 = vld [vmem:[%s0 + $0x30] sm:$0xff]
    %v33 = vld [vmem:[%s0 + $0x38] sm:$0xff]
    %v34 = vld [vmem:[%s0 + $0x40] sm:$0xff]
    %v35 = vld [vmem:[%s0 + $0x48] sm:$0xff]
    %v36 = vld [vmem:[%s0 + $0x50] sm:$0xff]
    %v37 = vld [vmem:[%s0 + $0x58] sm:$0xff]
    %v38 = vld [vmem:[%s0 + $0x60] sm:$0xff]
    %v39 = vld [vmem:[%s0 + $0x68] sm:$0xff]
    %v40 = vld [vmem:[%s0 + $0x70] sm:$0xff]
    %v41 = vld [vmem:[%s0 + $0x78] sm:$0xff]
    %v42 = vld [vmem:[%s0 + $0x80] sm:$0xff]
    %v43 = vld [vmem:[%s0 + $0x88] sm:$0xff]
    %v44 = vld [vmem:[%s0 + $0x90] sm:$0xff]
    %v45 = vld [vmem:[%s0 + $0x98] sm:$0xff]
    %v46 = vld [vmem:[%s0 + $0xa0] sm:$0xff]
    %v47 = vld [vmem:[%s0 + $0xa8] sm:$0xff]
    %v48 = vld [vmem:[%s0 + $0xb0] sm:$0xff]
    %v49 = vld [vmem:[%s0 + $0xb8] sm:$0xff]
    %v50 = vld [vmem:[%s0 + $0xc0] sm:$0xff]
    %v51 = vld [vmem:[%s0 + $0xc8] sm:$0xff]
    %v52 = vld [vmem:[%s0 + $0xd0] sm:$0xff]
    %v53 = vld [vmem:[%s0 + $0xd8] sm:$0xff]
    %v54 = vld [vmem:[%s0 + $0xe0] sm:$0xff]
    %v55 = vld [vmem:[%s0 + $0xe8] sm:$0xff]
    %v56 = vld [vmem:[%s0 + $0xf0] sm:$0xff]
    %v57 = vld [vmem:[%s0 + $0xf8] sm:$0xff]
    %s58 = sld [smem:[#allocation2]]
    %v59 = vstv %s58
    %v60 = vmul.f32 %v26, %v59
    %v61 = vmul.f32 %v27, %v59
    %v62 = vmul.f32 %v28, %v59
    %v63 = vmul.f32 %v29, %v59
    %v64 = vmul.f32 %v30, %v59
    %v65 = vmul.f32 %v31, %v59
    %v66 = vmul.f32 %v32, %v59
    %v67 = vmul.f32 %v33, %v59
    %v68 = vmul.f32 %v34, %v59
    %v69 = vmul.f32 %v35, %v59
    %v70 = vmul.f32 %v36, %v59
    %v71 = vmul.f32 %v37, %v59
    %v72 = vmul.f32 %v38, %v59
    %v73 = vmul.f32 %v39, %v59
    %v74 = vmul.f32 %v40, %v59
    %v75 = vmul.f32 %v41, %v59
    %v76 = vmul.f32 %v42, %v59
    %v77 = vmul.f32 %v43, %v59
    %v78 = vmul.f32 %v44, %v59
    %v79 = vmul.f32 %v45, %v59
    %v80 = vmul.f32 %v46, %v59
    %v81 = vmul.f32 %v47, %v59
    %v82 = vmul.f32 %v48, %v59
    %v83 = vmul.f32 %v49, %v59
    %v84 = vmul.f32 %v50, %v59
    %v85 = vmul.f32 %v51, %v59
    %v86 = vadd.f32 %v60, 0.0
    %v87 = vadd.f32 %v61, 0.0
    %v88 = vadd.f32 %v62, 0.0
    %v89 = vadd.f32 %v63, 0.0
    %v90 = vadd.f32 %v64, 0.0
    %v91 = vadd.f32 %v65, 0.0
    %v92 = vadd.f32 %v66, 0.0
    %v93 = vadd.f32 %v67, 0.0
    %v94 = vadd.f32 %v68, 0.0
    %v95 = vadd.f32 %v69, 0.0
    %v96 = vadd.f32 %v70, 0.0
    %v97 = vadd.f32 %v71, 0.0
    %v98 = vadd.f32 %v72, 0.0
    %v99 = vadd.f32 %v73, 0.0
    %v100 = vadd.f32 %v74, 0.0
    %v101 = vadd.f32 %v75, 0.0
    %v102 = vadd.f32 %v76, 0.0
    %v103 = vadd.f32 %v77, 0.0
    %v104 = vadd.f32 %v78, 0.0
    %v105 = vadd.f32 %v79, 0.0
    %v106 = vadd.f32 %v80, 0.0
    %v107 = vadd.f32 %v81, 0.0
    %v108 = vadd.f32 %v82, 0.0
    %v109 = vadd.f32 %v83, 0.0
    %v110 = vadd.f32 %v84, 0.0
    %v111 = vadd.f32 %v85, 0.0
    %s112 = sld [smem:[#allocation2 + $0x10]]
    %v113 = vstv %s112
    %v114 = vmul.f32 %v26, %v113
    %v115 = vmul.f32 %v27, %v113
    %v116 = vmul.f32 %v28, %v113
    %v117 = vmul.f32 %v29, %v113
    %v118 = vmul.f32 %v30, %v113
    %v119 = vmul.f32 %v31, %v113
    %v120 = vmul.f32 %v32, %v113
    %v121 = vmul.f32 %v33, %v113
    %v122 = vmul.f32 %v34, %v113
    %v123 = vmul.f32 %v35, %v113
    %v124 = vmul.f32 %v36, %v113
    %v125 = vmul.f32 %v37, %v113
    %v126 = vmul.f32 %v38, %v113
    %v127 = vmul.f32 %v39, %v113
    %v128 = vmul.f32 %v40, %v113
    %v129 = vmul.f32 %v41, %v113
    %v130 = vmul.f32 %v42, %v113
    %v131 = vmul.f32 %v43, %v113
    %v132 = vmul.f32 %v44, %v113
    %v133 = vmul.f32 %v45, %v113
    %v134 = vmul.f32 %v46, %v113
    %v135 = vmul.f32 %v47, %v113
    %v136 = vmul.f32 %v48, %v113
    %v137 = vmul.f32 %v49, %v113
    %v138 = vmul.f32 %v50, %v113
    %v139 = vmul.f32 %v51, %v113
    %v140 = vadd.f32 %v114, 0.0
    %v141 = vadd.f32 %v115, 0.0
    %v142 = vadd.f32 %v116, 0.0
    %v143 = vadd.f32 %v117, 0.0
    %v144 = vadd.f32 %v118, 0.0
    %v145 = vadd.f32 %v119, 0.0
    %v146 = vadd.f32 %v120, 0.0
    %v147 = vadd.f32 %v121, 0.0
    %v148 = vadd.f32 %v122, 0.0
    %v149 = vadd.f32 %v123, 0.0
    %v150 = vadd.f32 %v124, 0.0
    %v151 = vadd.f32 %v125, 0.0
    %v152 = vadd.f32 %v126, 0.0
    %v153 = vadd.f32 %v127, 0.0
    %v154 = vadd.f32 %v128, 0.0
    %v155 = vadd.f32 %v129, 0.0
    %v156 = vadd.f32 %v130, 0.0
    %v157 = vadd.f32 %v131, 0.0
    %v158 = vadd.f32 %v132, 0.0
    %v159 = vadd.f32 %v133, 0.0
    %v160 = vadd.f32 %v134, 0.0
    %v161 = vadd.f32 %v135, 0.0
    %v162 = vadd.f32 %v136, 0.0
    %v163 = vadd.f32 %v137, 0.0
    %v164 = vadd.f32 %v138, 0.0
    %v165 = vadd.f32 %v139, 0.0
    %s166 = sld [smem:[#allocation2 + $0x20]]
    %v167 = vstv %s166
    %v168 = vmul.f32 %v26, %v167
    %v169 = vmul.f32 %v27, %v167
    %v170 = vmul.f32 %v28, %v167
    %v171 = vmul.f32 %v29, %v167
    %v172 = vmul.f32 %v30, %v167
    %v173 = vmul.f32 %v31, %v167
    %v174 = vmul.f32 %v32, %v167
    %v175 = vmul.f32 %v33, %v167
    %v176 = vmul.f32 %v34, %v167
    %v177 = vmul.f32 %v35, %v167
    %v178 = vmul.f32 %v36, %v167
    %v179 = vmul.f32 %v37, %v167
    %v180 = vmul.f32 %v38, %v167
    %v181 = vmul.f32 %v39, %v167
    %v182 = vmul.f32 %v40, %v167
    %v183 = vmul.f32 %v41, %v167
    %v184 = vmul.f32 %v42, %v167
    %v185 = vmul.f32 %v43, %v167
    %v186 = vmul.f32 %v44, %v167
    %v187 = vmul.f32 %v45, %v167
    %v188 = vmul.f32 %v46, %v167
    %v189 = vmul.f32 %v47, %v167
    %v190 = vmul.f32 %v48, %v167
    %v191 = vmul.f32 %v49, %v167
    %v192 = vmul.f32 %v50, %v167
    %v193 = vmul.f32 %v51, %v167
    %v194 = vadd.f32 %v168, 0.0
    %v195 = vadd.f32 %v169, 0.0
    %v196 = vadd.f32 %v170, 0.0
    %v197 = vadd.f32 %v171, 0.0
    %v198 = vadd.f32 %v172, 0.0
    %v199 = vadd.f32 %v173, 0.0
    %v200 = vadd.f32 %v174, 0.0
    %v201 = vadd.f32 %v175, 0.0
    %v202 = vadd.f32 %v176, 0.0
    %v203 = vadd.f32 %v177, 0.0
    %v204 = vadd.f32 %v178, 0.0
    %v205 = vadd.f32 %v179, 0.0
    %v206 = vadd.f32 %v180, 0.0
    %v207 = vadd.f32 %v181, 0.0
    %v208 = vadd.f32 %v182, 0.0
    %v209 = vadd.f32 %v183, 0.0
    %v210 = vadd.f32 %v184, 0.0
    %v211 = vadd.f32 %v185, 0.0
    %v212 = vadd.f32 %v186, 0.0
    %v213 = vadd.f32 %v187, 0.0
    %v214 = vadd.f32 %v188, 0.0
    %v215 = vadd.f32 %v189, 0.0
    %v216 = vadd.f32 %v190, 0.0
    %v217 = vadd.f32 %v191, 0.0
    %v218 = vadd.f32 %v192, 0.0
    %v219 = vadd.f32 %v193, 0.0
    %s220 = sld [smem:[#allocation2 + $0x30]]
    %v221 = vstv %s220
    %v222 = vmul.f32 %v26, %v221
    %v223 = vmul.f32 %v27, %v221
    %v224 = vmul.f32 %v28, %v221
    %v225 = vmul.f32 %v29, %v221
    %v226 = vmul.f32 %v30, %v221
    %v227 = vmul.f32 %v31, %v221
    %v228 = vmul.f32 %v32, %v221
    %v229 = vmul.f32 %v33, %v221
    %v230 = vmul.f32 %v34, %v221
    %v231 = vmul.f32 %v35, %v221
    %v232 = vmul.f32 %v36, %v221
    %v233 = vmul.f32 %v37, %v221
    %v234 = vmul.f32 %v38, %v221
    %v235 = vmul.f32 %v39, %v221
    %v236 = vmul.f32 %v40, %v221
    %v237 = vmul.f32 %v41, %v221
    %v238 = vmul.f32 %v42, %v221
    %v239 = vmul.f32 %v43, %v221
    %v240 = vmul.f32 %v44, %v221
    %v241 = vmul.f32 %v45, %v221
    %v242 = vmul.f32 %v46, %v221
    %v243 = vmul.f32 %v47, %v221
    %v244 = vmul.f32 %v48, %v221
    %v245 = vmul.f32 %v49, %v221
    %v246 = vmul.f32 %v50, %v221
    %v247 = vmul.f32 %v51, %v221
    %v248 = vadd.f32 %v222, 0.0
    %v249 = vadd.f32 %v223, 0.0
    %v250 = vadd.f32 %v224, 0.0
    %v251 = vadd.f32 %v225, 0.0
    %v252 = vadd.f32 %v226, 0.0
    %v253 = vadd.f32 %v227, 0.0
    %v254 = vadd.f32 %v228, 0.0
    %v255 = vadd.f32 %v229, 0.0
    %v256 = vadd.f32 %v230, 0.0
    %v257 = vadd.f32 %v231, 0.0
    %v258 = vadd.f32 %v232, 0.0
    %v259 = vadd.f32 %v233, 0.0
    %v260 = vadd.f32 %v234, 0.0
    %v261 = vadd.f32 %v235, 0.0
    %v262 = vadd.f32 %v236, 0.0
    %v263 = vadd.f32 %v237, 0.0
    %v264 = vadd.f32 %v238, 0.0
    %v265 = vadd.f32 %v239, 0.0
    %v266 = vadd.f32 %v240, 0.0
    %v267 = vadd.f32 %v241, 0.0
    %v268 = vadd.f32 %v242, 0.0
    %v269 = vadd.f32 %v243, 0.0
    %v270 = vadd.f32 %v244, 0.0
    %v271 = vadd.f32 %v245, 0.0
    %v272 = vadd.f32 %v246, 0.0
    %v273 = vadd.f32 %v247, 0.0
    %s274 = sld [smem:[#allocation2 + $0x1]]
    %v275 = vstv %s274
    %v276 = vmul.f32 %v26, %v275
    %v277 = vmul.f32 %v27, %v275
    %v278 = vmul.f32 %v28, %v275
    %v279 = vmul.f32 %v29, %v275
    %v280 = vmul.f32 %v30, %v275
    %v281 = vmul.f32 %v31, %v275
    %v282 = vmul.f32 %v32, %v275
    %v283 = vmul.f32 %v33, %v275
    %v284 = vmul.f32 %v34, %v275
    %v285 = vmul.f32 %v35, %v275
    %v286 = vmul.f32 %v36, %v275
    %v287 = vmul.f32 %v37, %v275
    %v288 = vmul.f32 %v38, %v275
    %v289 = vmul.f32 %v39, %v275
    %v290 = vmul.f32 %v40, %v275
    %v291 = vmul.f32 %v41, %v275
    %v292 = vmul.f32 %v42, %v275
    %v293 = vmul.f32 %v43, %v275
    %v294 = vmul.f32 %v44, %v275
    %v295 = vmul.f32 %v45, %v275
    %v296 = vmul.f32 %v46, %v275
    %v297 = vmul.f32 %v47, %v275
    %v298 = vmul.f32 %v48, %v275
    %v299 = vmul.f32 %v49, %v275
    %v300 = vmul.f32 %v50, %v275
    %v301 = vmul.f32 %v51, %v275
    %vm328 = vcmask 1046528
    %v329 = vrot.slane %v276, 1
    %v330 = vrot.slane %v277, 1
    %v331 = vsel %vm328, %v329, %v330
    %v332 = vrot.slane %v278, 1
    %v333 = vrot.slane %v279, 1
    %v334 = vsel %vm328, %v332, %v333
    %v335 = vrot.slane %v280, 1
    %v336 = vrot.slane %v281, 1
    %v337 = vsel %vm328, %v335, %v336
    %v338 = vrot.slane %v282, 1
    %v339 = vrot.slane %v283, 1
    %v340 = vsel %vm328, %v338, %v339
    %v341 = vrot.slane %v284, 1
    %v342 = vrot.slane %v285, 1
    %v343 = vsel %vm328, %v341, %v342
    %v344 = vrot.slane %v286, 1
    %v345 = vrot.slane %v287, 1
    %v346 = vsel %vm328, %v344, %v345
    %v347 = vrot.slane %v288, 1
    %v348 = vrot.slane %v289, 1
    %v349 = vsel %vm328, %v347, %v348
    %v350 = vrot.slane %v290, 1
    %v351 = vrot.slane %v291, 1
    %v352 = vsel %vm328, %v350, %v351
    %v353 = vrot.slane %v292, 1
    %v354 = vrot.slane %v293, 1
    %v355 = vsel %vm328, %v353, %v354
    %v356 = vrot.slane %v294, 1
    %v357 = vrot.slane %v295, 1
    %v358 = vsel %vm328, %v356, %v357
    %v359 = vrot.slane %v296, 1
    %v360 = vrot.slane %v297, 1
    %v361 = vsel %vm328, %v359, %v360
    %v362 = vrot.slane %v298, 1
    %v363 = vrot.slane %v299, 1
    %v364 = vsel %vm328, %v362, %v363
    %v365 = vrot.slane %v300, 1
    %v366 = vrot.slane %v301, 1
    %v367 = vsel %vm328, %v365, %v366
    %v394 = vadd.f32 %v86, %v331
    %v395 = vadd.f32 %v87, %v330
    %v396 = vadd.f32 %v88, %v334
    %v397 = vadd.f32 %v89, %v333
    %v398 = vadd.f32 %v90, %v337
    %v399 = vadd.f32 %v91, %v336
    %v400 = vadd.f32 %v92, %v340
    %v401 = vadd.f32 %v93, %v339
    %v402 = vadd.f32 %v94, %v343
    %v403 = vadd.f32 %v95, %v342
    %v404 = vadd.f32 %v96, %v346
    %v405 = vadd.f32 %v97, %v345
    %v406 = vadd.f32 %v98, %v349
    %v407 = vadd.f32 %v99, %v348
    %v408 = vadd.f32 %v100, %v352
    %v409 = vadd.f32 %v101, %v351
    %v410 = vadd.f32 %v102, %v355
    %v411 = vadd.f32 %v103, %v354
    %v412 = vadd.f32 %v104, %v358
    %v413 = vadd.f32 %v105, %v357
    %v414 = vadd.f32 %v106, %v361
    %v415 = vadd.f32 %v107, %v360
    %v416 = vadd.f32 %v108, %v364
    %v417 = vadd.f32 %v109, %v363
    %v418 = vadd.f32 %v110, %v367
    %v419 = vadd.f32 %v111, %v366
    %s420 = sld [smem:[#allocation2 + $0x11]]
    %v421 = vstv %s420
    %v422 = vmul.f32 %v26, %v421
    %v423 = vmul.f32 %v27, %v421
    %v424 = vmul.f32 %v28, %v421
    %v425 = vmul.f32 %v29, %v421
    %v426 = vmul.f32 %v30, %v421
    %v427 = vmul.f32 %v31, %v421
    %v428 = vmul.f32 %v32, %v421
    %v429 = vmul.f32 %v33, %v421
    %v430 = vmul.f32 %v34, %v421
    %v431 = vmul.f32 %v35, %v421
    %v432 = vmul.f32 %v36, %v421
    %v433 = vmul.f32 %v37, %v421
    %v434 = vmul.f32 %v38, %v421
    %v435 = vmul.f32 %v39, %v421
    %v436 = vmul.f32 %v40, %v421
    %v437 = vmul.f32 %v41, %v421
    %v438 = vmul.f32 %v42, %v421
    %v439 = vmul.f32 %v43, %v421
    %v440 = vmul.f32 %v44, %v421
    %v441 = vmul.f32 %v45, %v421
    %v442 = vmul.f32 %v46, %v421
    %v443 = vmul.f32 %v47, %v421
    %v444 = vmul.f32 %v48, %v421
    %v445 = vmul.f32 %v49, %v421
    %v446 = vmul.f32 %v50, %v421
    %v447 = vmul.f32 %v51, %v421
    %v474 = vrot.slane %v422, 1
    %v475 = vrot.slane %v423, 1
    %v476 = vsel %vm328, %v474, %v475
    %v477 = vrot.slane %v424, 1
    %v478 = vrot.slane %v425, 1
    %v479 = vsel %vm328, %v477, %v478
    %v480 = vrot.slane %v426, 1
    %v481 = vrot.slane %v427, 1
    %v482 = vsel %vm328, %v480, %v481
    %v483 = vrot.slane %v428, 1
    %v484 = vrot.slane %v429, 1
    %v485 = vsel %vm328, %v483, %v484
    %v486 = vrot.slane %v430, 1
    %v487 = vrot.slane %v431, 1
    %v488 = vsel %vm328, %v486, %v487
    %v489 = vrot.slane %v432, 1
    %v490 = vrot.slane %v433, 1
    %v491 = vsel %vm328, %v489, %v490
    %v492 = vrot.slane %v434, 1
    %v493 = vrot.slane %v435, 1
    %v494 = vsel %vm328, %v492, %v493
    %v495 = vrot.slane %v436, 1
    %v496 = vrot.slane %v437, 1
    %v497 = vsel %vm328, %v495, %v496
    %v498 = vrot.slane %v438, 1
    %v499 = vrot.slane %v439, 1
    %v500 = vsel %vm328, %v498, %v499
    %v501 = vrot.slane %v440, 1
    %v502 = vrot.slane %v441, 1
    %v503 = vsel %vm328, %v501, %v502
    %v504 = vrot.slane %v442, 1
    %v505 = vrot.slane %v443, 1
    %v506 = vsel %vm328, %v504, %v505
    %v507 = vrot.slane %v444, 1
    %v508 = vrot.slane %v445, 1
    %v509 = vsel %vm328, %v507, %v508
    %v510 = vrot.slane %v446, 1
    %v511 = vrot.slane %v447, 1
    %v512 = vsel %vm328, %v510, %v511
    %v539 = vadd.f32 %v140, %v476
    %v540 = vadd.f32 %v141, %v475
    %v541 = vadd.f32 %v142, %v479
    %v542 = vadd.f32 %v143, %v478
    %v543 = vadd.f32 %v144, %v482
    %v544 = vadd.f32 %v145, %v481
    %v545 = vadd.f32 %v146, %v485
    %v546 = vadd.f32 %v147, %v484
    %v547 = vadd.f32 %v148, %v488
    %v548 = vadd.f32 %v149, %v487
    %v549 = vadd.f32 %v150, %v491
    %v550 = vadd.f32 %v151, %v490
    %v551 = vadd.f32 %v152, %v494
    %v552 = vadd.f32 %v153, %v493
    %v553 = vadd.f32 %v154, %v497
    %v554 = vadd.f32 %v155, %v496
    %v555 = vadd.f32 %v156, %v500
    %v556 = vadd.f32 %v157, %v499
    %v557 = vadd.f32 %v158, %v503
    %v558 = vadd.f32 %v159, %v502
    %v559 = vadd.f32 %v160, %v506
    %v560 = vadd.f32 %v161, %v505
    %v561 = vadd.f32 %v162, %v509
    %v562 = vadd.f32 %v163, %v508
    %v563 = vadd.f32 %v164, %v512
    %v564 = vadd.f32 %v165, %v511
    %s565 = sld [smem:[#allocation2 + $0x21]]
    %v566 = vstv %s565
    %v567 = vmul.f32 %v26, %v566
    %v568 = vmul.f32 %v27, %v566
    %v569 = vmul.f32 %v28, %v566
    %v570 = vmul.f32 %v29, %v566
    %v571 = vmul.f32 %v30, %v566
    %v572 = vmul.f32 %v31, %v566
    %v573 = vmul.f32 %v32, %v566
    %v574 = vmul.f32 %v33, %v566
    %v575 = vmul.f32 %v34, %v566
    %v576 = vmul.f32 %v35, %v566
    %v577 = vmul.f32 %v36, %v566
    %v578 = vmul.f32 %v37, %v566
    %v579 = vmul.f32 %v38, %v566
    %v580 = vmul.f32 %v39, %v566
    %v581 = vmul.f32 %v40, %v566
    %v582 = vmul.f32 %v41, %v566
    %v583 = vmul.f32 %v42, %v566
    %v584 = vmul.f32 %v43, %v566
    %v585 = vmul.f32 %v44, %v566
    %v586 = vmul.f32 %v45, %v566
    %v587 = vmul.f32 %v46, %v566
    %v588 = vmul.f32 %v47, %v566
    %v589 = vmul.f32 %v48, %v566
    %v590 = vmul.f32 %v49, %v566
    %v591 = vmul.f32 %v50, %v566
    %v592 = vmul.f32 %v51, %v566
    %v619 = vrot.slane %v567, 1
    %v620 = vrot.slane %v568, 1
    %v621 = vsel %vm328, %v619, %v620
    %v622 = vrot.slane %v569, 1
    %v623 = vrot.slane %v570, 1
    %v624 = vsel %vm328, %v622, %v623
    %v625 = vrot.slane %v571, 1
    %v626 = vrot.slane %v572, 1
    %v627 = vsel %vm328, %v625, %v626
    %v628 = vrot.slane %v573, 1
    %v629 = vrot.slane %v574, 1
    %v630 = vsel %vm328, %v628, %v629
    %v631 = vrot.slane %v575, 1
    %v632 = vrot.slane %v576, 1
    %v633 = vsel %vm328, %v631, %v632
    %v634 = vrot.slane %v577, 1
    %v635 = vrot.slane %v578, 1
    %v636 = vsel %vm328, %v634, %v635
    %v637 = vrot.slane %v579, 1
    %v638 = vrot.slane %v580, 1
    %v639 = vsel %vm328, %v637, %v638
    %v640 = vrot.slane %v581, 1
    %v641 = vrot.slane %v582, 1
    %v642 = vsel %vm328, %v640, %v641
    %v643 = vrot.slane %v583, 1
    %v644 = vrot.slane %v584, 1
    %v645 = vsel %vm328, %v643, %v644
    %v646 = vrot.slane %v585, 1
    %v647 = vrot.slane %v586, 1
    %v648 = vsel %vm328, %v646, %v647
    %v649 = vrot.slane %v587, 1
    %v650 = vrot.slane %v588, 1
    %v651 = vsel %vm328, %v649, %v650
    %v652 = vrot.slane %v589, 1
    %v653 = vrot.slane %v590, 1
    %v654 = vsel %vm328, %v652, %v653
    %v655 = vrot.slane %v591, 1
    %v656 = vrot.slane %v592, 1
    %v657 = vsel %vm328, %v655, %v656
    %v684 = vadd.f32 %v194, %v621
    %v685 = vadd.f32 %v195, %v620
    %v686 = vadd.f32 %v196, %v624
    %v687 = vadd.f32 %v197, %v623
    %v688 = vadd.f32 %v198, %v627
    %v689 = vadd.f32 %v199, %v626
    %v690 = vadd.f32 %v200, %v630
    %v691 = vadd.f32 %v201, %v629
    %v692 = vadd.f32 %v202, %v633
    %v693 = vadd.f32 %v203, %v632
    %v694 = vadd.f32 %v204, %v636
    %v695 = vadd.f32 %v205, %v635
    %v696 = vadd.f32 %v206, %v639
    %v697 = vadd.f32 %v207, %v638
    %v698 = vadd.f32 %v208, %v642
    %v699 = vadd.f32 %v209, %v641
    %v700 = vadd.f32 %v210, %v645
    %v701 = vadd.f32 %v211, %v644
    %v702 = vadd.f32 %v212, %v648
    %v703 = vadd.f32 %v213, %v647
    %v704 = vadd.f32 %v214, %v651
    %v705 = vadd.f32 %v215, %v650
    %v706 = vadd.f32 %v216, %v654
    %v707 = vadd.f32 %v217, %v653
    %v708 = vadd.f32 %v218, %v657
    %v709 = vadd.f32 %v219, %v656
    %s710 = sld [smem:[#allocation2 + $0x31]]
    %v711 = vstv %s710
    %v712 = vmul.f32 %v26, %v711
    %v713 = vmul.f32 %v27, %v711
    %v714 = vmul.f32 %v28, %v711
    %v715 = vmul.f32 %v29, %v711
    %v716 = vmul.f32 %v30, %v711
    %v717 = vmul.f32 %v31, %v711
    %v718 = vmul.f32 %v32, %v711
    %v719 = vmul.f32 %v33, %v711
    %v720 = vmul.f32 %v34, %v711
    %v721 = vmul.f32 %v35, %v711
    %v722 = vmul.f32 %v36, %v711
    %v723 = vmul.f32 %v37, %v711
    %v724 = vmul.f32 %v38, %v711
    %v725 = vmul.f32 %v39, %v711
    %v726 = vmul.f32 %v40, %v711
    %v727 = vmul.f32 %v41, %v711
    %v728 = vmul.f32 %v42, %v711
    %v729 = vmul.f32 %v43, %v711
    %v730 = vmul.f32 %v44, %v711
    %v731 = vmul.f32 %v45, %v711
    %v732 = vmul.f32 %v46, %v711
    %v733 = vmul.f32 %v47, %v711
    %v734 = vmul.f32 %v48, %v711
    %v735 = vmul.f32 %v49, %v711
    %v736 = vmul.f32 %v50, %v711
    %v737 = vmul.f32 %v51, %v711
    %v764 = vrot.slane %v712, 1
    %v765 = vrot.slane %v713, 1
    %v766 = vsel %vm328, %v764, %v765
    %v767 = vrot.slane %v714, 1
    %v768 = vrot.slane %v715, 1
    %v769 = vsel %vm328, %v767, %v768
    %v770 = vrot.slane %v716, 1
    %v771 = vrot.slane %v717, 1
    %v772 = vsel %vm328, %v770, %v771
    %v773 = vrot.slane %v718, 1
    %v774 = vrot.slane %v719, 1
    %v775 = vsel %vm328, %v773, %v774
    %v776 = vrot.slane %v720, 1
    %v777 = vrot.slane %v721, 1
    %v778 = vsel %vm328, %v776, %v777
    %v779 = vrot.slane %v722, 1
    %v780 = vrot.slane %v723, 1
    %v781 = vsel %vm328, %v779, %v780
    %v782 = vrot.slane %v724, 1
    %v783 = vrot.slane %v725, 1
    %v784 = vsel %vm328, %v782, %v783
    %v785 = vrot.slane %v726, 1
    %v786 = vrot.slane %v727, 1
    %v787 = vsel %vm328, %v785, %v786
    %v788 = vrot.slane %v728, 1
    %v789 = vrot.slane %v729, 1
    %v790 = vsel %vm328, %v788, %v789
    %v791 = vrot.slane %v730, 1
    %v792 = vrot.slane %v731, 1
    %v793 = vsel %vm328, %v791, %v792
    %v794 = vrot.slane %v732, 1
    %v795 = vrot.slane %v733, 1
    %v796 = vsel %vm328, %v794, %v795
    %v797 = vrot.slane %v734, 1
    %v798 = vrot.slane %v735, 1
    %v799 = vsel %vm328, %v797, %v798
    %v800 = vrot.slane %v736, 1
    %v801 = vrot.slane %v737, 1
    %v802 = vsel %vm328, %v800, %v801
    %v829 = vadd.f32 %v248, %v766
    %v830 = vadd.f32 %v249, %v765
    %v831 = vadd.f32 %v250, %v769
    %v832 = vadd.f32 %v251, %v768
    %v833 = vadd.f32 %v252, %v772
    %v834 = vadd.f32 %v253, %v771
    %v835 = vadd.f32 %v254, %v775
    %v836 = vadd.f32 %v255, %v774
    %v837 = vadd.f32 %v256, %v778
    %v838 = vadd.f32 %v257, %v777
    %v839 = vadd.f32 %v258, %v781
    %v840 = vadd.f32 %v259, %v780
    %v841 = vadd.f32 %v260, %v784
    %v842 = vadd.f32 %v261, %v783
    %v843 = vadd.f32 %v262, %v787
    %v844 = vadd.f32 %v263, %v786
    %v845 = vadd.f32 %v264, %v790
    %v846 = vadd.f32 %v265, %v789
    %v847 = vadd.f32 %v266, %v793
    %v848 = vadd.f32 %v267, %v792
    %v849 = vadd.f32 %v268, %v796
    %v850 = vadd.f32 %v269, %v795
    %v851 = vadd.f32 %v270, %v799
    %v852 = vadd.f32 %v271, %v798
    %v853 = vadd.f32 %v272, %v802
    %v854 = vadd.f32 %v273, %v801
    %s855 = sld [smem:[#allocation2 + $0x2]]
    %v856 = vstv %s855
    %v857 = vmul.f32 %v26, %v856
    %v858 = vmul.f32 %v27, %v856
    %v859 = vmul.f32 %v28, %v856
    %v860 = vmul.f32 %v29, %v856
    %v861 = vmul.f32 %v30, %v856
    %v862 = vmul.f32 %v31, %v856
    %v863 = vmul.f32 %v32, %v856
    %v864 = vmul.f32 %v33, %v856
    %v865 = vmul.f32 %v34, %v856
    %v866 = vmul.f32 %v35, %v856
    %v867 = vmul.f32 %v36, %v856
    %v868 = vmul.f32 %v37, %v856
    %v869 = vmul.f32 %v38, %v856
    %v870 = vmul.f32 %v39, %v856
    %v871 = vmul.f32 %v40, %v856
    %v872 = vmul.f32 %v41, %v856
    %v873 = vmul.f32 %v42, %v856
    %v874 = vmul.f32 %v43, %v856
    %v875 = vmul.f32 %v44, %v856
    %v876 = vmul.f32 %v45, %v856
    %v877 = vmul.f32 %v46, %v856
    %v878 = vmul.f32 %v47, %v856
    %v879 = vmul.f32 %v48, %v856
    %v880 = vmul.f32 %v49, %v856
    %v881 = vmul.f32 %v50, %v856
    %v882 = vmul.f32 %v51, %v856
    %vm909 = vcmask 1045504
    %v910 = vrot.slane %v857, 2
    %v911 = vrot.slane %v858, 2
    %v912 = vsel %vm909, %v910, %v911
    %v913 = vrot.slane %v859, 2
    %v914 = vrot.slane %v860, 2
    %v915 = vsel %vm909, %v913, %v914
    %v916 = vrot.slane %v861, 2
    %v917 = vrot.slane %v862, 2
    %v918 = vsel %vm909, %v916, %v917
    %v919 = vrot.slane %v863, 2
    %v920 = vrot.slane %v864, 2
    %v921 = vsel %vm909, %v919, %v920
    %v922 = vrot.slane %v865, 2
    %v923 = vrot.slane %v866, 2
    %v924 = vsel %vm909, %v922, %v923
    %v925 = vrot.slane %v867, 2
    %v926 = vrot.slane %v868, 2
    %v927 = vsel %vm909, %v925, %v926
    %v928 = vrot.slane %v869, 2
    %v929 = vrot.slane %v870, 2
    %v930 = vsel %vm909, %v928, %v929
    %v931 = vrot.slane %v871, 2
    %v932 = vrot.slane %v872, 2
    %v933 = vsel %vm909, %v931, %v932
    %v934 = vrot.slane %v873, 2
    %v935 = vrot.slane %v874, 2
    %v936 = vsel %vm909, %v934, %v935
    %v937 = vrot.slane %v875, 2
    %v938 = vrot.slane %v876, 2
    %v939 = vsel %vm909, %v937, %v938
    %v940 = vrot.slane %v877, 2
    %v941 = vrot.slane %v878, 2
    %v942 = vsel %vm909, %v940, %v941
    %v943 = vrot.slane %v879, 2
    %v944 = vrot.slane %v880, 2
    %v945 = vsel %vm909, %v943, %v944
    %v946 = vrot.slane %v881, 2
    %v947 = vrot.slane %v882, 2
    %v948 = vsel %vm909, %v946, %v947
    %v975 = vadd.f32 %v394, %v912
    %v976 = vadd.f32 %v395, %v911
    %v977 = vadd.f32 %v396, %v915
    %v978 = vadd.f32 %v397, %v914
    %v979 = vadd.f32 %v398, %v918
    %v980 = vadd.f32 %v399, %v917
    %v981 = vadd.f32 %v400, %v921
    %v982 = vadd.f32 %v401, %v920
    %v983 = vadd.f32 %v402, %v924
    %v984 = vadd.f32 %v403, %v923
    %v985 = vadd.f32 %v404, %v927
    %v986 = vadd.f32 %v405, %v926
    %v987 = vadd.f32 %v406, %v930
    %v988 = vadd.f32 %v407, %v929
    %v989 = vadd.f32 %v408, %v933
    %v990 = vadd.f32 %v409, %v932
    %v991 = vadd.f32 %v410, %v936
    %v992 = vadd.f32 %v411, %v935
    %v993 = vadd.f32 %v412, %v939
    %v994 = vadd.f32 %v413, %v938
    %v995 = vadd.f32 %v414, %v942
    %v996 = vadd.f32 %v415, %v941
    %v997 = vadd.f32 %v416, %v945
    %v998 = vadd.f32 %v417, %v944
    %v999 = vadd.f32 %v418, %v948
    %v1000 = vadd.f32 %v419, %v947
    %s1001 = sld [smem:[#allocation2 + $0x12]]
    %v1002 = vstv %s1001
    %v1003 = vmul.f32 %v26, %v1002
    %v1004 = vmul.f32 %v27, %v1002
    %v1005 = vmul.f32 %v28, %v1002
    %v1006 = vmul.f32 %v29, %v1002
    %v1007 = vmul.f32 %v30, %v1002
    %v1008 = vmul.f32 %v31, %v1002
    %v1009 = vmul.f32 %v32, %v1002
    %v1010 = vmul.f32 %v33, %v1002
    %v1011 = vmul.f32 %v34, %v1002
    %v1012 = vmul.f32 %v35, %v1002
    %v1013 = vmul.f32 %v36, %v1002
    %v1014 = vmul.f32 %v37, %v1002
    %v1015 = vmul.f32 %v38, %v1002
    %v1016 = vmul.f32 %v39, %v1002
    %v1017 = vmul.f32 %v40, %v1002
    %v1018 = vmul.f32 %v41, %v1002
    %v1019 = vmul.f32 %v42, %v1002
    %v1020 = vmul.f32 %v43, %v1002
    %v1021 = vmul.f32 %v44, %v1002
    %v1022 = vmul.f32 %v45, %v1002
    %v1023 = vmul.f32 %v46, %v1002
    %v1024 = vmul.f32 %v47, %v1002
    %v1025 = vmul.f32 %v48, %v1002
    %v1026 = vmul.f32 %v49, %v1002
    %v1027 = vmul.f32 %v50, %v1002
    %v1028 = vmul.f32 %v51, %v1002
    %v1055 = vrot.slane %v1003, 2
    %v1056 = vrot.slane %v1004, 2
    %v1057 = vsel %vm909, %v1055, %v1056
    %v1058 = vrot.slane %v1005, 2
    %v1059 = vrot.slane %v1006, 2
    %v1060 = vsel %vm909, %v1058, %v1059
    %v1061 = vrot.slane %v1007, 2
    %v1062 = vrot.slane %v1008, 2
    %v1063 = vsel %vm909, %v1061, %v1062
    %v1064 = vrot.slane %v1009, 2
    %v1065 = vrot.slane %v1010, 2
    %v1066 = vsel %vm909, %v1064, %v1065
    %v1067 = vrot.slane %v1011, 2
    %v1068 = vrot.slane %v1012, 2
    %v1069 = vsel %vm909, %v1067, %v1068
    %v1070 = vrot.slane %v1013, 2
    %v1071 = vrot.slane %v1014, 2
    %v1072 = vsel %vm909, %v1070, %v1071
    %v1073 = vrot.slane %v1015, 2
    %v1074 = vrot.slane %v1016, 2
    %v1075 = vsel %vm909, %v1073, %v1074
    %v1076 = vrot.slane %v1017, 2
    %v1077 = vrot.slane %v1018, 2
    %v1078 = vsel %vm909, %v1076, %v1077
    %v1079 = vrot.slane %v1019, 2
    %v1080 = vrot.slane %v1020, 2
    %v1081 = vsel %vm909, %v1079, %v1080
    %v1082 = vrot.slane %v1021, 2
    %v1083 = vrot.slane %v1022, 2
    %v1084 = vsel %vm909, %v1082, %v1083
    %v1085 = vrot.slane %v1023, 2
    %v1086 = vrot.slane %v1024, 2
    %v1087 = vsel %vm909, %v1085, %v1086
    %v1088 = vrot.slane %v1025, 2
    %v1089 = vrot.slane %v1026, 2
    %v1090 = vsel %vm909, %v1088, %v1089
    %v1091 = vrot.slane %v1027, 2
    %v1092 = vrot.slane %v1028, 2
    %v1093 = vsel %vm909, %v1091, %v1092
    %v1120 = vadd.f32 %v539, %v1057
    %v1121 = vadd.f32 %v540, %v1056
    %v1122 = vadd.f32 %v541, %v1060
    %v1123 = vadd.f32 %v542, %v1059
    %v1124 = vadd.f32 %v543, %v1063
    %v1125 = vadd.f32 %v544, %v1062
    %v1126 = vadd.f32 %v545, %v1066
    %v1127 = vadd.f32 %v546, %v1065
    %v1128 = vadd.f32 %v547, %v1069
    %v1129 = vadd.f32 %v548, %v1068
    %v1130 = vadd.f32 %v549, %v1072
    %v1131 = vadd.f32 %v550, %v1071
    %v1132 = vadd.f32 %v551, %v1075
    %v1133 = vadd.f32 %v552, %v1074
    %v1134 = vadd.f32 %v553, %v1078
    %v1135 = vadd.f32 %v554, %v1077
    %v1136 = vadd.f32 %v555, %v1081
    %v1137 = vadd.f32 %v556, %v1080
    %v1138 = vadd.f32 %v557, %v1084
    %v1139 = vadd.f32 %v558, %v1083
    %v1140 = vadd.f32 %v559, %v1087
    %v1141 = vadd.f32 %v560, %v1086
    %v1142 = vadd.f32 %v561, %v1090
    %v1143 = vadd.f32 %v562, %v1089
    %v1144 = vadd.f32 %v563, %v1093
    %v1145 = vadd.f32 %v564, %v1092
    %s1146 = sld [smem:[#allocation2 + $0x22]]
    %v1147 = vstv %s1146
    %v1148 = vmul.f32 %v26, %v1147
    %v1149 = vmul.f32 %v27, %v1147
    %v1150 = vmul.f32 %v28, %v1147
    %v1151 = vmul.f32 %v29, %v1147
    %v1152 = vmul.f32 %v30, %v1147
    %v1153 = vmul.f32 %v31, %v1147
    %v1154 = vmul.f32 %v32, %v1147
    %v1155 = vmul.f32 %v33, %v1147
    %v1156 = vmul.f32 %v34, %v1147
    %v1157 = vmul.f32 %v35, %v1147
    %v1158 = vmul.f32 %v36, %v1147
    %v1159 = vmul.f32 %v37, %v1147
    %v1160 = vmul.f32 %v38, %v1147
    %v1161 = vmul.f32 %v39, %v1147
    %v1162 = vmul.f32 %v40, %v1147
    %v1163 = vmul.f32 %v41, %v1147
    %v1164 = vmul.f32 %v42, %v1147
    %v1165 = vmul.f32 %v43, %v1147
    %v1166 = vmul.f32 %v44, %v1147
    %v1167 = vmul.f32 %v45, %v1147
    %v1168 = vmul.f32 %v46, %v1147
    %v1169 = vmul.f32 %v47, %v1147
    %v1170 = vmul.f32 %v48, %v1147
    %v1171 = vmul.f32 %v49, %v1147
    %v1172 = vmul.f32 %v50, %v1147
    %v1173 = vmul.f32 %v51, %v1147
    %v1200 = vrot.slane %v1148, 2
    %v1201 = vrot.slane %v1149, 2
    %v1202 = vsel %vm909, %v1200, %v1201
    %v1203 = vrot.slane %v1150, 2
    %v1204 = vrot.slane %v1151, 2
    %v1205 = vsel %vm909, %v1203, %v1204
    %v1206 = vrot.slane %v1152, 2
    %v1207 = vrot.slane %v1153, 2
    %v1208 = vsel %vm909, %v1206, %v1207
    %v1209 = vrot.slane %v1154, 2
    %v1210 = vrot.slane %v1155, 2
    %v1211 = vsel %vm909, %v1209, %v1210
    %v1212 = vrot.slane %v1156, 2
    %v1213 = vrot.slane %v1157, 2
    %v1214 = vsel %vm909, %v1212, %v1213
    %v1215 = vrot.slane %v1158, 2
    %v1216 = vrot.slane %v1159, 2
    %v1217 = vsel %vm909, %v1215, %v1216
    %v1218 = vrot.slane %v1160, 2
    %v1219 = vrot.slane %v1161, 2
    %v1220 = vsel %vm909, %v1218, %v1219
    %v1221 = vrot.slane %v1162, 2
    %v1222 = vrot.slane %v1163, 2
    %v1223 = vsel %vm909, %v1221, %v1222
    %v1224 = vrot.slane %v1164, 2
    %v1225 = vrot.slane %v1165, 2
    %v1226 = vsel %vm909, %v1224, %v1225
    %v1227 = vrot.slane %v1166, 2
    %v1228 = vrot.slane %v1167, 2
    %v1229 = vsel %vm909, %v1227, %v1228
    %v1230 = vrot.slane %v1168, 2
    %v1231 = vrot.slane %v1169, 2
    %v1232 = vsel %vm909, %v1230, %v1231
    %v1233 = vrot.slane %v1170, 2
    %v1234 = vrot.slane %v1171, 2
    %v1235 = vsel %vm909, %v1233, %v1234
    %v1236 = vrot.slane %v1172, 2
    %v1237 = vrot.slane %v1173, 2
    %v1238 = vsel %vm909, %v1236, %v1237
    %v1265 = vadd.f32 %v684, %v1202
    %v1266 = vadd.f32 %v685, %v1201
    %v1267 = vadd.f32 %v686, %v1205
    %v1268 = vadd.f32 %v687, %v1204
    %v1269 = vadd.f32 %v688, %v1208
    %v1270 = vadd.f32 %v689, %v1207
    %v1271 = vadd.f32 %v690, %v1211
    %v1272 = vadd.f32 %v691, %v1210
    %v1273 = vadd.f32 %v692, %v1214
    %v1274 = vadd.f32 %v693, %v1213
    %v1275 = vadd.f32 %v694, %v1217
    %v1276 = vadd.f32 %v695, %v1216
    %v1277 = vadd.f32 %v696, %v1220
    %v1278 = vadd.f32 %v697, %v1219
    %v1279 = vadd.f32 %v698, %v1223
    %v1280 = vadd.f32 %v699, %v1222
    %v1281 = vadd.f32 %v700, %v1226
    %v1282 = vadd.f32 %v701, %v1225
    %v1283 = vadd.f32 %v702, %v1229
    %v1284 = vadd.f32 %v703, %v1228
    %v1285 = vadd.f32 %v704, %v1232
    %v1286 = vadd.f32 %v705, %v1231
    %v1287 = vadd.f32 %v706, %v1235
    %v1288 = vadd.f32 %v707, %v1234
    %v1289 = vadd.f32 %v708, %v1238
    %v1290 = vadd.f32 %v709, %v1237
    %s1291 = sld [smem:[#allocation2 + $0x32]]
    %v1292 = vstv %s1291
    %v1293 = vmul.f32 %v26, %v1292
    %v1294 = vmul.f32 %v27, %v1292
    %v1295 = vmul.f32 %v28, %v1292
    %v1296 = vmul.f32 %v29, %v1292
    %v1297 = vmul.f32 %v30, %v1292
    %v1298 = vmul.f32 %v31, %v1292
    %v1299 = vmul.f32 %v32, %v1292
    %v1300 = vmul.f32 %v33, %v1292
    %v1301 = vmul.f32 %v34, %v1292
    %v1302 = vmul.f32 %v35, %v1292
    %v1303 = vmul.f32 %v36, %v1292
    %v1304 = vmul.f32 %v37, %v1292
    %v1305 = vmul.f32 %v38, %v1292
    %v1306 = vmul.f32 %v39, %v1292
    %v1307 = vmul.f32 %v40, %v1292
    %v1308 = vmul.f32 %v41, %v1292
    %v1309 = vmul.f32 %v42, %v1292
    %v1310 = vmul.f32 %v43, %v1292
    %v1311 = vmul.f32 %v44, %v1292
    %v1312 = vmul.f32 %v45, %v1292
    %v1313 = vmul.f32 %v46, %v1292
    %v1314 = vmul.f32 %v47, %v1292
    %v1315 = vmul.f32 %v48, %v1292
    %v1316 = vmul.f32 %v49, %v1292
    %v1317 = vmul.f32 %v50, %v1292
    %v1318 = vmul.f32 %v51, %v1292
    %v1345 = vrot.slane %v1293, 2
    %v1346 = vrot.slane %v1294, 2
    %v1347 = vsel %vm909, %v1345, %v1346
    %v1348 = vrot.slane %v1295, 2
    %v1349 = vrot.slane %v1296, 2
    %v1350 = vsel %vm909, %v1348, %v1349
    %v1351 = vrot.slane %v1297, 2
    %v1352 = vrot.slane %v1298, 2
    %v1353 = vsel %vm909, %v1351, %v1352
    %v1354 = vrot.slane %v1299, 2
    %v1355 = vrot.slane %v1300, 2
    %v1356 = vsel %vm909, %v1354, %v1355
    %v1357 = vrot.slane %v1301, 2
    %v1358 = vrot.slane %v1302, 2
    %v1359 = vsel %vm909, %v1357, %v1358
    %v1360 = vrot.slane %v1303, 2
    %v1361 = vrot.slane %v1304, 2
    %v1362 = vsel %vm909, %v1360, %v1361
    %v1363 = vrot.slane %v1305, 2
    %v1364 = vrot.slane %v1306, 2
    %v1365 = vsel %vm909, %v1363, %v1364
    %v1366 = vrot.slane %v1307, 2
    %v1367 = vrot.slane %v1308, 2
    %v1368 = vsel %vm909, %v1366, %v1367
    %v1369 = vrot.slane %v1309, 2
    %v1370 = vrot.slane %v1310, 2
    %v1371 = vsel %vm909, %v1369, %v1370
    %v1372 = vrot.slane %v1311, 2
    %v1373 = vrot.slane %v1312, 2
    %v1374 = vsel %vm909, %v1372, %v1373
    %v1375 = vrot.slane %v1313, 2
    %v1376 = vrot.slane %v1314, 2
    %v1377 = vsel %vm909, %v1375, %v1376
    %v1378 = vrot.slane %v1315, 2
    %v1379 = vrot.slane %v1316, 2
    %v1380 = vsel %vm909, %v1378, %v1379
    %v1381 = vrot.slane %v1317, 2
    %v1382 = vrot.slane %v1318, 2
    %v1383 = vsel %vm909, %v1381, %v1382
    %v1410 = vadd.f32 %v829, %v1347
    %v1411 = vadd.f32 %v830, %v1346
    %v1412 = vadd.f32 %v831, %v1350
    %v1413 = vadd.f32 %v832, %v1349
    %v1414 = vadd.f32 %v833, %v1353
    %v1415 = vadd.f32 %v834, %v1352
    %v1416 = vadd.f32 %v835, %v1356
    %v1417 = vadd.f32 %v836, %v1355
    %v1418 = vadd.f32 %v837, %v1359
    %v1419 = vadd.f32 %v838, %v1358
    %v1420 = vadd.f32 %v839, %v1362
    %v1421 = vadd.f32 %v840, %v1361
    %v1422 = vadd.f32 %v841, %v1365
    %v1423 = vadd.f32 %v842, %v1364
    %v1424 = vadd.f32 %v843, %v1368
    %v1425 = vadd.f32 %v844, %v1367
    %v1426 = vadd.f32 %v845, %v1371
    %v1427 = vadd.f32 %v846, %v1370
    %v1428 = vadd.f32 %v847, %v1374
    %v1429 = vadd.f32 %v848, %v1373
    %v1430 = vadd.f32 %v849, %v1377
    %v1431 = vadd.f32 %v850, %v1376
    %v1432 = vadd.f32 %v851, %v1380
    %v1433 = vadd.f32 %v852, %v1379
    %v1434 = vadd.f32 %v853, %v1383
    %v1435 = vadd.f32 %v854, %v1382
    %s1436 = sld [smem:[#allocation2 + $0x3]]
    %v1437 = vstv %s1436
    %v1438 = vmul.f32 %v26, %v1437
    %v1439 = vmul.f32 %v27, %v1437
    %v1440 = vmul.f32 %v28, %v1437
    %v1441 = vmul.f32 %v29, %v1437
    %v1442 = vmul.f32 %v30, %v1437
    %v1443 = vmul.f32 %v31, %v1437
    %v1444 = vmul.f32 %v32, %v1437
    %v1445 = vmul.f32 %v33, %v1437
    %v1446 = vmul.f32 %v34, %v1437
    %v1447 = vmul.f32 %v35, %v1437
    %v1448 = vmul.f32 %v36, %v1437
    %v1449 = vmul.f32 %v37, %v1437
    %v1450 = vmul.f32 %v38, %v1437
    %v1451 = vmul.f32 %v39, %v1437
    %v1452 = vmul.f32 %v40, %v1437
    %v1453 = vmul.f32 %v41, %v1437
    %v1454 = vmul.f32 %v42, %v1437
    %v1455 = vmul.f32 %v43, %v1437
    %v1456 = vmul.f32 %v44, %v1437
    %v1457 = vmul.f32 %v45, %v1437
    %v1458 = vmul.f32 %v46, %v1437
    %v1459 = vmul.f32 %v47, %v1437
    %v1460 = vmul.f32 %v48, %v1437
    %v1461 = vmul.f32 %v49, %v1437
    %v1462 = vmul.f32 %v50, %v1437
    %v1463 = vmul.f32 %v51, %v1437
    %vm1490 = vcmask 1044480
    %v1491 = vrot.slane %v1438, 3
    %v1492 = vrot.slane %v1439, 3
    %v1493 = vsel %vm1490, %v1491, %v1492
    %v1494 = vrot.slane %v1440, 3
    %v1495 = vrot.slane %v1441, 3
    %v1496 = vsel %vm1490, %v1494, %v1495
    %v1497 = vrot.slane %v1442, 3
    %v1498 = vrot.slane %v1443, 3
    %v1499 = vsel %vm1490, %v1497, %v1498
    %v1500 = vrot.slane %v1444, 3
    %v1501 = vrot.slane %v1445, 3
    %v1502 = vsel %vm1490, %v1500, %v1501
    %v1503 = vrot.slane %v1446, 3
    %v1504 = vrot.slane %v1447, 3
    %v1505 = vsel %vm1490, %v1503, %v1504
    %v1506 = vrot.slane %v1448, 3
    %v1507 = vrot.slane %v1449, 3
    %v1508 = vsel %vm1490, %v1506, %v1507
    %v1509 = vrot.slane %v1450, 3
    %v1510 = vrot.slane %v1451, 3
    %v1511 = vsel %vm1490, %v1509, %v1510
    %v1512 = vrot.slane %v1452, 3
    %v1513 = vrot.slane %v1453, 3
    %v1514 = vsel %vm1490, %v1512, %v1513
    %v1515 = vrot.slane %v1454, 3
    %v1516 = vrot.slane %v1455, 3
    %v1517 = vsel %vm1490, %v1515, %v1516
    %v1518 = vrot.slane %v1456, 3
    %v1519 = vrot.slane %v1457, 3
    %v1520 = vsel %vm1490, %v1518, %v1519
    %v1521 = vrot.slane %v1458, 3
    %v1522 = vrot.slane %v1459, 3
    %v1523 = vsel %vm1490, %v1521, %v1522
    %v1524 = vrot.slane %v1460, 3
    %v1525 = vrot.slane %v1461, 3
    %v1526 = vsel %vm1490, %v1524, %v1525
    %v1527 = vrot.slane %v1462, 3
    %v1528 = vrot.slane %v1463, 3
    %v1529 = vsel %vm1490, %v1527, %v1528
    %v1556 = vadd.f32 %v975, %v1493
    %v1557 = vadd.f32 %v976, %v1492
    %v1558 = vadd.f32 %v977, %v1496
    %v1559 = vadd.f32 %v978, %v1495
    %v1560 = vadd.f32 %v979, %v1499
    %v1561 = vadd.f32 %v980, %v1498
    %v1562 = vadd.f32 %v981, %v1502
    %v1563 = vadd.f32 %v982, %v1501
    %v1564 = vadd.f32 %v983, %v1505
    %v1565 = vadd.f32 %v984, %v1504
    %v1566 = vadd.f32 %v985, %v1508
    %v1567 = vadd.f32 %v986, %v1507
    %v1568 = vadd.f32 %v987, %v1511
    %v1569 = vadd.f32 %v988, %v1510
    %v1570 = vadd.f32 %v989, %v1514
    %v1571 = vadd.f32 %v990, %v1513
    %v1572 = vadd.f32 %v991, %v1517
    %v1573 = vadd.f32 %v992, %v1516
    %v1574 = vadd.f32 %v993, %v1520
    %v1575 = vadd.f32 %v994, %v1519
    %v1576 = vadd.f32 %v995, %v1523
    %v1577 = vadd.f32 %v996, %v1522
    %v1578 = vadd.f32 %v997, %v1526
    %v1579 = vadd.f32 %v998, %v1525
    %v1580 = vadd.f32 %v999, %v1529
    %v1581 = vadd.f32 %v1000, %v1528
    %s1582 = sld [smem:[#allocation2 + $0x13]]
    %v1583 = vstv %s1582
    %v1584 = vmul.f32 %v26, %v1583
    %v1585 = vmul.f32 %v27, %v1583
    %v1586 = vmul.f32 %v28, %v1583
    %v1587 = vmul.f32 %v29, %v1583
    %v1588 = vmul.f32 %v30, %v1583
    %v1589 = vmul.f32 %v31, %v1583
    %v1590 = vmul.f32 %v32, %v1583
    %v1591 = vmul.f32 %v33, %v1583
    %v1592 = vmul.f32 %v34, %v1583
    %v1593 = vmul.f32 %v35, %v1583
    %v1594 = vmul.f32 %v36, %v1583
    %v1595 = vmul.f32 %v37, %v1583
    %v1596 = vmul.f32 %v38, %v1583
    %v1597 = vmul.f32 %v39, %v1583
    %v1598 = vmul.f32 %v40, %v1583
    %v1599 = vmul.f32 %v41, %v1583
    %v1600 = vmul.f32 %v42, %v1583
    %v1601 = vmul.f32 %v43, %v1583
    %v1602 = vmul.f32 %v44, %v1583
    %v1603 = vmul.f32 %v45, %v1583
    %v1604 = vmul.f32 %v46, %v1583
    %v1605 = vmul.f32 %v47, %v1583
    %v1606 = vmul.f32 %v48, %v1583
    %v1607 = vmul.f32 %v49, %v1583
    %v1608 = vmul.f32 %v50, %v1583
    %v1609 = vmul.f32 %v51, %v1583
    %v1636 = vrot.slane %v1584, 3
    %v1637 = vrot.slane %v1585, 3
    %v1638 = vsel %vm1490, %v1636, %v1637
    %v1639 = vrot.slane %v1586, 3
    %v1640 = vrot.slane %v1587, 3
    %v1641 = vsel %vm1490, %v1639, %v1640
    %v1642 = vrot.slane %v1588, 3
    %v1643 = vrot.slane %v1589, 3
    %v1644 = vsel %vm1490, %v1642, %v1643
    %v1645 = vrot.slane %v1590, 3
    %v1646 = vrot.slane %v1591, 3
    %v1647 = vsel %vm1490, %v1645, %v1646
    %v1648 = vrot.slane %v1592, 3
    %v1649 = vrot.slane %v1593, 3
    %v1650 = vsel %vm1490, %v1648, %v1649
    %v1651 = vrot.slane %v1594, 3
    %v1652 = vrot.slane %v1595, 3
    %v1653 = vsel %vm1490, %v1651, %v1652
    %v1654 = vrot.slane %v1596, 3
    %v1655 = vrot.slane %v1597, 3
    %v1656 = vsel %vm1490, %v1654, %v1655
    %v1657 = vrot.slane %v1598, 3
    %v1658 = vrot.slane %v1599, 3
    %v1659 = vsel %vm1490, %v1657, %v1658
    %v1660 = vrot.slane %v1600, 3
    %v1661 = vrot.slane %v1601, 3
    %v1662 = vsel %vm1490, %v1660, %v1661
    %v1663 = vrot.slane %v1602, 3
    %v1664 = vrot.slane %v1603, 3
    %v1665 = vsel %vm1490, %v1663, %v1664
    %v1666 = vrot.slane %v1604, 3
    %v1667 = vrot.slane %v1605, 3
    %v1668 = vsel %vm1490, %v1666, %v1667
    %v1669 = vrot.slane %v1606, 3
    %v1670 = vrot.slane %v1607, 3
    %v1671 = vsel %vm1490, %v1669, %v1670
    %v1672 = vrot.slane %v1608, 3
    %v1673 = vrot.slane %v1609, 3
    %v1674 = vsel %vm1490, %v1672, %v1673
    %v1701 = vadd.f32 %v1120, %v1638
    %v1702 = vadd.f32 %v1121, %v1637
    %v1703 = vadd.f32 %v1122, %v1641
    %v1704 = vadd.f32 %v1123, %v1640
    %v1705 = vadd.f32 %v1124, %v1644
    %v1706 = vadd.f32 %v1125, %v1643
    %v1707 = vadd.f32 %v1126, %v1647
    %v1708 = vadd.f32 %v1127, %v1646
    %v1709 = vadd.f32 %v1128, %v1650
    %v1710 = vadd.f32 %v1129, %v1649
    %v1711 = vadd.f32 %v1130, %v1653
    %v1712 = vadd.f32 %v1131, %v1652
    %v1713 = vadd.f32 %v1132, %v1656
    %v1714 = vadd.f32 %v1133, %v1655
    %v1715 = vadd.f32 %v1134, %v1659
    %v1716 = vadd.f32 %v1135, %v1658
    %v1717 = vadd.f32 %v1136, %v1662
    %v1718 = vadd.f32 %v1137, %v1661
    %v1719 = vadd.f32 %v1138, %v1665
    %v1720 = vadd.f32 %v1139, %v1664
    %v1721 = vadd.f32 %v1140, %v1668
    %v1722 = vadd.f32 %v1141, %v1667
    %v1723 = vadd.f32 %v1142, %v1671
    %v1724 = vadd.f32 %v1143, %v1670
    %v1725 = vadd.f32 %v1144, %v1674
    %v1726 = vadd.f32 %v1145, %v1673
    %s1727 = sld [smem:[#allocation2 + $0x23]]
    %v1728 = vstv %s1727
    %v1729 = vmul.f32 %v26, %v1728
    %v1730 = vmul.f32 %v27, %v1728
    %v1731 = vmul.f32 %v28, %v1728
    %v1732 = vmul.f32 %v29, %v1728
    %v1733 = vmul.f32 %v30, %v1728
    %v1734 = vmul.f32 %v31, %v1728
    %v1735 = vmul.f32 %v32, %v1728
    %v1736 = vmul.f32 %v33, %v1728
    %v1737 = vmul.f32 %v34, %v1728
    %v1738 = vmul.f32 %v35, %v1728
    %v1739 = vmul.f32 %v36, %v1728
    %v1740 = vmul.f32 %v37, %v1728
    %v1741 = vmul.f32 %v38, %v1728
    %v1742 = vmul.f32 %v39, %v1728
    %v1743 = vmul.f32 %v40, %v1728
    %v1744 = vmul.f32 %v41, %v1728
    %v1745 = vmul.f32 %v42, %v1728
    %v1746 = vmul.f32 %v43, %v1728
    %v1747 = vmul.f32 %v44, %v1728
    %v1748 = vmul.f32 %v45, %v1728
    %v1749 = vmul.f32 %v46, %v1728
    %v1750 = vmul.f32 %v47, %v1728
    %v1751 = vmul.f32 %v48, %v1728
    %v1752 = vmul.f32 %v49, %v1728
    %v1753 = vmul.f32 %v50, %v1728
    %v1754 = vmul.f32 %v51, %v1728
    %v1781 = vrot.slane %v1729, 3
    %v1782 = vrot.slane %v1730, 3
    %v1783 = vsel %vm1490, %v1781, %v1782
    %v1784 = vrot.slane %v1731, 3
    %v1785 = vrot.slane %v1732, 3
    %v1786 = vsel %vm1490, %v1784, %v1785
    %v1787 = vrot.slane %v1733, 3
    %v1788 = vrot.slane %v1734, 3
    %v1789 = vsel %vm1490, %v1787, %v1788
    %v1790 = vrot.slane %v1735, 3
    %v1791 = vrot.slane %v1736, 3
    %v1792 = vsel %vm1490, %v1790, %v1791
    %v1793 = vrot.slane %v1737, 3
    %v1794 = vrot.slane %v1738, 3
    %v1795 = vsel %vm1490, %v1793, %v1794
    %v1796 = vrot.slane %v1739, 3
    %v1797 = vrot.slane %v1740, 3
    %v1798 = vsel %vm1490, %v1796, %v1797
    %v1799 = vrot.slane %v1741, 3
    %v1800 = vrot.slane %v1742, 3
    %v1801 = vsel %vm1490, %v1799, %v1800
    %v1802 = vrot.slane %v1743, 3
    %v1803 = vrot.slane %v1744, 3
    %v1804 = vsel %vm1490, %v1802, %v1803
    %v1805 = vrot.slane %v1745, 3
    %v1806 = vrot.slane %v1746, 3
    %v1807 = vsel %vm1490, %v1805, %v1806
    %v1808 = vrot.slane %v1747, 3
    %v1809 = vrot.slane %v1748, 3
    %v1810 = vsel %vm1490, %v1808, %v1809
    %v1811 = vrot.slane %v1749, 3
    %v1812 = vrot.slane %v1750, 3
    %v1813 = vsel %vm1490, %v1811, %v1812
    %v1814 = vrot.slane %v1751, 3
    %v1815 = vrot.slane %v1752, 3
    %v1816 = vsel %vm1490, %v1814, %v1815
    %v1817 = vrot.slane %v1753, 3
    %v1818 = vrot.slane %v1754, 3
    %v1819 = vsel %vm1490, %v1817, %v1818
    %v1846 = vadd.f32 %v1265, %v1783
    %v1847 = vadd.f32 %v1266, %v1782
    %v1848 = vadd.f32 %v1267, %v1786
    %v1849 = vadd.f32 %v1268, %v1785
    %v1850 = vadd.f32 %v1269, %v1789
    %v1851 = vadd.f32 %v1270, %v1788
    %v1852 = vadd.f32 %v1271, %v1792
    %v1853 = vadd.f32 %v1272, %v1791
    %v1854 = vadd.f32 %v1273, %v1795
    %v1855 = vadd.f32 %v1274, %v1794
    %v1856 = vadd.f32 %v1275, %v1798
    %v1857 = vadd.f32 %v1276, %v1797
    %v1858 = vadd.f32 %v1277, %v1801
    %v1859 = vadd.f32 %v1278, %v1800
    %v1860 = vadd.f32 %v1279, %v1804
    %v1861 = vadd.f32 %v1280, %v1803
    %v1862 = vadd.f32 %v1281, %v1807
    %v1863 = vadd.f32 %v1282, %v1806
    %v1864 = vadd.f32 %v1283, %v1810
    %v1865 = vadd.f32 %v1284, %v1809
    %v1866 = vadd.f32 %v1285, %v1813
    %v1867 = vadd.f32 %v1286, %v1812
    %v1868 = vadd.f32 %v1287, %v1816
    %v1869 = vadd.f32 %v1288, %v1815
    %v1870 = vadd.f32 %v1289, %v1819
    %v1871 = vadd.f32 %v1290, %v1818
    %s1872 = sld [smem:[#allocation2 + $0x33]]
    %v1873 = vstv %s1872
    %v1874 = vmul.f32 %v26, %v1873
    %v1875 = vmul.f32 %v27, %v1873
    %v1876 = vmul.f32 %v28, %v1873
    %v1877 = vmul.f32 %v29, %v1873
    %v1878 = vmul.f32 %v30, %v1873
    %v1879 = vmul.f32 %v31, %v1873
    %v1880 = vmul.f32 %v32, %v1873
    %v1881 = vmul.f32 %v33, %v1873
    %v1882 = vmul.f32 %v34, %v1873
    %v1883 = vmul.f32 %v35, %v1873
    %v1884 = vmul.f32 %v36, %v1873
    %v1885 = vmul.f32 %v37, %v1873
    %v1886 = vmul.f32 %v38, %v1873
    %v1887 = vmul.f32 %v39, %v1873
    %v1888 = vmul.f32 %v40, %v1873
    %v1889 = vmul.f32 %v41, %v1873
    %v1890 = vmul.f32 %v42, %v1873
    %v1891 = vmul.f32 %v43, %v1873
    %v1892 = vmul.f32 %v44, %v1873
    %v1893 = vmul.f32 %v45, %v1873
    %v1894 = vmul.f32 %v46, %v1873
    %v1895 = vmul.f32 %v47, %v1873
    %v1896 = vmul.f32 %v48, %v1873
    %v1897 = vmul.f32 %v49, %v1873
    %v1898 = vmul.f32 %v50, %v1873
    %v1899 = vmul.f32 %v51, %v1873
    %v1926 = vrot.slane %v1874, 3
    %v1927 = vrot.slane %v1875, 3
    %v1928 = vsel %vm1490, %v1926, %v1927
    %v1929 = vrot.slane %v1876, 3
    %v1930 = vrot.slane %v1877, 3
    %v1931 = vsel %vm1490, %v1929, %v1930
    %v1932 = vrot.slane %v1878, 3
    %v1933 = vrot.slane %v1879, 3
    %v1934 = vsel %vm1490, %v1932, %v1933
    %v1935 = vrot.slane %v1880, 3
    %v1936 = vrot.slane %v1881, 3
    %v1937 = vsel %vm1490, %v1935, %v1936
    %v1938 = vrot.slane %v1882, 3
    %v1939 = vrot.slane %v1883, 3
    %v1940 = vsel %vm1490, %v1938, %v1939
    %v1941 = vrot.slane %v1884, 3
    %v1942 = vrot.slane %v1885, 3
    %v1943 = vsel %vm1490, %v1941, %v1942
    %v1944 = vrot.slane %v1886, 3
    %v1945 = vrot.slane %v1887, 3
    %v1946 = vsel %vm1490, %v1944, %v1945
    %v1947 = vrot.slane %v1888, 3
    %v1948 = vrot.slane %v1889, 3
    %v1949 = vsel %vm1490, %v1947, %v1948
    %v1950 = vrot.slane %v1890, 3
    %v1951 = vrot.slane %v1891, 3
    %v1952 = vsel %vm1490, %v1950, %v1951
    %v1953 = vrot.slane %v1892, 3
    %v1954 = vrot.slane %v1893, 3
    %v1955 = vsel %vm1490, %v1953, %v1954
    %v1956 = vrot.slane %v1894, 3
    %v1957 = vrot.slane %v1895, 3
    %v1958 = vsel %vm1490, %v1956, %v1957
    %v1959 = vrot.slane %v1896, 3
    %v1960 = vrot.slane %v1897, 3
    %v1961 = vsel %vm1490, %v1959, %v1960
    %v1962 = vrot.slane %v1898, 3
    %v1963 = vrot.slane %v1899, 3
    %v1964 = vsel %vm1490, %v1962, %v1963
    %v1991 = vadd.f32 %v1410, %v1928
    %v1992 = vadd.f32 %v1411, %v1927
    %v1993 = vadd.f32 %v1412, %v1931
    %v1994 = vadd.f32 %v1413, %v1930
    %v1995 = vadd.f32 %v1414, %v1934
    %v1996 = vadd.f32 %v1415, %v1933
    %v1997 = vadd.f32 %v1416, %v1937
    %v1998 = vadd.f32 %v1417, %v1936
    %v1999 = vadd.f32 %v1418, %v1940
    %v2000 = vadd.f32 %v1419, %v1939
    %v2001 = vadd.f32 %v1420, %v1943
    %v2002 = vadd.f32 %v1421, %v1942
    %v2003 = vadd.f32 %v1422, %v1946
    %v2004 = vadd.f32 %v1423, %v1945
    %v2005 = vadd.f32 %v1424, %v1949
    %v2006 = vadd.f32 %v1425, %v1948
    %v2007 = vadd.f32 %v1426, %v1952
    %v2008 = vadd.f32 %v1427, %v1951
    %v2009 = vadd.f32 %v1428, %v1955
    %v2010 = vadd.f32 %v1429, %v1954
    %v2011 = vadd.f32 %v1430, %v1958
    %v2012 = vadd.f32 %v1431, %v1957
    %v2013 = vadd.f32 %v1432, %v1961
    %v2014 = vadd.f32 %v1433, %v1960
    %v2015 = vadd.f32 %v1434, %v1964
    %v2016 = vadd.f32 %v1435, %v1963
    %s2017 = sld [smem:[#allocation2 + $0x4]]
    %v2018 = vstv %s2017
    %v2019 = vmul.f32 %v28, %v2018
    %v2020 = vmul.f32 %v29, %v2018
    %v2021 = vmul.f32 %v30, %v2018
    %v2022 = vmul.f32 %v31, %v2018
    %v2023 = vmul.f32 %v32, %v2018
    %v2024 = vmul.f32 %v33, %v2018
    %v2025 = vmul.f32 %v34, %v2018
    %v2026 = vmul.f32 %v35, %v2018
    %v2027 = vmul.f32 %v36, %v2018
    %v2028 = vmul.f32 %v37, %v2018
    %v2029 = vmul.f32 %v38, %v2018
    %v2030 = vmul.f32 %v39, %v2018
    %v2031 = vmul.f32 %v40, %v2018
    %v2032 = vmul.f32 %v41, %v2018
    %v2033 = vmul.f32 %v42, %v2018
    %v2034 = vmul.f32 %v43, %v2018
    %v2035 = vmul.f32 %v44, %v2018
    %v2036 = vmul.f32 %v45, %v2018
    %v2037 = vmul.f32 %v46, %v2018
    %v2038 = vmul.f32 %v47, %v2018
    %v2039 = vmul.f32 %v48, %v2018
    %v2040 = vmul.f32 %v49, %v2018
    %v2041 = vmul.f32 %v50, %v2018
    %v2042 = vmul.f32 %v51, %v2018
    %v2043 = vmul.f32 %v52, %v2018
    %v2044 = vmul.f32 %v53, %v2018
    %v2045 = vadd.f32 %v1556, %v2019
    %v2046 = vadd.f32 %v1557, %v2020
    %v2047 = vadd.f32 %v1558, %v2021
    %v2048 = vadd.f32 %v1559, %v2022
    %v2049 = vadd.f32 %v1560, %v2023
    %v2050 = vadd.f32 %v1561, %v2024
    %v2051 = vadd.f32 %v1562, %v2025
    %v2052 = vadd.f32 %v1563, %v2026
    %v2053 = vadd.f32 %v1564, %v2027
    %v2054 = vadd.f32 %v1565, %v2028
    %v2055 = vadd.f32 %v1566, %v2029
    %v2056 = vadd.f32 %v1567, %v2030
    %v2057 = vadd.f32 %v1568, %v2031
    %v2058 = vadd.f32 %v1569, %v2032
    %v2059 = vadd.f32 %v1570, %v2033
    %v2060 = vadd.f32 %v1571, %v2034
    %v2061 = vadd.f32 %v1572, %v2035
    %v2062 = vadd.f32 %v1573, %v2036
    %v2063 = vadd.f32 %v1574, %v2037
    %v2064 = vadd.f32 %v1575, %v2038
    %v2065 = vadd.f32 %v1576, %v2039
    %v2066 = vadd.f32 %v1577, %v2040
    %v2067 = vadd.f32 %v1578, %v2041
    %v2068 = vadd.f32 %v1579, %v2042
    %v2069 = vadd.f32 %v1580, %v2043
    %v2070 = vadd.f32 %v1581, %v2044
    %s2071 = sld [smem:[#allocation2 + $0x14]]
    %v2072 = vstv %s2071
    %v2073 = vmul.f32 %v28, %v2072
    %v2074 = vmul.f32 %v29, %v2072
    %v2075 = vmul.f32 %v30, %v2072
    %v2076 = vmul.f32 %v31, %v2072
    %v2077 = vmul.f32 %v32, %v2072
    %v2078 = vmul.f32 %v33, %v2072
    %v2079 = vmul.f32 %v34, %v2072
    %v2080 = vmul.f32 %v35, %v2072
    %v2081 = vmul.f32 %v36, %v2072
    %v2082 = vmul.f32 %v37, %v2072
    %v2083 = vmul.f32 %v38, %v2072
    %v2084 = vmul.f32 %v39, %v2072
    %v2085 = vmul.f32 %v40, %v2072
    %v2086 = vmul.f32 %v41, %v2072
    %v2087 = vmul.f32 %v42, %v2072
    %v2088 = vmul.f32 %v43, %v2072
    %v2089 = vmul.f32 %v44, %v2072
    %v2090 = vmul.f32 %v45, %v2072
    %v2091 = vmul.f32 %v46, %v2072
    %v2092 = vmul.f32 %v47, %v2072
    %v2093 = vmul.f32 %v48, %v2072
    %v2094 = vmul.f32 %v49, %v2072
    %v2095 = vmul.f32 %v50, %v2072
    %v2096 = vmul.f32 %v51, %v2072
    %v2097 = vmul.f32 %v52, %v2072
    %v2098 = vmul.f32 %v53, %v2072
    %v2099 = vadd.f32 %v1701, %v2073
    %v2100 = vadd.f32 %v1702, %v2074
    %v2101 = vadd.f32 %v1703, %v2075
    %v2102 = vadd.f32 %v1704, %v2076
    %v2103 = vadd.f32 %v1705, %v2077
    %v2104 = vadd.f32 %v1706, %v2078
    %v2105 = vadd.f32 %v1707, %v2079
    %v2106 = vadd.f32 %v1708, %v2080
    %v2107 = vadd.f32 %v1709, %v2081
    %v2108 = vadd.f32 %v1710, %v2082
    %v2109 = vadd.f32 %v1711, %v2083
    %v2110 = vadd.f32 %v1712, %v2084
    %v2111 = vadd.f32 %v1713, %v2085
    %v2112 = vadd.f32 %v1714, %v2086
    %v2113 = vadd.f32 %v1715, %v2087
    %v2114 = vadd.f32 %v1716, %v2088
    %v2115 = vadd.f32 %v1717, %v2089
    %v2116 = vadd.f32 %v1718, %v2090
    %v2117 = vadd.f32 %v1719, %v2091
    %v2118 = vadd.f32 %v1720, %v2092
    %v2119 = vadd.f32 %v1721, %v2093
    %v2120 = vadd.f32 %v1722, %v2094
    %v2121 = vadd.f32 %v1723, %v2095
    %v2122 = vadd.f32 %v1724, %v2096
    %v2123 = vadd.f32 %v1725, %v2097
    %v2124 = vadd.f32 %v1726, %v2098
    %s2125 = sld [smem:[#allocation2 + $0x24]]
    %v2126 = vstv %s2125
    %v2127 = vmul.f32 %v28, %v2126
    %v2128 = vmul.f32 %v29, %v2126
    %v2129 = vmul.f32 %v30, %v2126
    %v2130 = vmul.f32 %v31, %v2126
    %v2131 = vmul.f32 %v32, %v2126
    %v2132 = vmul.f32 %v33, %v2126
    %v2133 = vmul.f32 %v34, %v2126
    %v2134 = vmul.f32 %v35, %v2126
    %v2135 = vmul.f32 %v36, %v2126
    %v2136 = vmul.f32 %v37, %v2126
    %v2137 = vmul.f32 %v38, %v2126
    %v2138 = vmul.f32 %v39, %v2126
    %v2139 = vmul.f32 %v40, %v2126
    %v2140 = vmul.f32 %v41, %v2126
    %v2141 = vmul.f32 %v42, %v2126
    %v2142 = vmul.f32 %v43, %v2126
    %v2143 = vmul.f32 %v44, %v2126
    %v2144 = vmul.f32 %v45, %v2126
    %v2145 = vmul.f32 %v46, %v2126
    %v2146 = vmul.f32 %v47, %v2126
    %v2147 = vmul.f32 %v48, %v2126
    %v2148 = vmul.f32 %v49, %v2126
    %v2149 = vmul.f32 %v50, %v2126
    %v2150 = vmul.f32 %v51, %v2126
    %v2151 = vmul.f32 %v52, %v2126
    %v2152 = vmul.f32 %v53, %v2126
    %v2153 = vadd.f32 %v1846, %v2127
    %v2154 = vadd.f32 %v1847, %v2128
    %v2155 = vadd.f32 %v1848, %v2129
    %v2156 = vadd.f32 %v1849, %v2130
    %v2157 = vadd.f32 %v1850, %v2131
    %v2158 = vadd.f32 %v1851, %v2132
    %v2159 = vadd.f32 %v1852, %v2133
    %v2160 = vadd.f32 %v1853, %v2134
    %v2161 = vadd.f32 %v1854, %v2135
    %v2162 = vadd.f32 %v1855, %v2136
    %v2163 = vadd.f32 %v1856, %v2137
    %v2164 = vadd.f32 %v1857, %v2138
    %v2165 = vadd.f32 %v1858, %v2139
    %v2166 = vadd.f32 %v1859, %v2140
    %v2167 = vadd.f32 %v1860, %v2141
    %v2168 = vadd.f32 %v1861, %v2142
    %v2169 = vadd.f32 %v1862, %v2143
    %v2170 = vadd.f32 %v1863, %v2144
    %v2171 = vadd.f32 %v1864, %v2145
    %v2172 = vadd.f32 %v1865, %v2146
    %v2173 = vadd.f32 %v1866, %v2147
    %v2174 = vadd.f32 %v1867, %v2148
    %v2175 = vadd.f32 %v1868, %v2149
    %v2176 = vadd.f32 %v1869, %v2150
    %v2177 = vadd.f32 %v1870, %v2151
    %v2178 = vadd.f32 %v1871, %v2152
    %s2179 = sld [smem:[#allocation2 + $0x34]]
    %v2180 = vstv %s2179
    %v2181 = vmul.f32 %v28, %v2180
    %v2182 = vmul.f32 %v29, %v2180
    %v2183 = vmul.f32 %v30, %v2180
    %v2184 = vmul.f32 %v31, %v2180
    %v2185 = vmul.f32 %v32, %v2180
    %v2186 = vmul.f32 %v33, %v2180
    %v2187 = vmul.f32 %v34, %v2180
    %v2188 = vmul.f32 %v35, %v2180
    %v2189 = vmul.f32 %v36, %v2180
    %v2190 = vmul.f32 %v37, %v2180
    %v2191 = vmul.f32 %v38, %v2180
    %v2192 = vmul.f32 %v39, %v2180
    %v2193 = vmul.f32 %v40, %v2180
    %v2194 = vmul.f32 %v41, %v2180
    %v2195 = vmul.f32 %v42, %v2180
    %v2196 = vmul.f32 %v43, %v2180
    %v2197 = vmul.f32 %v44, %v2180
    %v2198 = vmul.f32 %v45, %v2180
    %v2199 = vmul.f32 %v46, %v2180
    %v2200 = vmul.f32 %v47, %v2180
    %v2201 = vmul.f32 %v48, %v2180
    %v2202 = vmul.f32 %v49, %v2180
    %v2203 = vmul.f32 %v50, %v2180
    %v2204 = vmul.f32 %v51, %v2180
    %v2205 = vmul.f32 %v52, %v2180
    %v2206 = vmul.f32 %v53, %v2180
    %v2207 = vadd.f32 %v1991, %v2181
    %v2208 = vadd.f32 %v1992, %v2182
    %v2209 = vadd.f32 %v1993, %v2183
    %v2210 = vadd.f32 %v1994, %v2184
    %v2211 = vadd.f32 %v1995, %v2185
    %v2212 = vadd.f32 %v1996, %v2186
    %v2213 = vadd.f32 %v1997, %v2187
    %v2214 = vadd.f32 %v1998, %v2188
    %v2215 = vadd.f32 %v1999, %v2189
    %v2216 = vadd.f32 %v2000, %v2190
    %v2217 = vadd.f32 %v2001, %v2191
    %v2218 = vadd.f32 %v2002, %v2192
    %v2219 = vadd.f32 %v2003, %v2193
    %v2220 = vadd.f32 %v2004, %v2194
    %v2221 = vadd.f32 %v2005, %v2195
    %v2222 = vadd.f32 %v2006, %v2196
    %v2223 = vadd.f32 %v2007, %v2197
    %v2224 = vadd.f32 %v2008, %v2198
    %v2225 = vadd.f32 %v2009, %v2199
    %v2226 = vadd.f32 %v2010, %v2200
    %v2227 = vadd.f32 %v2011, %v2201
    %v2228 = vadd.f32 %v2012, %v2202
    %v2229 = vadd.f32 %v2013, %v2203
    %v2230 = vadd.f32 %v2014, %v2204
    %v2231 = vadd.f32 %v2015, %v2205
    %v2232 = vadd.f32 %v2016, %v2206
    %s2233 = sld [smem:[#allocation2 + $0x5]]
    %v2234 = vstv %s2233
    %v2235 = vmul.f32 %v28, %v2234
    %v2236 = vmul.f32 %v29, %v2234
    %v2237 = vmul.f32 %v30, %v2234
    %v2238 = vmul.f32 %v31, %v2234
    %v2239 = vmul.f32 %v32, %v2234
    %v2240 = vmul.f32 %v33, %v2234
    %v2241 = vmul.f32 %v34, %v2234
    %v2242 = vmul.f32 %v35, %v2234
    %v2243 = vmul.f32 %v36, %v2234
    %v2244 = vmul.f32 %v37, %v2234
    %v2245 = vmul.f32 %v38, %v2234
    %v2246 = vmul.f32 %v39, %v2234
    %v2247 = vmul.f32 %v40, %v2234
    %v2248 = vmul.f32 %v41, %v2234
    %v2249 = vmul.f32 %v42, %v2234
    %v2250 = vmul.f32 %v43, %v2234
    %v2251 = vmul.f32 %v44, %v2234
    %v2252 = vmul.f32 %v45, %v2234
    %v2253 = vmul.f32 %v46, %v2234
    %v2254 = vmul.f32 %v47, %v2234
    %v2255 = vmul.f32 %v48, %v2234
    %v2256 = vmul.f32 %v49, %v2234
    %v2257 = vmul.f32 %v50, %v2234
    %v2258 = vmul.f32 %v51, %v2234
    %v2259 = vmul.f32 %v52, %v2234
    %v2260 = vmul.f32 %v53, %v2234
    %v2287 = vrot.slane %v2235, 1
    %v2288 = vrot.slane %v2236, 1
    %v2289 = vsel %vm328, %v2287, %v2288
    %v2290 = vrot.slane %v2237, 1
    %v2291 = vrot.slane %v2238, 1
    %v2292 = vsel %vm328, %v2290, %v2291
    %v2293 = vrot.slane %v2239, 1
    %v2294 = vrot.slane %v2240, 1
    %v2295 = vsel %vm328, %v2293, %v2294
    %v2296 = vrot.slane %v2241, 1
    %v2297 = vrot.slane %v2242, 1
    %v2298 = vsel %vm328, %v2296, %v2297
    %v2299 = vrot.slane %v2243, 1
    %v2300 = vrot.slane %v2244, 1
    %v2301 = vsel %vm328, %v2299, %v2300
    %v2302 = vrot.slane %v2245, 1
    %v2303 = vrot.slane %v2246, 1
    %v2304 = vsel %vm328, %v2302, %v2303
    %v2305 = vrot.slane %v2247, 1
    %v2306 = vrot.slane %v2248, 1
    %v2307 = vsel %vm328, %v2305, %v2306
    %v2308 = vrot.slane %v2249, 1
    %v2309 = vrot.slane %v2250, 1
    %v2310 = vsel %vm328, %v2308, %v2309
    %v2311 = vrot.slane %v2251, 1
    %v2312 = vrot.slane %v2252, 1
    %v2313 = vsel %vm328, %v2311, %v2312
    %v2314 = vrot.slane %v2253, 1
    %v2315 = vrot.slane %v2254, 1
    %v2316 = vsel %vm328, %v2314, %v2315
    %v2317 = vrot.slane %v2255, 1
    %v2318 = vrot.slane %v2256, 1
    %v2319 = vsel %vm328, %v2317, %v2318
    %v2320 = vrot.slane %v2257, 1
    %v2321 = vrot.slane %v2258, 1
    %v2322 = vsel %vm328, %v2320, %v2321
    %v2323 = vrot.slane %v2259, 1
    %v2324 = vrot.slane %v2260, 1
    %v2325 = vsel %vm328, %v2323, %v2324
    %v2352 = vadd.f32 %v2045, %v2289
    %v2353 = vadd.f32 %v2046, %v2288
    %v2354 = vadd.f32 %v2047, %v2292
    %v2355 = vadd.f32 %v2048, %v2291
    %v2356 = vadd.f32 %v2049, %v2295
    %v2357 = vadd.f32 %v2050, %v2294
    %v2358 = vadd.f32 %v2051, %v2298
    %v2359 = vadd.f32 %v2052, %v2297
    %v2360 = vadd.f32 %v2053, %v2301
    %v2361 = vadd.f32 %v2054, %v2300
    %v2362 = vadd.f32 %v2055, %v2304
    %v2363 = vadd.f32 %v2056, %v2303
    %v2364 = vadd.f32 %v2057, %v2307
    %v2365 = vadd.f32 %v2058, %v2306
    %v2366 = vadd.f32 %v2059, %v2310
    %v2367 = vadd.f32 %v2060, %v2309
    %v2368 = vadd.f32 %v2061, %v2313
    %v2369 = vadd.f32 %v2062, %v2312
    %v2370 = vadd.f32 %v2063, %v2316
    %v2371 = vadd.f32 %v2064, %v2315
    %v2372 = vadd.f32 %v2065, %v2319
    %v2373 = vadd.f32 %v2066, %v2318
    %v2374 = vadd.f32 %v2067, %v2322
    %v2375 = vadd.f32 %v2068, %v2321
    %v2376 = vadd.f32 %v2069, %v2325
    %v2377 = vadd.f32 %v2070, %v2324
    %s2378 = sld [smem:[#allocation2 + $0x15]]
    %v2379 = vstv %s2378
    %v2380 = vmul.f32 %v28, %v2379
    %v2381 = vmul.f32 %v29, %v2379
    %v2382 = vmul.f32 %v30, %v2379
    %v2383 = vmul.f32 %v31, %v2379
    %v2384 = vmul.f32 %v32, %v2379
    %v2385 = vmul.f32 %v33, %v2379
    %v2386 = vmul.f32 %v34, %v2379
    %v2387 = vmul.f32 %v35, %v2379
    %v2388 = vmul.f32 %v36, %v2379
    %v2389 = vmul.f32 %v37, %v2379
    %v2390 = vmul.f32 %v38, %v2379
    %v2391 = vmul.f32 %v39, %v2379
    %v2392 = vmul.f32 %v40, %v2379
    %v2393 = vmul.f32 %v41, %v2379
    %v2394 = vmul.f32 %v42, %v2379
    %v2395 = vmul.f32 %v43, %v2379
    %v2396 = vmul.f32 %v44, %v2379
    %v2397 = vmul.f32 %v45, %v2379
    %v2398 = vmul.f32 %v46, %v2379
    %v2399 = vmul.f32 %v47, %v2379
    %v2400 = vmul.f32 %v48, %v2379
    %v2401 = vmul.f32 %v49, %v2379
    %v2402 = vmul.f32 %v50, %v2379
    %v2403 = vmul.f32 %v51, %v2379
    %v2404 = vmul.f32 %v52, %v2379
    %v2405 = vmul.f32 %v53, %v2379
    %v2432 = vrot.slane %v2380, 1
    %v2433 = vrot.slane %v2381, 1
    %v2434 = vsel %vm328, %v2432, %v2433
    %v2435 = vrot.slane %v2382, 1
    %v2436 = vrot.slane %v2383, 1
    %v2437 = vsel %vm328, %v2435, %v2436
    %v2438 = vrot.slane %v2384, 1
    %v2439 = vrot.slane %v2385, 1
    %v2440 = vsel %vm328, %v2438, %v2439
    %v2441 = vrot.slane %v2386, 1
    %v2442 = vrot.slane %v2387, 1
    %v2443 = vsel %vm328, %v2441, %v2442
    %v2444 = vrot.slane %v2388, 1
    %v2445 = vrot.slane %v2389, 1
    %v2446 = vsel %vm328, %v2444, %v2445
    %v2447 = vrot.slane %v2390, 1
    %v2448 = vrot.slane %v2391, 1
    %v2449 = vsel %vm328, %v2447, %v2448
    %v2450 = vrot.slane %v2392, 1
    %v2451 = vrot.slane %v2393, 1
    %v2452 = vsel %vm328, %v2450, %v2451
    %v2453 = vrot.slane %v2394, 1
    %v2454 = vrot.slane %v2395, 1
    %v2455 = vsel %vm328, %v2453, %v2454
    %v2456 = vrot.slane %v2396, 1
    %v2457 = vrot.slane %v2397, 1
    %v2458 = vsel %vm328, %v2456, %v2457
    %v2459 = vrot.slane %v2398, 1
    %v2460 = vrot.slane %v2399, 1
    %v2461 = vsel %vm328, %v2459, %v2460
    %v2462 = vrot.slane %v2400, 1
    %v2463 = vrot.slane %v2401, 1
    %v2464 = vsel %vm328, %v2462, %v2463
    %v2465 = vrot.slane %v2402, 1
    %v2466 = vrot.slane %v2403, 1
    %v2467 = vsel %vm328, %v2465, %v2466
    %v2468 = vrot.slane %v2404, 1
    %v2469 = vrot.slane %v2405, 1
    %v2470 = vsel %vm328, %v2468, %v2469
    %v2497 = vadd.f32 %v2099, %v2434
    %v2498 = vadd.f32 %v2100, %v2433
    %v2499 = vadd.f32 %v2101, %v2437
    %v2500 = vadd.f32 %v2102, %v2436
    %v2501 = vadd.f32 %v2103, %v2440
    %v2502 = vadd.f32 %v2104, %v2439
    %v2503 = vadd.f32 %v2105, %v2443
    %v2504 = vadd.f32 %v2106, %v2442
    %v2505 = vadd.f32 %v2107, %v2446
    %v2506 = vadd.f32 %v2108, %v2445
    %v2507 = vadd.f32 %v2109, %v2449
    %v2508 = vadd.f32 %v2110, %v2448
    %v2509 = vadd.f32 %v2111, %v2452
    %v2510 = vadd.f32 %v2112, %v2451
    %v2511 = vadd.f32 %v2113, %v2455
    %v2512 = vadd.f32 %v2114, %v2454
    %v2513 = vadd.f32 %v2115, %v2458
    %v2514 = vadd.f32 %v2116, %v2457
    %v2515 = vadd.f32 %v2117, %v2461
    %v2516 = vadd.f32 %v2118, %v2460
    %v2517 = vadd.f32 %v2119, %v2464
    %v2518 = vadd.f32 %v2120, %v2463
    %v2519 = vadd.f32 %v2121, %v2467
    %v2520 = vadd.f32 %v2122, %v2466
    %v2521 = vadd.f32 %v2123, %v2470
    %v2522 = vadd.f32 %v2124, %v2469
    %s2523 = sld [smem:[#allocation2 + $0x25]]
    %v2524 = vstv %s2523
    %v2525 = vmul.f32 %v28, %v2524
    %v2526 = vmul.f32 %v29, %v2524
    %v2527 = vmul.f32 %v30, %v2524
    %v2528 = vmul.f32 %v31, %v2524
    %v2529 = vmul.f32 %v32, %v2524
    %v2530 = vmul.f32 %v33, %v2524
    %v2531 = vmul.f32 %v34, %v2524
    %v2532 = vmul.f32 %v35, %v2524
    %v2533 = vmul.f32 %v36, %v2524
    %v2534 = vmul.f32 %v37, %v2524
    %v2535 = vmul.f32 %v38, %v2524
    %v2536 = vmul.f32 %v39, %v2524
    %v2537 = vmul.f32 %v40, %v2524
    %v2538 = vmul.f32 %v41, %v2524
    %v2539 = vmul.f32 %v42, %v2524
    %v2540 = vmul.f32 %v43, %v2524
    %v2541 = vmul.f32 %v44, %v2524
    %v2542 = vmul.f32 %v45, %v2524
    %v2543 = vmul.f32 %v46, %v2524
    %v2544 = vmul.f32 %v47, %v2524
    %v2545 = vmul.f32 %v48, %v2524
    %v2546 = vmul.f32 %v49, %v2524
    %v2547 = vmul.f32 %v50, %v2524
    %v2548 = vmul.f32 %v51, %v2524
    %v2549 = vmul.f32 %v52, %v2524
    %v2550 = vmul.f32 %v53, %v2524
    %v2577 = vrot.slane %v2525, 1
    %v2578 = vrot.slane %v2526, 1
    %v2579 = vsel %vm328, %v2577, %v2578
    %v2580 = vrot.slane %v2527, 1
    %v2581 = vrot.slane %v2528, 1
    %v2582 = vsel %vm328, %v2580, %v2581
    %v2583 = vrot.slane %v2529, 1
    %v2584 = vrot.slane %v2530, 1
    %v2585 = vsel %vm328, %v2583, %v2584
    %v2586 = vrot.slane %v2531, 1
    %v2587 = vrot.slane %v2532, 1
    %v2588 = vsel %vm328, %v2586, %v2587
    %v2589 = vrot.slane %v2533, 1
    %v2590 = vrot.slane %v2534, 1
    %v2591 = vsel %vm328, %v2589, %v2590
    %v2592 = vrot.slane %v2535, 1
    %v2593 = vrot.slane %v2536, 1
    %v2594 = vsel %vm328, %v2592, %v2593
    %v2595 = vrot.slane %v2537, 1
    %v2596 = vrot.slane %v2538, 1
    %v2597 = vsel %vm328, %v2595, %v2596
    %v2598 = vrot.slane %v2539, 1
    %v2599 = vrot.slane %v2540, 1
    %v2600 = vsel %vm328, %v2598, %v2599
    %v2601 = vrot.slane %v2541, 1
    %v2602 = vrot.slane %v2542, 1
    %v2603 = vsel %vm328, %v2601, %v2602
    %v2604 = vrot.slane %v2543, 1
    %v2605 = vrot.slane %v2544, 1
    %v2606 = vsel %vm328, %v2604, %v2605
    %v2607 = vrot.slane %v2545, 1
    %v2608 = vrot.slane %v2546, 1
    %v2609 = vsel %vm328, %v2607, %v2608
    %v2610 = vrot.slane %v2547, 1
    %v2611 = vrot.slane %v2548, 1
    %v2612 = vsel %vm328, %v2610, %v2611
    %v2613 = vrot.slane %v2549, 1
    %v2614 = vrot.slane %v2550, 1
    %v2615 = vsel %vm328, %v2613, %v2614
    %v2642 = vadd.f32 %v2153, %v2579
    %v2643 = vadd.f32 %v2154, %v2578
    %v2644 = vadd.f32 %v2155, %v2582
    %v2645 = vadd.f32 %v2156, %v2581
    %v2646 = vadd.f32 %v2157, %v2585
    %v2647 = vadd.f32 %v2158, %v2584
    %v2648 = vadd.f32 %v2159, %v2588
    %v2649 = vadd.f32 %v2160, %v2587
    %v2650 = vadd.f32 %v2161, %v2591
    %v2651 = vadd.f32 %v2162, %v2590
    %v2652 = vadd.f32 %v2163, %v2594
    %v2653 = vadd.f32 %v2164, %v2593
    %v2654 = vadd.f32 %v2165, %v2597
    %v2655 = vadd.f32 %v2166, %v2596
    %v2656 = vadd.f32 %v2167, %v2600
    %v2657 = vadd.f32 %v2168, %v2599
    %v2658 = vadd.f32 %v2169, %v2603
    %v2659 = vadd.f32 %v2170, %v2602
    %v2660 = vadd.f32 %v2171, %v2606
    %v2661 = vadd.f32 %v2172, %v2605
    %v2662 = vadd.f32 %v2173, %v2609
    %v2663 = vadd.f32 %v2174, %v2608
    %v2664 = vadd.f32 %v2175, %v2612
    %v2665 = vadd.f32 %v2176, %v2611
    %v2666 = vadd.f32 %v2177, %v2615
    %v2667 = vadd.f32 %v2178, %v2614
    %s2668 = sld [smem:[#allocation2 + $0x35]]
    %v2669 = vstv %s2668
    %v2670 = vmul.f32 %v28, %v2669
    %v2671 = vmul.f32 %v29, %v2669
    %v2672 = vmul.f32 %v30, %v2669
    %v2673 = vmul.f32 %v31, %v2669
    %v2674 = vmul.f32 %v32, %v2669
    %v2675 = vmul.f32 %v33, %v2669
    %v2676 = vmul.f32 %v34, %v2669
    %v2677 = vmul.f32 %v35, %v2669
    %v2678 = vmul.f32 %v36, %v2669
    %v2679 = vmul.f32 %v37, %v2669
    %v2680 = vmul.f32 %v38, %v2669
    %v2681 = vmul.f32 %v39, %v2669
    %v2682 = vmul.f32 %v40, %v2669
    %v2683 = vmul.f32 %v41, %v2669
    %v2684 = vmul.f32 %v42, %v2669
    %v2685 = vmul.f32 %v43, %v2669
    %v2686 = vmul.f32 %v44, %v2669
    %v2687 = vmul.f32 %v45, %v2669
    %v2688 = vmul.f32 %v46, %v2669
    %v2689 = vmul.f32 %v47, %v2669
    %v2690 = vmul.f32 %v48, %v2669
    %v2691 = vmul.f32 %v49, %v2669
    %v2692 = vmul.f32 %v50, %v2669
    %v2693 = vmul.f32 %v51, %v2669
    %v2694 = vmul.f32 %v52, %v2669
    %v2695 = vmul.f32 %v53, %v2669
    %v2722 = vrot.slane %v2670, 1
    %v2723 = vrot.slane %v2671, 1
    %v2724 = vsel %vm328, %v2722, %v2723
    %v2725 = vrot.slane %v2672, 1
    %v2726 = vrot.slane %v2673, 1
    %v2727 = vsel %vm328, %v2725, %v2726
    %v2728 = vrot.slane %v2674, 1
    %v2729 = vrot.slane %v2675, 1
    %v2730 = vsel %vm328, %v2728, %v2729
    %v2731 = vrot.slane %v2676, 1
    %v2732 = vrot.slane %v2677, 1
    %v2733 = vsel %vm328, %v2731, %v2732
    %v2734 = vrot.slane %v2678, 1
    %v2735 = vrot.slane %v2679, 1
    %v2736 = vsel %vm328, %v2734, %v2735
    %v2737 = vrot.slane %v2680, 1
    %v2738 = vrot.slane %v2681, 1
    %v2739 = vsel %vm328, %v2737, %v2738
    %v2740 = vrot.slane %v2682, 1
    %v2741 = vrot.slane %v2683, 1
    %v2742 = vsel %vm328, %v2740, %v2741
    %v2743 = vrot.slane %v2684, 1
    %v2744 = vrot.slane %v2685, 1
    %v2745 = vsel %vm328, %v2743, %v2744
    %v2746 = vrot.slane %v2686, 1
    %v2747 = vrot.slane %v2687, 1
    %v2748 = vsel %vm328, %v2746, %v2747
    %v2749 = vrot.slane %v2688, 1
    %v2750 = vrot.slane %v2689, 1
    %v2751 = vsel %vm328, %v2749, %v2750
    %v2752 = vrot.slane %v2690, 1
    %v2753 = vrot.slane %v2691, 1
    %v2754 = vsel %vm328, %v2752, %v2753
    %v2755 = vrot.slane %v2692, 1
    %v2756 = vrot.slane %v2693, 1
    %v2757 = vsel %vm328, %v2755, %v2756
    %v2758 = vrot.slane %v2694, 1
    %v2759 = vrot.slane %v2695, 1
    %v2760 = vsel %vm328, %v2758, %v2759
    %v2787 = vadd.f32 %v2207, %v2724
    %v2788 = vadd.f32 %v2208, %v2723
    %v2789 = vadd.f32 %v2209, %v2727
    %v2790 = vadd.f32 %v2210, %v2726
    %v2791 = vadd.f32 %v2211, %v2730
    %v2792 = vadd.f32 %v2212, %v2729
    %v2793 = vadd.f32 %v2213, %v2733
    %v2794 = vadd.f32 %v2214, %v2732
    %v2795 = vadd.f32 %v2215, %v2736
    %v2796 = vadd.f32 %v2216, %v2735
    %v2797 = vadd.f32 %v2217, %v2739
    %v2798 = vadd.f32 %v2218, %v2738
    %v2799 = vadd.f32 %v2219, %v2742
    %v2800 = vadd.f32 %v2220, %v2741
    %v2801 = vadd.f32 %v2221, %v2745
    %v2802 = vadd.f32 %v2222, %v2744
    %v2803 = vadd.f32 %v2223, %v2748
    %v2804 = vadd.f32 %v2224, %v2747
    %v2805 = vadd.f32 %v2225, %v2751
    %v2806 = vadd.f32 %v2226, %v2750
    %v2807 = vadd.f32 %v2227, %v2754
    %v2808 = vadd.f32 %v2228, %v2753
    %v2809 = vadd.f32 %v2229, %v2757
    %v2810 = vadd.f32 %v2230, %v2756
    %v2811 = vadd.f32 %v2231, %v2760
    %v2812 = vadd.f32 %v2232, %v2759
    %s2813 = sld [smem:[#allocation2 + $0x6]]
    %v2814 = vstv %s2813
    %v2815 = vmul.f32 %v28, %v2814
    %v2816 = vmul.f32 %v29, %v2814
    %v2817 = vmul.f32 %v30, %v2814
    %v2818 = vmul.f32 %v31, %v2814
    %v2819 = vmul.f32 %v32, %v2814
    %v2820 = vmul.f32 %v33, %v2814
    %v2821 = vmul.f32 %v34, %v2814
    %v2822 = vmul.f32 %v35, %v2814
    %v2823 = vmul.f32 %v36, %v2814
    %v2824 = vmul.f32 %v37, %v2814
    %v2825 = vmul.f32 %v38, %v2814
    %v2826 = vmul.f32 %v39, %v2814
    %v2827 = vmul.f32 %v40, %v2814
    %v2828 = vmul.f32 %v41, %v2814
    %v2829 = vmul.f32 %v42, %v2814
    %v2830 = vmul.f32 %v43, %v2814
    %v2831 = vmul.f32 %v44, %v2814
    %v2832 = vmul.f32 %v45, %v2814
    %v2833 = vmul.f32 %v46, %v2814
    %v2834 = vmul.f32 %v47, %v2814
    %v2835 = vmul.f32 %v48, %v2814
    %v2836 = vmul.f32 %v49, %v2814
    %v2837 = vmul.f32 %v50, %v2814
    %v2838 = vmul.f32 %v51, %v2814
    %v2839 = vmul.f32 %v52, %v2814
    %v2840 = vmul.f32 %v53, %v2814
    %v2867 = vrot.slane %v2815, 2
    %v2868 = vrot.slane %v2816, 2
    %v2869 = vsel %vm909, %v2867, %v2868
    %v2870 = vrot.slane %v2817, 2
    %v2871 = vrot.slane %v2818, 2
    %v2872 = vsel %vm909, %v2870, %v2871
    %v2873 = vrot.slane %v2819, 2
    %v2874 = vrot.slane %v2820, 2
    %v2875 = vsel %vm909, %v2873, %v2874
    %v2876 = vrot.slane %v2821, 2
    %v2877 = vrot.slane %v2822, 2
    %v2878 = vsel %vm909, %v2876, %v2877
    %v2879 = vrot.slane %v2823, 2
    %v2880 = vrot.slane %v2824, 2
    %v2881 = vsel %vm909, %v2879, %v2880
    %v2882 = vrot.slane %v2825, 2
    %v2883 = vrot.slane %v2826, 2
    %v2884 = vsel %vm909, %v2882, %v2883
    %v2885 = vrot.slane %v2827, 2
    %v2886 = vrot.slane %v2828, 2
    %v2887 = vsel %vm909, %v2885, %v2886
    %v2888 = vrot.slane %v2829, 2
    %v2889 = vrot.slane %v2830, 2
    %v2890 = vsel %vm909, %v2888, %v2889
    %v2891 = vrot.slane %v2831, 2
    %v2892 = vrot.slane %v2832, 2
    %v2893 = vsel %vm909, %v2891, %v2892
    %v2894 = vrot.slane %v2833, 2
    %v2895 = vrot.slane %v2834, 2
    %v2896 = vsel %vm909, %v2894, %v2895
    %v2897 = vrot.slane %v2835, 2
    %v2898 = vrot.slane %v2836, 2
    %v2899 = vsel %vm909, %v2897, %v2898
    %v2900 = vrot.slane %v2837, 2
    %v2901 = vrot.slane %v2838, 2
    %v2902 = vsel %vm909, %v2900, %v2901
    %v2903 = vrot.slane %v2839, 2
    %v2904 = vrot.slane %v2840, 2
    %v2905 = vsel %vm909, %v2903, %v2904
    %v2932 = vadd.f32 %v2352, %v2869
    %v2933 = vadd.f32 %v2353, %v2868
    %v2934 = vadd.f32 %v2354, %v2872
    %v2935 = vadd.f32 %v2355, %v2871
    %v2936 = vadd.f32 %v2356, %v2875
    %v2937 = vadd.f32 %v2357, %v2874
    %v2938 = vadd.f32 %v2358, %v2878
    %v2939 = vadd.f32 %v2359, %v2877
    %v2940 = vadd.f32 %v2360, %v2881
    %v2941 = vadd.f32 %v2361, %v2880
    %v2942 = vadd.f32 %v2362, %v2884
    %v2943 = vadd.f32 %v2363, %v2883
    %v2944 = vadd.f32 %v2364, %v2887
    %v2945 = vadd.f32 %v2365, %v2886
    %v2946 = vadd.f32 %v2366, %v2890
    %v2947 = vadd.f32 %v2367, %v2889
    %v2948 = vadd.f32 %v2368, %v2893
    %v2949 = vadd.f32 %v2369, %v2892
    %v2950 = vadd.f32 %v2370, %v2896
    %v2951 = vadd.f32 %v2371, %v2895
    %v2952 = vadd.f32 %v2372, %v2899
    %v2953 = vadd.f32 %v2373, %v2898
    %v2954 = vadd.f32 %v2374, %v2902
    %v2955 = vadd.f32 %v2375, %v2901
    %v2956 = vadd.f32 %v2376, %v2905
    %v2957 = vadd.f32 %v2377, %v2904
    %s2958 = sld [smem:[#allocation2 + $0x16]]
    %v2959 = vstv %s2958
    %v2960 = vmul.f32 %v28, %v2959
    %v2961 = vmul.f32 %v29, %v2959
    %v2962 = vmul.f32 %v30, %v2959
    %v2963 = vmul.f32 %v31, %v2959
    %v2964 = vmul.f32 %v32, %v2959
    %v2965 = vmul.f32 %v33, %v2959
    %v2966 = vmul.f32 %v34, %v2959
    %v2967 = vmul.f32 %v35, %v2959
    %v2968 = vmul.f32 %v36, %v2959
    %v2969 = vmul.f32 %v37, %v2959
    %v2970 = vmul.f32 %v38, %v2959
    %v2971 = vmul.f32 %v39, %v2959
    %v2972 = vmul.f32 %v40, %v2959
    %v2973 = vmul.f32 %v41, %v2959
    %v2974 = vmul.f32 %v42, %v2959
    %v2975 = vmul.f32 %v43, %v2959
    %v2976 = vmul.f32 %v44, %v2959
    %v2977 = vmul.f32 %v45, %v2959
    %v2978 = vmul.f32 %v46, %v2959
    %v2979 = vmul.f32 %v47, %v2959
    %v2980 = vmul.f32 %v48, %v2959
    %v2981 = vmul.f32 %v49, %v2959
    %v2982 = vmul.f32 %v50, %v2959
    %v2983 = vmul.f32 %v51, %v2959
    %v2984 = vmul.f32 %v52, %v2959
    %v2985 = vmul.f32 %v53, %v2959
    %v3012 = vrot.slane %v2960, 2
    %v3013 = vrot.slane %v2961, 2
    %v3014 = vsel %vm909, %v3012, %v3013
    %v3015 = vrot.slane %v2962, 2
    %v3016 = vrot.slane %v2963, 2
    %v3017 = vsel %vm909, %v3015, %v3016
    %v3018 = vrot.slane %v2964, 2
    %v3019 = vrot.slane %v2965, 2
    %v3020 = vsel %vm909, %v3018, %v3019
    %v3021 = vrot.slane %v2966, 2
    %v3022 = vrot.slane %v2967, 2
    %v3023 = vsel %vm909, %v3021, %v3022
    %v3024 = vrot.slane %v2968, 2
    %v3025 = vrot.slane %v2969, 2
    %v3026 = vsel %vm909, %v3024, %v3025
    %v3027 = vrot.slane %v2970, 2
    %v3028 = vrot.slane %v2971, 2
    %v3029 = vsel %vm909, %v3027, %v3028
    %v3030 = vrot.slane %v2972, 2
    %v3031 = vrot.slane %v2973, 2
    %v3032 = vsel %vm909, %v3030, %v3031
    %v3033 = vrot.slane %v2974, 2
    %v3034 = vrot.slane %v2975, 2
    %v3035 = vsel %vm909, %v3033, %v3034
    %v3036 = vrot.slane %v2976, 2
    %v3037 = vrot.slane %v2977, 2
    %v3038 = vsel %vm909, %v3036, %v3037
    %v3039 = vrot.slane %v2978, 2
    %v3040 = vrot.slane %v2979, 2
    %v3041 = vsel %vm909, %v3039, %v3040
    %v3042 = vrot.slane %v2980, 2
    %v3043 = vrot.slane %v2981, 2
    %v3044 = vsel %vm909, %v3042, %v3043
    %v3045 = vrot.slane %v2982, 2
    %v3046 = vrot.slane %v2983, 2
    %v3047 = vsel %vm909, %v3045, %v3046
    %v3048 = vrot.slane %v2984, 2
    %v3049 = vrot.slane %v2985, 2
    %v3050 = vsel %vm909, %v3048, %v3049
    %v3077 = vadd.f32 %v2497, %v3014
    %v3078 = vadd.f32 %v2498, %v3013
    %v3079 = vadd.f32 %v2499, %v3017
    %v3080 = vadd.f32 %v2500, %v3016
    %v3081 = vadd.f32 %v2501, %v3020
    %v3082 = vadd.f32 %v2502, %v3019
    %v3083 = vadd.f32 %v2503, %v3023
    %v3084 = vadd.f32 %v2504, %v3022
    %v3085 = vadd.f32 %v2505, %v3026
    %v3086 = vadd.f32 %v2506, %v3025
    %v3087 = vadd.f32 %v2507, %v3029
    %v3088 = vadd.f32 %v2508, %v3028
    %v3089 = vadd.f32 %v2509, %v3032
    %v3090 = vadd.f32 %v2510, %v3031
    %v3091 = vadd.f32 %v2511, %v3035
    %v3092 = vadd.f32 %v2512, %v3034
    %v3093 = vadd.f32 %v2513, %v3038
    %v3094 = vadd.f32 %v2514, %v3037
    %v3095 = vadd.f32 %v2515, %v3041
    %v3096 = vadd.f32 %v2516, %v3040
    %v3097 = vadd.f32 %v2517, %v3044
    %v3098 = vadd.f32 %v2518, %v3043
    %v3099 = vadd.f32 %v2519, %v3047
    %v3100 = vadd.f32 %v2520, %v3046
    %v3101 = vadd.f32 %v2521, %v3050
    %v3102 = vadd.f32 %v2522, %v3049
    %s3103 = sld [smem:[#allocation2 + $0x26]]
    %v3104 = vstv %s3103
    %v3105 = vmul.f32 %v28, %v3104
    %v3106 = vmul.f32 %v29, %v3104
    %v3107 = vmul.f32 %v30, %v3104
    %v3108 = vmul.f32 %v31, %v3104
    %v3109 = vmul.f32 %v32, %v3104
    %v3110 = vmul.f32 %v33, %v3104
    %v3111 = vmul.f32 %v34, %v3104
    %v3112 = vmul.f32 %v35, %v3104
    %v3113 = vmul.f32 %v36, %v3104
    %v3114 = vmul.f32 %v37, %v3104
    %v3115 = vmul.f32 %v38, %v3104
    %v3116 = vmul.f32 %v39, %v3104
    %v3117 = vmul.f32 %v40, %v3104
    %v3118 = vmul.f32 %v41, %v3104
    %v3119 = vmul.f32 %v42, %v3104
    %v3120 = vmul.f32 %v43, %v3104
    %v3121 = vmul.f32 %v44, %v3104
    %v3122 = vmul.f32 %v45, %v3104
    %v3123 = vmul.f32 %v46, %v3104
    %v3124 = vmul.f32 %v47, %v3104
    %v3125 = vmul.f32 %v48, %v3104
    %v3126 = vmul.f32 %v49, %v3104
    %v3127 = vmul.f32 %v50, %v3104
    %v3128 = vmul.f32 %v51, %v3104
    %v3129 = vmul.f32 %v52, %v3104
    %v3130 = vmul.f32 %v53, %v3104
    %v3157 = vrot.slane %v3105, 2
    %v3158 = vrot.slane %v3106, 2
    %v3159 = vsel %vm909, %v3157, %v3158
    %v3160 = vrot.slane %v3107, 2
    %v3161 = vrot.slane %v3108, 2
    %v3162 = vsel %vm909, %v3160, %v3161
    %v3163 = vrot.slane %v3109, 2
    %v3164 = vrot.slane %v3110, 2
    %v3165 = vsel %vm909, %v3163, %v3164
    %v3166 = vrot.slane %v3111, 2
    %v3167 = vrot.slane %v3112, 2
    %v3168 = vsel %vm909, %v3166, %v3167
    %v3169 = vrot.slane %v3113, 2
    %v3170 = vrot.slane %v3114, 2
    %v3171 = vsel %vm909, %v3169, %v3170
    %v3172 = vrot.slane %v3115, 2
    %v3173 = vrot.slane %v3116, 2
    %v3174 = vsel %vm909, %v3172, %v3173
    %v3175 = vrot.slane %v3117, 2
    %v3176 = vrot.slane %v3118, 2
    %v3177 = vsel %vm909, %v3175, %v3176
    %v3178 = vrot.slane %v3119, 2
    %v3179 = vrot.slane %v3120, 2
    %v3180 = vsel %vm909, %v3178, %v3179
    %v3181 = vrot.slane %v3121, 2
    %v3182 = vrot.slane %v3122, 2
    %v3183 = vsel %vm909, %v3181, %v3182
    %v3184 = vrot.slane %v3123, 2
    %v3185 = vrot.slane %v3124, 2
    %v3186 = vsel %vm909, %v3184, %v3185
    %v3187 = vrot.slane %v3125, 2
    %v3188 = vrot.slane %v3126, 2
    %v3189 = vsel %vm909, %v3187, %v3188
    %v3190 = vrot.slane %v3127, 2
    %v3191 = vrot.slane %v3128, 2
    %v3192 = vsel %vm909, %v3190, %v3191
    %v3193 = vrot.slane %v3129, 2
    %v3194 = vrot.slane %v3130, 2
    %v3195 = vsel %vm909, %v3193, %v3194
    %v3222 = vadd.f32 %v2642, %v3159
    %v3223 = vadd.f32 %v2643, %v3158
    %v3224 = vadd.f32 %v2644, %v3162
    %v3225 = vadd.f32 %v2645, %v3161
    %v3226 = vadd.f32 %v2646, %v3165
    %v3227 = vadd.f32 %v2647, %v3164
    %v3228 = vadd.f32 %v2648, %v3168
    %v3229 = vadd.f32 %v2649, %v3167
    %v3230 = vadd.f32 %v2650, %v3171
    %v3231 = vadd.f32 %v2651, %v3170
    %v3232 = vadd.f32 %v2652, %v3174
    %v3233 = vadd.f32 %v2653, %v3173
    %v3234 = vadd.f32 %v2654, %v3177
    %v3235 = vadd.f32 %v2655, %v3176
    %v3236 = vadd.f32 %v2656, %v3180
    %v3237 = vadd.f32 %v2657, %v3179
    %v3238 = vadd.f32 %v2658, %v3183
    %v3239 = vadd.f32 %v2659, %v3182
    %v3240 = vadd.f32 %v2660, %v3186
    %v3241 = vadd.f32 %v2661, %v3185
    %v3242 = vadd.f32 %v2662, %v3189
    %v3243 = vadd.f32 %v2663, %v3188
    %v3244 = vadd.f32 %v2664, %v3192
    %v3245 = vadd.f32 %v2665, %v3191
    %v3246 = vadd.f32 %v2666, %v3195
    %v3247 = vadd.f32 %v2667, %v3194
    %s3248 = sld [smem:[#allocation2 + $0x36]]
    %v3249 = vstv %s3248
    %v3250 = vmul.f32 %v28, %v3249
    %v3251 = vmul.f32 %v29, %v3249
    %v3252 = vmul.f32 %v30, %v3249
    %v3253 = vmul.f32 %v31, %v3249
    %v3254 = vmul.f32 %v32, %v3249
    %v3255 = vmul.f32 %v33, %v3249
    %v3256 = vmul.f32 %v34, %v3249
    %v3257 = vmul.f32 %v35, %v3249
    %v3258 = vmul.f32 %v36, %v3249
    %v3259 = vmul.f32 %v37, %v3249
    %v3260 = vmul.f32 %v38, %v3249
    %v3261 = vmul.f32 %v39, %v3249
    %v3262 = vmul.f32 %v40, %v3249
    %v3263 = vmul.f32 %v41, %v3249
    %v3264 = vmul.f32 %v42, %v3249
    %v3265 = vmul.f32 %v43, %v3249
    %v3266 = vmul.f32 %v44, %v3249
    %v3267 = vmul.f32 %v45, %v3249
    %v3268 = vmul.f32 %v46, %v3249
    %v3269 = vmul.f32 %v47, %v3249
    %v3270 = vmul.f32 %v48, %v3249
    %v3271 = vmul.f32 %v49, %v3249
    %v3272 = vmul.f32 %v50, %v3249
    %v3273 = vmul.f32 %v51, %v3249
    %v3274 = vmul.f32 %v52, %v3249
    %v3275 = vmul.f32 %v53, %v3249
    %v3302 = vrot.slane %v3250, 2
    %v3303 = vrot.slane %v3251, 2
    %v3304 = vsel %vm909, %v3302, %v3303
    %v3305 = vrot.slane %v3252, 2
    %v3306 = vrot.slane %v3253, 2
    %v3307 = vsel %vm909, %v3305, %v3306
    %v3308 = vrot.slane %v3254, 2
    %v3309 = vrot.slane %v3255, 2
    %v3310 = vsel %vm909, %v3308, %v3309
    %v3311 = vrot.slane %v3256, 2
    %v3312 = vrot.slane %v3257, 2
    %v3313 = vsel %vm909, %v3311, %v3312
    %v3314 = vrot.slane %v3258, 2
    %v3315 = vrot.slane %v3259, 2
    %v3316 = vsel %vm909, %v3314, %v3315
    %v3317 = vrot.slane %v3260, 2
    %v3318 = vrot.slane %v3261, 2
    %v3319 = vsel %vm909, %v3317, %v3318
    %v3320 = vrot.slane %v3262, 2
    %v3321 = vrot.slane %v3263, 2
    %v3322 = vsel %vm909, %v3320, %v3321
    %v3323 = vrot.slane %v3264, 2
    %v3324 = vrot.slane %v3265, 2
    %v3325 = vsel %vm909, %v3323, %v3324
    %v3326 = vrot.slane %v3266, 2
    %v3327 = vrot.slane %v3267, 2
    %v3328 = vsel %vm909, %v3326, %v3327
    %v3329 = vrot.slane %v3268, 2
    %v3330 = vrot.slane %v3269, 2
    %v3331 = vsel %vm909, %v3329, %v3330
    %v3332 = vrot.slane %v3270, 2
    %v3333 = vrot.slane %v3271, 2
    %v3334 = vsel %vm909, %v3332, %v3333
    %v3335 = vrot.slane %v3272, 2
    %v3336 = vrot.slane %v3273, 2
    %v3337 = vsel %vm909, %v3335, %v3336
    %v3338 = vrot.slane %v3274, 2
    %v3339 = vrot.slane %v3275, 2
    %v3340 = vsel %vm909, %v3338, %v3339
    %v3367 = vadd.f32 %v2787, %v3304
    %v3368 = vadd.f32 %v2788, %v3303
    %v3369 = vadd.f32 %v2789, %v3307
    %v3370 = vadd.f32 %v2790, %v3306
    %v3371 = vadd.f32 %v2791, %v3310
    %v3372 = vadd.f32 %v2792, %v3309
    %v3373 = vadd.f32 %v2793, %v3313
    %v3374 = vadd.f32 %v2794, %v3312
    %v3375 = vadd.f32 %v2795, %v3316
    %v3376 = vadd.f32 %v2796, %v3315
    %v3377 = vadd.f32 %v2797, %v3319
    %v3378 = vadd.f32 %v2798, %v3318
    %v3379 = vadd.f32 %v2799, %v3322
    %v3380 = vadd.f32 %v2800, %v3321
    %v3381 = vadd.f32 %v2801, %v3325
    %v3382 = vadd.f32 %v2802, %v3324
    %v3383 = vadd.f32 %v2803, %v3328
    %v3384 = vadd.f32 %v2804, %v3327
    %v3385 = vadd.f32 %v2805, %v3331
    %v3386 = vadd.f32 %v2806, %v3330
    %v3387 = vadd.f32 %v2807, %v3334
    %v3388 = vadd.f32 %v2808, %v3333
    %v3389 = vadd.f32 %v2809, %v3337
    %v3390 = vadd.f32 %v2810, %v3336
    %v3391 = vadd.f32 %v2811, %v3340
    %v3392 = vadd.f32 %v2812, %v3339
    %s3393 = sld [smem:[#allocation2 + $0x7]]
    %v3394 = vstv %s3393
    %v3395 = vmul.f32 %v28, %v3394
    %v3396 = vmul.f32 %v29, %v3394
    %v3397 = vmul.f32 %v30, %v3394
    %v3398 = vmul.f32 %v31, %v3394
    %v3399 = vmul.f32 %v32, %v3394
    %v3400 = vmul.f32 %v33, %v3394
    %v3401 = vmul.f32 %v34, %v3394
    %v3402 = vmul.f32 %v35, %v3394
    %v3403 = vmul.f32 %v36, %v3394
    %v3404 = vmul.f32 %v37, %v3394
    %v3405 = vmul.f32 %v38, %v3394
    %v3406 = vmul.f32 %v39, %v3394
    %v3407 = vmul.f32 %v40, %v3394
    %v3408 = vmul.f32 %v41, %v3394
    %v3409 = vmul.f32 %v42, %v3394
    %v3410 = vmul.f32 %v43, %v3394
    %v3411 = vmul.f32 %v44, %v3394
    %v3412 = vmul.f32 %v45, %v3394
    %v3413 = vmul.f32 %v46, %v3394
    %v3414 = vmul.f32 %v47, %v3394
    %v3415 = vmul.f32 %v48, %v3394
    %v3416 = vmul.f32 %v49, %v3394
    %v3417 = vmul.f32 %v50, %v3394
    %v3418 = vmul.f32 %v51, %v3394
    %v3419 = vmul.f32 %v52, %v3394
    %v3420 = vmul.f32 %v53, %v3394
    %v3447 = vrot.slane %v3395, 3
    %v3448 = vrot.slane %v3396, 3
    %v3449 = vsel %vm1490, %v3447, %v3448
    %v3450 = vrot.slane %v3397, 3
    %v3451 = vrot.slane %v3398, 3
    %v3452 = vsel %vm1490, %v3450, %v3451
    %v3453 = vrot.slane %v3399, 3
    %v3454 = vrot.slane %v3400, 3
    %v3455 = vsel %vm1490, %v3453, %v3454
    %v3456 = vrot.slane %v3401, 3
    %v3457 = vrot.slane %v3402, 3
    %v3458 = vsel %vm1490, %v3456, %v3457
    %v3459 = vrot.slane %v3403, 3
    %v3460 = vrot.slane %v3404, 3
    %v3461 = vsel %vm1490, %v3459, %v3460
    %v3462 = vrot.slane %v3405, 3
    %v3463 = vrot.slane %v3406, 3
    %v3464 = vsel %vm1490, %v3462, %v3463
    %v3465 = vrot.slane %v3407, 3
    %v3466 = vrot.slane %v3408, 3
    %v3467 = vsel %vm1490, %v3465, %v3466
    %v3468 = vrot.slane %v3409, 3
    %v3469 = vrot.slane %v3410, 3
    %v3470 = vsel %vm1490, %v3468, %v3469
    %v3471 = vrot.slane %v3411, 3
    %v3472 = vrot.slane %v3412, 3
    %v3473 = vsel %vm1490, %v3471, %v3472
    %v3474 = vrot.slane %v3413, 3
    %v3475 = vrot.slane %v3414, 3
    %v3476 = vsel %vm1490, %v3474, %v3475
    %v3477 = vrot.slane %v3415, 3
    %v3478 = vrot.slane %v3416, 3
    %v3479 = vsel %vm1490, %v3477, %v3478
    %v3480 = vrot.slane %v3417, 3
    %v3481 = vrot.slane %v3418, 3
    %v3482 = vsel %vm1490, %v3480, %v3481
    %v3483 = vrot.slane %v3419, 3
    %v3484 = vrot.slane %v3420, 3
    %v3485 = vsel %vm1490, %v3483, %v3484
    %v3512 = vadd.f32 %v2932, %v3449
    %v3513 = vadd.f32 %v2933, %v3448
    %v3514 = vadd.f32 %v2934, %v3452
    %v3515 = vadd.f32 %v2935, %v3451
    %v3516 = vadd.f32 %v2936, %v3455
    %v3517 = vadd.f32 %v2937, %v3454
    %v3518 = vadd.f32 %v2938, %v3458
    %v3519 = vadd.f32 %v2939, %v3457
    %v3520 = vadd.f32 %v2940, %v3461
    %v3521 = vadd.f32 %v2941, %v3460
    %v3522 = vadd.f32 %v2942, %v3464
    %v3523 = vadd.f32 %v2943, %v3463
    %v3524 = vadd.f32 %v2944, %v3467
    %v3525 = vadd.f32 %v2945, %v3466
    %v3526 = vadd.f32 %v2946, %v3470
    %v3527 = vadd.f32 %v2947, %v3469
    %v3528 = vadd.f32 %v2948, %v3473
    %v3529 = vadd.f32 %v2949, %v3472
    %v3530 = vadd.f32 %v2950, %v3476
    %v3531 = vadd.f32 %v2951, %v3475
    %v3532 = vadd.f32 %v2952, %v3479
    %v3533 = vadd.f32 %v2953, %v3478
    %v3534 = vadd.f32 %v2954, %v3482
    %v3535 = vadd.f32 %v2955, %v3481
    %v3536 = vadd.f32 %v2956, %v3485
    %v3537 = vadd.f32 %v2957, %v3484
    %s3538 = sld [smem:[#allocation2 + $0x17]]
    %v3539 = vstv %s3538
    %v3540 = vmul.f32 %v28, %v3539
    %v3541 = vmul.f32 %v29, %v3539
    %v3542 = vmul.f32 %v30, %v3539
    %v3543 = vmul.f32 %v31, %v3539
    %v3544 = vmul.f32 %v32, %v3539
    %v3545 = vmul.f32 %v33, %v3539
    %v3546 = vmul.f32 %v34, %v3539
    %v3547 = vmul.f32 %v35, %v3539
    %v3548 = vmul.f32 %v36, %v3539
    %v3549 = vmul.f32 %v37, %v3539
    %v3550 = vmul.f32 %v38, %v3539
    %v3551 = vmul.f32 %v39, %v3539
    %v3552 = vmul.f32 %v40, %v3539
    %v3553 = vmul.f32 %v41, %v3539
    %v3554 = vmul.f32 %v42, %v3539
    %v3555 = vmul.f32 %v43, %v3539
    %v3556 = vmul.f32 %v44, %v3539
    %v3557 = vmul.f32 %v45, %v3539
    %v3558 = vmul.f32 %v46, %v3539
    %v3559 = vmul.f32 %v47, %v3539
    %v3560 = vmul.f32 %v48, %v3539
    %v3561 = vmul.f32 %v49, %v3539
    %v3562 = vmul.f32 %v50, %v3539
    %v3563 = vmul.f32 %v51, %v3539
    %v3564 = vmul.f32 %v52, %v3539
    %v3565 = vmul.f32 %v53, %v3539
    %v3592 = vrot.slane %v3540, 3
    %v3593 = vrot.slane %v3541, 3
    %v3594 = vsel %vm1490, %v3592, %v3593
    %v3595 = vrot.slane %v3542, 3
    %v3596 = vrot.slane %v3543, 3
    %v3597 = vsel %vm1490, %v3595, %v3596
    %v3598 = vrot.slane %v3544, 3
    %v3599 = vrot.slane %v3545, 3
    %v3600 = vsel %vm1490, %v3598, %v3599
    %v3601 = vrot.slane %v3546, 3
    %v3602 = vrot.slane %v3547, 3
    %v3603 = vsel %vm1490, %v3601, %v3602
    %v3604 = vrot.slane %v3548, 3
    %v3605 = vrot.slane %v3549, 3
    %v3606 = vsel %vm1490, %v3604, %v3605
    %v3607 = vrot.slane %v3550, 3
    %v3608 = vrot.slane %v3551, 3
    %v3609 = vsel %vm1490, %v3607, %v3608
    %v3610 = vrot.slane %v3552, 3
    %v3611 = vrot.slane %v3553, 3
    %v3612 = vsel %vm1490, %v3610, %v3611
    %v3613 = vrot.slane %v3554, 3
    %v3614 = vrot.slane %v3555, 3
    %v3615 = vsel %vm1490, %v3613, %v3614
    %v3616 = vrot.slane %v3556, 3
    %v3617 = vrot.slane %v3557, 3
    %v3618 = vsel %vm1490, %v3616, %v3617
    %v3619 = vrot.slane %v3558, 3
    %v3620 = vrot.slane %v3559, 3
    %v3621 = vsel %vm1490, %v3619, %v3620
    %v3622 = vrot.slane %v3560, 3
    %v3623 = vrot.slane %v3561, 3
    %v3624 = vsel %vm1490, %v3622, %v3623
    %v3625 = vrot.slane %v3562, 3
    %v3626 = vrot.slane %v3563, 3
    %v3627 = vsel %vm1490, %v3625, %v3626
    %v3628 = vrot.slane %v3564, 3
    %v3629 = vrot.slane %v3565, 3
    %v3630 = vsel %vm1490, %v3628, %v3629
    %v3657 = vadd.f32 %v3077, %v3594
    %v3658 = vadd.f32 %v3078, %v3593
    %v3659 = vadd.f32 %v3079, %v3597
    %v3660 = vadd.f32 %v3080, %v3596
    %v3661 = vadd.f32 %v3081, %v3600
    %v3662 = vadd.f32 %v3082, %v3599
    %v3663 = vadd.f32 %v3083, %v3603
    %v3664 = vadd.f32 %v3084, %v3602
    %v3665 = vadd.f32 %v3085, %v3606
    %v3666 = vadd.f32 %v3086, %v3605
    %v3667 = vadd.f32 %v3087, %v3609
    %v3668 = vadd.f32 %v3088, %v3608
    %v3669 = vadd.f32 %v3089, %v3612
    %v3670 = vadd.f32 %v3090, %v3611
    %v3671 = vadd.f32 %v3091, %v3615
    %v3672 = vadd.f32 %v3092, %v3614
    %v3673 = vadd.f32 %v3093, %v3618
    %v3674 = vadd.f32 %v3094, %v3617
    %v3675 = vadd.f32 %v3095, %v3621
    %v3676 = vadd.f32 %v3096, %v3620
    %v3677 = vadd.f32 %v3097, %v3624
    %v3678 = vadd.f32 %v3098, %v3623
    %v3679 = vadd.f32 %v3099, %v3627
    %v3680 = vadd.f32 %v3100, %v3626
    %v3681 = vadd.f32 %v3101, %v3630
    %v3682 = vadd.f32 %v3102, %v3629
    %s3683 = sld [smem:[#allocation2 + $0x27]]
    %v3684 = vstv %s3683
    %v3685 = vmul.f32 %v28, %v3684
    %v3686 = vmul.f32 %v29, %v3684
    %v3687 = vmul.f32 %v30, %v3684
    %v3688 = vmul.f32 %v31, %v3684
    %v3689 = vmul.f32 %v32, %v3684
    %v3690 = vmul.f32 %v33, %v3684
    %v3691 = vmul.f32 %v34, %v3684
    %v3692 = vmul.f32 %v35, %v3684
    %v3693 = vmul.f32 %v36, %v3684
    %v3694 = vmul.f32 %v37, %v3684
    %v3695 = vmul.f32 %v38, %v3684
    %v3696 = vmul.f32 %v39, %v3684
    %v3697 = vmul.f32 %v40, %v3684
    %v3698 = vmul.f32 %v41, %v3684
    %v3699 = vmul.f32 %v42, %v3684
    %v3700 = vmul.f32 %v43, %v3684
    %v3701 = vmul.f32 %v44, %v3684
    %v3702 = vmul.f32 %v45, %v3684
    %v3703 = vmul.f32 %v46, %v3684
    %v3704 = vmul.f32 %v47, %v3684
    %v3705 = vmul.f32 %v48, %v3684
    %v3706 = vmul.f32 %v49, %v3684
    %v3707 = vmul.f32 %v50, %v3684
    %v3708 = vmul.f32 %v51, %v3684
    %v3709 = vmul.f32 %v52, %v3684
    %v3710 = vmul.f32 %v53, %v3684
    %v3737 = vrot.slane %v3685, 3
    %v3738 = vrot.slane %v3686, 3
    %v3739 = vsel %vm1490, %v3737, %v3738
    %v3740 = vrot.slane %v3687, 3
    %v3741 = vrot.slane %v3688, 3
    %v3742 = vsel %vm1490, %v3740, %v3741
    %v3743 = vrot.slane %v3689, 3
    %v3744 = vrot.slane %v3690, 3
    %v3745 = vsel %vm1490, %v3743, %v3744
    %v3746 = vrot.slane %v3691, 3
    %v3747 = vrot.slane %v3692, 3
    %v3748 = vsel %vm1490, %v3746, %v3747
    %v3749 = vrot.slane %v3693, 3
    %v3750 = vrot.slane %v3694, 3
    %v3751 = vsel %vm1490, %v3749, %v3750
    %v3752 = vrot.slane %v3695, 3
    %v3753 = vrot.slane %v3696, 3
    %v3754 = vsel %vm1490, %v3752, %v3753
    %v3755 = vrot.slane %v3697, 3
    %v3756 = vrot.slane %v3698, 3
    %v3757 = vsel %vm1490, %v3755, %v3756
    %v3758 = vrot.slane %v3699, 3
    %v3759 = vrot.slane %v3700, 3
    %v3760 = vsel %vm1490, %v3758, %v3759
    %v3761 = vrot.slane %v3701, 3
    %v3762 = vrot.slane %v3702, 3
    %v3763 = vsel %vm1490, %v3761, %v3762
    %v3764 = vrot.slane %v3703, 3
    %v3765 = vrot.slane %v3704, 3
    %v3766 = vsel %vm1490, %v3764, %v3765
    %v3767 = vrot.slane %v3705, 3
    %v3768 = vrot.slane %v3706, 3
    %v3769 = vsel %vm1490, %v3767, %v3768
    %v3770 = vrot.slane %v3707, 3
    %v3771 = vrot.slane %v3708, 3
    %v3772 = vsel %vm1490, %v3770, %v3771
    %v3773 = vrot.slane %v3709, 3
    %v3774 = vrot.slane %v3710, 3
    %v3775 = vsel %vm1490, %v3773, %v3774
    %v3802 = vadd.f32 %v3222, %v3739
    %v3803 = vadd.f32 %v3223, %v3738
    %v3804 = vadd.f32 %v3224, %v3742
    %v3805 = vadd.f32 %v3225, %v3741
    %v3806 = vadd.f32 %v3226, %v3745
    %v3807 = vadd.f32 %v3227, %v3744
    %v3808 = vadd.f32 %v3228, %v3748
    %v3809 = vadd.f32 %v3229, %v3747
    %v3810 = vadd.f32 %v3230, %v3751
    %v3811 = vadd.f32 %v3231, %v3750
    %v3812 = vadd.f32 %v3232, %v3754
    %v3813 = vadd.f32 %v3233, %v3753
    %v3814 = vadd.f32 %v3234, %v3757
    %v3815 = vadd.f32 %v3235, %v3756
    %v3816 = vadd.f32 %v3236, %v3760
    %v3817 = vadd.f32 %v3237, %v3759
    %v3818 = vadd.f32 %v3238, %v3763
    %v3819 = vadd.f32 %v3239, %v3762
    %v3820 = vadd.f32 %v3240, %v3766
    %v3821 = vadd.f32 %v3241, %v3765
    %v3822 = vadd.f32 %v3242, %v3769
    %v3823 = vadd.f32 %v3243, %v3768
    %v3824 = vadd.f32 %v3244, %v3772
    %v3825 = vadd.f32 %v3245, %v3771
    %v3826 = vadd.f32 %v3246, %v3775
    %v3827 = vadd.f32 %v3247, %v3774
    %s3828 = sld [smem:[#allocation2 + $0x37]]
    %v3829 = vstv %s3828
    %v3830 = vmul.f32 %v28, %v3829
    %v3831 = vmul.f32 %v29, %v3829
    %v3832 = vmul.f32 %v30, %v3829
    %v3833 = vmul.f32 %v31, %v3829
    %v3834 = vmul.f32 %v32, %v3829
    %v3835 = vmul.f32 %v33, %v3829
    %v3836 = vmul.f32 %v34, %v3829
    %v3837 = vmul.f32 %v35, %v3829
    %v3838 = vmul.f32 %v36, %v3829
    %v3839 = vmul.f32 %v37, %v3829
    %v3840 = vmul.f32 %v38, %v3829
    %v3841 = vmul.f32 %v39, %v3829
    %v3842 = vmul.f32 %v40, %v3829
    %v3843 = vmul.f32 %v41, %v3829
    %v3844 = vmul.f32 %v42, %v3829
    %v3845 = vmul.f32 %v43, %v3829
    %v3846 = vmul.f32 %v44, %v3829
    %v3847 = vmul.f32 %v45, %v3829
    %v3848 = vmul.f32 %v46, %v3829
    %v3849 = vmul.f32 %v47, %v3829
    %v3850 = vmul.f32 %v48, %v3829
    %v3851 = vmul.f32 %v49, %v3829
    %v3852 = vmul.f32 %v50, %v3829
    %v3853 = vmul.f32 %v51, %v3829
    %v3854 = vmul.f32 %v52, %v3829
    %v3855 = vmul.f32 %v53, %v3829
    %v3882 = vrot.slane %v3830, 3
    %v3883 = vrot.slane %v3831, 3
    %v3884 = vsel %vm1490, %v3882, %v3883
    %v3885 = vrot.slane %v3832, 3
    %v3886 = vrot.slane %v3833, 3
    %v3887 = vsel %vm1490, %v3885, %v3886
    %v3888 = vrot.slane %v3834, 3
    %v3889 = vrot.slane %v3835, 3
    %v3890 = vsel %vm1490, %v3888, %v3889
    %v3891 = vrot.slane %v3836, 3
    %v3892 = vrot.slane %v3837, 3
    %v3893 = vsel %vm1490, %v3891, %v3892
    %v3894 = vrot.slane %v3838, 3
    %v3895 = vrot.slane %v3839, 3
    %v3896 = vsel %vm1490, %v3894, %v3895
    %v3897 = vrot.slane %v3840, 3
    %v3898 = vrot.slane %v3841, 3
    %v3899 = vsel %vm1490, %v3897, %v3898
    %v3900 = vrot.slane %v3842, 3
    %v3901 = vrot.slane %v3843, 3
    %v3902 = vsel %vm1490, %v3900, %v3901
    %v3903 = vrot.slane %v3844, 3
    %v3904 = vrot.slane %v3845, 3
    %v3905 = vsel %vm1490, %v3903, %v3904
    %v3906 = vrot.slane %v3846, 3
    %v3907 = vrot.slane %v3847, 3
    %v3908 = vsel %vm1490, %v3906, %v3907
    %v3909 = vrot.slane %v3848, 3
    %v3910 = vrot.slane %v3849, 3
    %v3911 = vsel %vm1490, %v3909, %v3910
    %v3912 = vrot.slane %v3850, 3
    %v3913 = vrot.slane %v3851, 3
    %v3914 = vsel %vm1490, %v3912, %v3913
    %v3915 = vrot.slane %v3852, 3
    %v3916 = vrot.slane %v3853, 3
    %v3917 = vsel %vm1490, %v3915, %v3916
    %v3918 = vrot.slane %v3854, 3
    %v3919 = vrot.slane %v3855, 3
    %v3920 = vsel %vm1490, %v3918, %v3919
    %v3947 = vadd.f32 %v3367, %v3884
    %v3948 = vadd.f32 %v3368, %v3883
    %v3949 = vadd.f32 %v3369, %v3887
    %v3950 = vadd.f32 %v3370, %v3886
    %v3951 = vadd.f32 %v3371, %v3890
    %v3952 = vadd.f32 %v3372, %v3889
    %v3953 = vadd.f32 %v3373, %v3893
    %v3954 = vadd.f32 %v3374, %v3892
    %v3955 = vadd.f32 %v3375, %v3896
    %v3956 = vadd.f32 %v3376, %v3895
    %v3957 = vadd.f32 %v3377, %v3899
    %v3958 = vadd.f32 %v3378, %v3898
    %v3959 = vadd.f32 %v3379, %v3902
    %v3960 = vadd.f32 %v3380, %v3901
    %v3961 = vadd.f32 %v3381, %v3905
    %v3962 = vadd.f32 %v3382, %v3904
    %v3963 = vadd.f32 %v3383, %v3908
    %v3964 = vadd.f32 %v3384, %v3907
    %v3965 = vadd.f32 %v3385, %v3911
    %v3966 = vadd.f32 %v3386, %v3910
    %v3967 = vadd.f32 %v3387, %v3914
    %v3968 = vadd.f32 %v3388, %v3913
    %v3969 = vadd.f32 %v3389, %v3917
    %v3970 = vadd.f32 %v3390, %v3916
    %v3971 = vadd.f32 %v3391, %v3920
    %v3972 = vadd.f32 %v3392, %v3919
    %s3973 = sld [smem:[#allocation2 + $0x8]]
    %v3974 = vstv %s3973
    %v3975 = vmul.f32 %v30, %v3974
    %v3976 = vmul.f32 %v31, %v3974
    %v3977 = vmul.f32 %v32, %v3974
    %v3978 = vmul.f32 %v33, %v3974
    %v3979 = vmul.f32 %v34, %v3974
    %v3980 = vmul.f32 %v35, %v3974
    %v3981 = vmul.f32 %v36, %v3974
    %v3982 = vmul.f32 %v37, %v3974
    %v3983 = vmul.f32 %v38, %v3974
    %v3984 = vmul.f32 %v39, %v3974
    %v3985 = vmul.f32 %v40, %v3974
    %v3986 = vmul.f32 %v41, %v3974
    %v3987 = vmul.f32 %v42, %v3974
    %v3988 = vmul.f32 %v43, %v3974
    %v3989 = vmul.f32 %v44, %v3974
    %v3990 = vmul.f32 %v45, %v3974
    %v3991 = vmul.f32 %v46, %v3974
    %v3992 = vmul.f32 %v47, %v3974
    %v3993 = vmul.f32 %v48, %v3974
    %v3994 = vmul.f32 %v49, %v3974
    %v3995 = vmul.f32 %v50, %v3974
    %v3996 = vmul.f32 %v51, %v3974
    %v3997 = vmul.f32 %v52, %v3974
    %v3998 = vmul.f32 %v53, %v3974
    %v3999 = vmul.f32 %v54, %v3974
    %v4000 = vmul.f32 %v55, %v3974
    %v4001 = vadd.f32 %v3512, %v3975
    %v4002 = vadd.f32 %v3513, %v3976
    %v4003 = vadd.f32 %v3514, %v3977
    %v4004 = vadd.f32 %v3515, %v3978
    %v4005 = vadd.f32 %v3516, %v3979
    %v4006 = vadd.f32 %v3517, %v3980
    %v4007 = vadd.f32 %v3518, %v3981
    %v4008 = vadd.f32 %v3519, %v3982
    %v4009 = vadd.f32 %v3520, %v3983
    %v4010 = vadd.f32 %v3521, %v3984
    %v4011 = vadd.f32 %v3522, %v3985
    %v4012 = vadd.f32 %v3523, %v3986
    %v4013 = vadd.f32 %v3524, %v3987
    %v4014 = vadd.f32 %v3525, %v3988
    %v4015 = vadd.f32 %v3526, %v3989
    %v4016 = vadd.f32 %v3527, %v3990
    %v4017 = vadd.f32 %v3528, %v3991
    %v4018 = vadd.f32 %v3529, %v3992
    %v4019 = vadd.f32 %v3530, %v3993
    %v4020 = vadd.f32 %v3531, %v3994
    %v4021 = vadd.f32 %v3532, %v3995
    %v4022 = vadd.f32 %v3533, %v3996
    %v4023 = vadd.f32 %v3534, %v3997
    %v4024 = vadd.f32 %v3535, %v3998
    %v4025 = vadd.f32 %v3536, %v3999
    %v4026 = vadd.f32 %v3537, %v4000
    %s4027 = sld [smem:[#allocation2 + $0x18]]
    %v4028 = vstv %s4027
    %v4029 = vmul.f32 %v30, %v4028
    %v4030 = vmul.f32 %v31, %v4028
    %v4031 = vmul.f32 %v32, %v4028
    %v4032 = vmul.f32 %v33, %v4028
    %v4033 = vmul.f32 %v34, %v4028
    %v4034 = vmul.f32 %v35, %v4028
    %v4035 = vmul.f32 %v36, %v4028
    %v4036 = vmul.f32 %v37, %v4028
    %v4037 = vmul.f32 %v38, %v4028
    %v4038 = vmul.f32 %v39, %v4028
    %v4039 = vmul.f32 %v40, %v4028
    %v4040 = vmul.f32 %v41, %v4028
    %v4041 = vmul.f32 %v42, %v4028
    %v4042 = vmul.f32 %v43, %v4028
    %v4043 = vmul.f32 %v44, %v4028
    %v4044 = vmul.f32 %v45, %v4028
    %v4045 = vmul.f32 %v46, %v4028
    %v4046 = vmul.f32 %v47, %v4028
    %v4047 = vmul.f32 %v48, %v4028
    %v4048 = vmul.f32 %v49, %v4028
    %v4049 = vmul.f32 %v50, %v4028
    %v4050 = vmul.f32 %v51, %v4028
    %v4051 = vmul.f32 %v52, %v4028
    %v4052 = vmul.f32 %v53, %v4028
    %v4053 = vmul.f32 %v54, %v4028
    %v4054 = vmul.f32 %v55, %v4028
    %v4055 = vadd.f32 %v3657, %v4029
    %v4056 = vadd.f32 %v3658, %v4030
    %v4057 = vadd.f32 %v3659, %v4031
    %v4058 = vadd.f32 %v3660, %v4032
    %v4059 = vadd.f32 %v3661, %v4033
    %v4060 = vadd.f32 %v3662, %v4034
    %v4061 = vadd.f32 %v3663, %v4035
    %v4062 = vadd.f32 %v3664, %v4036
    %v4063 = vadd.f32 %v3665, %v4037
    %v4064 = vadd.f32 %v3666, %v4038
    %v4065 = vadd.f32 %v3667, %v4039
    %v4066 = vadd.f32 %v3668, %v4040
    %v4067 = vadd.f32 %v3669, %v4041
    %v4068 = vadd.f32 %v3670, %v4042
    %v4069 = vadd.f32 %v3671, %v4043
    %v4070 = vadd.f32 %v3672, %v4044
    %v4071 = vadd.f32 %v3673, %v4045
    %v4072 = vadd.f32 %v3674, %v4046
    %v4073 = vadd.f32 %v3675, %v4047
    %v4074 = vadd.f32 %v3676, %v4048
    %v4075 = vadd.f32 %v3677, %v4049
    %v4076 = vadd.f32 %v3678, %v4050
    %v4077 = vadd.f32 %v3679, %v4051
    %v4078 = vadd.f32 %v3680, %v4052
    %v4079 = vadd.f32 %v3681, %v4053
    %v4080 = vadd.f32 %v3682, %v4054
    %s4081 = sld [smem:[#allocation2 + $0x28]]
    %v4082 = vstv %s4081
    %v4083 = vmul.f32 %v30, %v4082
    %v4084 = vmul.f32 %v31, %v4082
    %v4085 = vmul.f32 %v32, %v4082
    %v4086 = vmul.f32 %v33, %v4082
    %v4087 = vmul.f32 %v34, %v4082
    %v4088 = vmul.f32 %v35, %v4082
    %v4089 = vmul.f32 %v36, %v4082
    %v4090 = vmul.f32 %v37, %v4082
    %v4091 = vmul.f32 %v38, %v4082
    %v4092 = vmul.f32 %v39, %v4082
    %v4093 = vmul.f32 %v40, %v4082
    %v4094 = vmul.f32 %v41, %v4082
    %v4095 = vmul.f32 %v42, %v4082
    %v4096 = vmul.f32 %v43, %v4082
    %v4097 = vmul.f32 %v44, %v4082
    %v4098 = vmul.f32 %v45, %v4082
    %v4099 = vmul.f32 %v46, %v4082
    %v4100 = vmul.f32 %v47, %v4082
    %v4101 = vmul.f32 %v48, %v4082
    %v4102 = vmul.f32 %v49, %v4082
    %v4103 = vmul.f32 %v50, %v4082
    %v4104 = vmul.f32 %v51, %v4082
    %v4105 = vmul.f32 %v52, %v4082
    %v4106 = vmul.f32 %v53, %v4082
    %v4107 = vmul.f32 %v54, %v4082
    %v4108 = vmul.f32 %v55, %v4082
    %v4109 = vadd.f32 %v3802, %v4083
    %v4110 = vadd.f32 %v3803, %v4084
    %v4111 = vadd.f32 %v3804, %v4085
    %v4112 = vadd.f32 %v3805, %v4086
    %v4113 = vadd.f32 %v3806, %v4087
    %v4114 = vadd.f32 %v3807, %v4088
    %v4115 = vadd.f32 %v3808, %v4089
    %v4116 = vadd.f32 %v3809, %v4090
    %v4117 = vadd.f32 %v3810, %v4091
    %v4118 = vadd.f32 %v3811, %v4092
    %v4119 = vadd.f32 %v3812, %v4093
    %v4120 = vadd.f32 %v3813, %v4094
    %v4121 = vadd.f32 %v3814, %v4095
    %v4122 = vadd.f32 %v3815, %v4096
    %v4123 = vadd.f32 %v3816, %v4097
    %v4124 = vadd.f32 %v3817, %v4098
    %v4125 = vadd.f32 %v3818, %v4099
    %v4126 = vadd.f32 %v3819, %v4100
    %v4127 = vadd.f32 %v3820, %v4101
    %v4128 = vadd.f32 %v3821, %v4102
    %v4129 = vadd.f32 %v3822, %v4103
    %v4130 = vadd.f32 %v3823, %v4104
    %v4131 = vadd.f32 %v3824, %v4105
    %v4132 = vadd.f32 %v3825, %v4106
    %v4133 = vadd.f32 %v3826, %v4107
    %v4134 = vadd.f32 %v3827, %v4108
    %s4135 = sld [smem:[#allocation2 + $0x38]]
    %v4136 = vstv %s4135
    %v4137 = vmul.f32 %v30, %v4136
    %v4138 = vmul.f32 %v31, %v4136
    %v4139 = vmul.f32 %v32, %v4136
    %v4140 = vmul.f32 %v33, %v4136
    %v4141 = vmul.f32 %v34, %v4136
    %v4142 = vmul.f32 %v35, %v4136
    %v4143 = vmul.f32 %v36, %v4136
    %v4144 = vmul.f32 %v37, %v4136
    %v4145 = vmul.f32 %v38, %v4136
    %v4146 = vmul.f32 %v39, %v4136
    %v4147 = vmul.f32 %v40, %v4136
    %v4148 = vmul.f32 %v41, %v4136
    %v4149 = vmul.f32 %v42, %v4136
    %v4150 = vmul.f32 %v43, %v4136
    %v4151 = vmul.f32 %v44, %v4136
    %v4152 = vmul.f32 %v45, %v4136
    %v4153 = vmul.f32 %v46, %v4136
    %v4154 = vmul.f32 %v47, %v4136
    %v4155 = vmul.f32 %v48, %v4136
    %v4156 = vmul.f32 %v49, %v4136
    %v4157 = vmul.f32 %v50, %v4136
    %v4158 = vmul.f32 %v51, %v4136
    %v4159 = vmul.f32 %v52, %v4136
    %v4160 = vmul.f32 %v53, %v4136
    %v4161 = vmul.f32 %v54, %v4136
    %v4162 = vmul.f32 %v55, %v4136
    %v4163 = vadd.f32 %v3947, %v4137
    %v4164 = vadd.f32 %v3948, %v4138
    %v4165 = vadd.f32 %v3949, %v4139
    %v4166 = vadd.f32 %v3950, %v4140
    %v4167 = vadd.f32 %v3951, %v4141
    %v4168 = vadd.f32 %v3952, %v4142
    %v4169 = vadd.f32 %v3953, %v4143
    %v4170 = vadd.f32 %v3954, %v4144
    %v4171 = vadd.f32 %v3955, %v4145
    %v4172 = vadd.f32 %v3956, %v4146
    %v4173 = vadd.f32 %v3957, %v4147
    %v4174 = vadd.f32 %v3958, %v4148
    %v4175 = vadd.f32 %v3959, %v4149
    %v4176 = vadd.f32 %v3960, %v4150
    %v4177 = vadd.f32 %v3961, %v4151
    %v4178 = vadd.f32 %v3962, %v4152
    %v4179 = vadd.f32 %v3963, %v4153
    %v4180 = vadd.f32 %v3964, %v4154
    %v4181 = vadd.f32 %v3965, %v4155
    %v4182 = vadd.f32 %v3966, %v4156
    %v4183 = vadd.f32 %v3967, %v4157
    %v4184 = vadd.f32 %v3968, %v4158
    %v4185 = vadd.f32 %v3969, %v4159
    %v4186 = vadd.f32 %v3970, %v4160
    %v4187 = vadd.f32 %v3971, %v4161
    %v4188 = vadd.f32 %v3972, %v4162
    %s4189 = sld [smem:[#allocation2 + $0x9]]
    %v4190 = vstv %s4189
    %v4191 = vmul.f32 %v30, %v4190
    %v4192 = vmul.f32 %v31, %v4190
    %v4193 = vmul.f32 %v32, %v4190
    %v4194 = vmul.f32 %v33, %v4190
    %v4195 = vmul.f32 %v34, %v4190
    %v4196 = vmul.f32 %v35, %v4190
    %v4197 = vmul.f32 %v36, %v4190
    %v4198 = vmul.f32 %v37, %v4190
    %v4199 = vmul.f32 %v38, %v4190
    %v4200 = vmul.f32 %v39, %v4190
    %v4201 = vmul.f32 %v40, %v4190
    %v4202 = vmul.f32 %v41, %v4190
    %v4203 = vmul.f32 %v42, %v4190
    %v4204 = vmul.f32 %v43, %v4190
    %v4205 = vmul.f32 %v44, %v4190
    %v4206 = vmul.f32 %v45, %v4190
    %v4207 = vmul.f32 %v46, %v4190
    %v4208 = vmul.f32 %v47, %v4190
    %v4209 = vmul.f32 %v48, %v4190
    %v4210 = vmul.f32 %v49, %v4190
    %v4211 = vmul.f32 %v50, %v4190
    %v4212 = vmul.f32 %v51, %v4190
    %v4213 = vmul.f32 %v52, %v4190
    %v4214 = vmul.f32 %v53, %v4190
    %v4215 = vmul.f32 %v54, %v4190
    %v4216 = vmul.f32 %v55, %v4190
    %v4243 = vrot.slane %v4191, 1
    %v4244 = vrot.slane %v4192, 1
    %v4245 = vsel %vm328, %v4243, %v4244
    %v4246 = vrot.slane %v4193, 1
    %v4247 = vrot.slane %v4194, 1
    %v4248 = vsel %vm328, %v4246, %v4247
    %v4249 = vrot.slane %v4195, 1
    %v4250 = vrot.slane %v4196, 1
    %v4251 = vsel %vm328, %v4249, %v4250
    %v4252 = vrot.slane %v4197, 1
    %v4253 = vrot.slane %v4198, 1
    %v4254 = vsel %vm328, %v4252, %v4253
    %v4255 = vrot.slane %v4199, 1
    %v4256 = vrot.slane %v4200, 1
    %v4257 = vsel %vm328, %v4255, %v4256
    %v4258 = vrot.slane %v4201, 1
    %v4259 = vrot.slane %v4202, 1
    %v4260 = vsel %vm328, %v4258, %v4259
    %v4261 = vrot.slane %v4203, 1
    %v4262 = vrot.slane %v4204, 1
    %v4263 = vsel %vm328, %v4261, %v4262
    %v4264 = vrot.slane %v4205, 1
    %v4265 = vrot.slane %v4206, 1
    %v4266 = vsel %vm328, %v4264, %v4265
    %v4267 = vrot.slane %v4207, 1
    %v4268 = vrot.slane %v4208, 1
    %v4269 = vsel %vm328, %v4267, %v4268
    %v4270 = vrot.slane %v4209, 1
    %v4271 = vrot.slane %v4210, 1
    %v4272 = vsel %vm328, %v4270, %v4271
    %v4273 = vrot.slane %v4211, 1
    %v4274 = vrot.slane %v4212, 1
    %v4275 = vsel %vm328, %v4273, %v4274
    %v4276 = vrot.slane %v4213, 1
    %v4277 = vrot.slane %v4214, 1
    %v4278 = vsel %vm328, %v4276, %v4277
    %v4279 = vrot.slane %v4215, 1
    %v4280 = vrot.slane %v4216, 1
    %v4281 = vsel %vm328, %v4279, %v4280
    %v4308 = vadd.f32 %v4001, %v4245
    %v4309 = vadd.f32 %v4002, %v4244
    %v4310 = vadd.f32 %v4003, %v4248
    %v4311 = vadd.f32 %v4004, %v4247
    %v4312 = vadd.f32 %v4005, %v4251
    %v4313 = vadd.f32 %v4006, %v4250
    %v4314 = vadd.f32 %v4007, %v4254
    %v4315 = vadd.f32 %v4008, %v4253
    %v4316 = vadd.f32 %v4009, %v4257
    %v4317 = vadd.f32 %v4010, %v4256
    %v4318 = vadd.f32 %v4011, %v4260
    %v4319 = vadd.f32 %v4012, %v4259
    %v4320 = vadd.f32 %v4013, %v4263
    %v4321 = vadd.f32 %v4014, %v4262
    %v4322 = vadd.f32 %v4015, %v4266
    %v4323 = vadd.f32 %v4016, %v4265
    %v4324 = vadd.f32 %v4017, %v4269
    %v4325 = vadd.f32 %v4018, %v4268
    %v4326 = vadd.f32 %v4019, %v4272
    %v4327 = vadd.f32 %v4020, %v4271
    %v4328 = vadd.f32 %v4021, %v4275
    %v4329 = vadd.f32 %v4022, %v4274
    %v4330 = vadd.f32 %v4023, %v4278
    %v4331 = vadd.f32 %v4024, %v4277
    %v4332 = vadd.f32 %v4025, %v4281
    %v4333 = vadd.f32 %v4026, %v4280
    %s4334 = sld [smem:[#allocation2 + $0x19]]
    %v4335 = vstv %s4334
    %v4336 = vmul.f32 %v30, %v4335
    %v4337 = vmul.f32 %v31, %v4335
    %v4338 = vmul.f32 %v32, %v4335
    %v4339 = vmul.f32 %v33, %v4335
    %v4340 = vmul.f32 %v34, %v4335
    %v4341 = vmul.f32 %v35, %v4335
    %v4342 = vmul.f32 %v36, %v4335
    %v4343 = vmul.f32 %v37, %v4335
    %v4344 = vmul.f32 %v38, %v4335
    %v4345 = vmul.f32 %v39, %v4335
    %v4346 = vmul.f32 %v40, %v4335
    %v4347 = vmul.f32 %v41, %v4335
    %v4348 = vmul.f32 %v42, %v4335
    %v4349 = vmul.f32 %v43, %v4335
    %v4350 = vmul.f32 %v44, %v4335
    %v4351 = vmul.f32 %v45, %v4335
    %v4352 = vmul.f32 %v46, %v4335
    %v4353 = vmul.f32 %v47, %v4335
    %v4354 = vmul.f32 %v48, %v4335
    %v4355 = vmul.f32 %v49, %v4335
    %v4356 = vmul.f32 %v50, %v4335
    %v4357 = vmul.f32 %v51, %v4335
    %v4358 = vmul.f32 %v52, %v4335
    %v4359 = vmul.f32 %v53, %v4335
    %v4360 = vmul.f32 %v54, %v4335
    %v4361 = vmul.f32 %v55, %v4335
    %v4388 = vrot.slane %v4336, 1
    %v4389 = vrot.slane %v4337, 1
    %v4390 = vsel %vm328, %v4388, %v4389
    %v4391 = vrot.slane %v4338, 1
    %v4392 = vrot.slane %v4339, 1
    %v4393 = vsel %vm328, %v4391, %v4392
    %v4394 = vrot.slane %v4340, 1
    %v4395 = vrot.slane %v4341, 1
    %v4396 = vsel %vm328, %v4394, %v4395
    %v4397 = vrot.slane %v4342, 1
    %v4398 = vrot.slane %v4343, 1
    %v4399 = vsel %vm328, %v4397, %v4398
    %v4400 = vrot.slane %v4344, 1
    %v4401 = vrot.slane %v4345, 1
    %v4402 = vsel %vm328, %v4400, %v4401
    %v4403 = vrot.slane %v4346, 1
    %v4404 = vrot.slane %v4347, 1
    %v4405 = vsel %vm328, %v4403, %v4404
    %v4406 = vrot.slane %v4348, 1
    %v4407 = vrot.slane %v4349, 1
    %v4408 = vsel %vm328, %v4406, %v4407
    %v4409 = vrot.slane %v4350, 1
    %v4410 = vrot.slane %v4351, 1
    %v4411 = vsel %vm328, %v4409, %v4410
    %v4412 = vrot.slane %v4352, 1
    %v4413 = vrot.slane %v4353, 1
    %v4414 = vsel %vm328, %v4412, %v4413
    %v4415 = vrot.slane %v4354, 1
    %v4416 = vrot.slane %v4355, 1
    %v4417 = vsel %vm328, %v4415, %v4416
    %v4418 = vrot.slane %v4356, 1
    %v4419 = vrot.slane %v4357, 1
    %v4420 = vsel %vm328, %v4418, %v4419
    %v4421 = vrot.slane %v4358, 1
    %v4422 = vrot.slane %v4359, 1
    %v4423 = vsel %vm328, %v4421, %v4422
    %v4424 = vrot.slane %v4360, 1
    %v4425 = vrot.slane %v4361, 1
    %v4426 = vsel %vm328, %v4424, %v4425
    %v4453 = vadd.f32 %v4055, %v4390
    %v4454 = vadd.f32 %v4056, %v4389
    %v4455 = vadd.f32 %v4057, %v4393
    %v4456 = vadd.f32 %v4058, %v4392
    %v4457 = vadd.f32 %v4059, %v4396
    %v4458 = vadd.f32 %v4060, %v4395
    %v4459 = vadd.f32 %v4061, %v4399
    %v4460 = vadd.f32 %v4062, %v4398
    %v4461 = vadd.f32 %v4063, %v4402
    %v4462 = vadd.f32 %v4064, %v4401
    %v4463 = vadd.f32 %v4065, %v4405
    %v4464 = vadd.f32 %v4066, %v4404
    %v4465 = vadd.f32 %v4067, %v4408
    %v4466 = vadd.f32 %v4068, %v4407
    %v4467 = vadd.f32 %v4069, %v4411
    %v4468 = vadd.f32 %v4070, %v4410
    %v4469 = vadd.f32 %v4071, %v4414
    %v4470 = vadd.f32 %v4072, %v4413
    %v4471 = vadd.f32 %v4073, %v4417
    %v4472 = vadd.f32 %v4074, %v4416
    %v4473 = vadd.f32 %v4075, %v4420
    %v4474 = vadd.f32 %v4076, %v4419
    %v4475 = vadd.f32 %v4077, %v4423
    %v4476 = vadd.f32 %v4078, %v4422
    %v4477 = vadd.f32 %v4079, %v4426
    %v4478 = vadd.f32 %v4080, %v4425
    %s4479 = sld [smem:[#allocation2 + $0x29]]
    %v4480 = vstv %s4479
    %v4481 = vmul.f32 %v30, %v4480
    %v4482 = vmul.f32 %v31, %v4480
    %v4483 = vmul.f32 %v32, %v4480
    %v4484 = vmul.f32 %v33, %v4480
    %v4485 = vmul.f32 %v34, %v4480
    %v4486 = vmul.f32 %v35, %v4480
    %v4487 = vmul.f32 %v36, %v4480
    %v4488 = vmul.f32 %v37, %v4480
    %v4489 = vmul.f32 %v38, %v4480
    %v4490 = vmul.f32 %v39, %v4480
    %v4491 = vmul.f32 %v40, %v4480
    %v4492 = vmul.f32 %v41, %v4480
    %v4493 = vmul.f32 %v42, %v4480
    %v4494 = vmul.f32 %v43, %v4480
    %v4495 = vmul.f32 %v44, %v4480
    %v4496 = vmul.f32 %v45, %v4480
    %v4497 = vmul.f32 %v46, %v4480
    %v4498 = vmul.f32 %v47, %v4480
    %v4499 = vmul.f32 %v48, %v4480
    %v4500 = vmul.f32 %v49, %v4480
    %v4501 = vmul.f32 %v50, %v4480
    %v4502 = vmul.f32 %v51, %v4480
    %v4503 = vmul.f32 %v52, %v4480
    %v4504 = vmul.f32 %v53, %v4480
    %v4505 = vmul.f32 %v54, %v4480
    %v4506 = vmul.f32 %v55, %v4480
    %v4533 = vrot.slane %v4481, 1
    %v4534 = vrot.slane %v4482, 1
    %v4535 = vsel %vm328, %v4533, %v4534
    %v4536 = vrot.slane %v4483, 1
    %v4537 = vrot.slane %v4484, 1
    %v4538 = vsel %vm328, %v4536, %v4537
    %v4539 = vrot.slane %v4485, 1
    %v4540 = vrot.slane %v4486, 1
    %v4541 = vsel %vm328, %v4539, %v4540
    %v4542 = vrot.slane %v4487, 1
    %v4543 = vrot.slane %v4488, 1
    %v4544 = vsel %vm328, %v4542, %v4543
    %v4545 = vrot.slane %v4489, 1
    %v4546 = vrot.slane %v4490, 1
    %v4547 = vsel %vm328, %v4545, %v4546
    %v4548 = vrot.slane %v4491, 1
    %v4549 = vrot.slane %v4492, 1
    %v4550 = vsel %vm328, %v4548, %v4549
    %v4551 = vrot.slane %v4493, 1
    %v4552 = vrot.slane %v4494, 1
    %v4553 = vsel %vm328, %v4551, %v4552
    %v4554 = vrot.slane %v4495, 1
    %v4555 = vrot.slane %v4496, 1
    %v4556 = vsel %vm328, %v4554, %v4555
    %v4557 = vrot.slane %v4497, 1
    %v4558 = vrot.slane %v4498, 1
    %v4559 = vsel %vm328, %v4557, %v4558
    %v4560 = vrot.slane %v4499, 1
    %v4561 = vrot.slane %v4500, 1
    %v4562 = vsel %vm328, %v4560, %v4561
    %v4563 = vrot.slane %v4501, 1
    %v4564 = vrot.slane %v4502, 1
    %v4565 = vsel %vm328, %v4563, %v4564
    %v4566 = vrot.slane %v4503, 1
    %v4567 = vrot.slane %v4504, 1
    %v4568 = vsel %vm328, %v4566, %v4567
    %v4569 = vrot.slane %v4505, 1
    %v4570 = vrot.slane %v4506, 1
    %v4571 = vsel %vm328, %v4569, %v4570
    %v4598 = vadd.f32 %v4109, %v4535
    %v4599 = vadd.f32 %v4110, %v4534
    %v4600 = vadd.f32 %v4111, %v4538
    %v4601 = vadd.f32 %v4112, %v4537
    %v4602 = vadd.f32 %v4113, %v4541
    %v4603 = vadd.f32 %v4114, %v4540
    %v4604 = vadd.f32 %v4115, %v4544
    %v4605 = vadd.f32 %v4116, %v4543
    %v4606 = vadd.f32 %v4117, %v4547
    %v4607 = vadd.f32 %v4118, %v4546
    %v4608 = vadd.f32 %v4119, %v4550
    %v4609 = vadd.f32 %v4120, %v4549
    %v4610 = vadd.f32 %v4121, %v4553
    %v4611 = vadd.f32 %v4122, %v4552
    %v4612 = vadd.f32 %v4123, %v4556
    %v4613 = vadd.f32 %v4124, %v4555
    %v4614 = vadd.f32 %v4125, %v4559
    %v4615 = vadd.f32 %v4126, %v4558
    %v4616 = vadd.f32 %v4127, %v4562
    %v4617 = vadd.f32 %v4128, %v4561
    %v4618 = vadd.f32 %v4129, %v4565
    %v4619 = vadd.f32 %v4130, %v4564
    %v4620 = vadd.f32 %v4131, %v4568
    %v4621 = vadd.f32 %v4132, %v4567
    %v4622 = vadd.f32 %v4133, %v4571
    %v4623 = vadd.f32 %v4134, %v4570
    %s4624 = sld [smem:[#allocation2 + $0x39]]
    %v4625 = vstv %s4624
    %v4626 = vmul.f32 %v30, %v4625
    %v4627 = vmul.f32 %v31, %v4625
    %v4628 = vmul.f32 %v32, %v4625
    %v4629 = vmul.f32 %v33, %v4625
    %v4630 = vmul.f32 %v34, %v4625
    %v4631 = vmul.f32 %v35, %v4625
    %v4632 = vmul.f32 %v36, %v4625
    %v4633 = vmul.f32 %v37, %v4625
    %v4634 = vmul.f32 %v38, %v4625
    %v4635 = vmul.f32 %v39, %v4625
    %v4636 = vmul.f32 %v40, %v4625
    %v4637 = vmul.f32 %v41, %v4625
    %v4638 = vmul.f32 %v42, %v4625
    %v4639 = vmul.f32 %v43, %v4625
    %v4640 = vmul.f32 %v44, %v4625
    %v4641 = vmul.f32 %v45, %v4625
    %v4642 = vmul.f32 %v46, %v4625
    %v4643 = vmul.f32 %v47, %v4625
    %v4644 = vmul.f32 %v48, %v4625
    %v4645 = vmul.f32 %v49, %v4625
    %v4646 = vmul.f32 %v50, %v4625
    %v4647 = vmul.f32 %v51, %v4625
    %v4648 = vmul.f32 %v52, %v4625
    %v4649 = vmul.f32 %v53, %v4625
    %v4650 = vmul.f32 %v54, %v4625
    %v4651 = vmul.f32 %v55, %v4625
    %v4678 = vrot.slane %v4626, 1
    %v4679 = vrot.slane %v4627, 1
    %v4680 = vsel %vm328, %v4678, %v4679
    %v4681 = vrot.slane %v4628, 1
    %v4682 = vrot.slane %v4629, 1
    %v4683 = vsel %vm328, %v4681, %v4682
    %v4684 = vrot.slane %v4630, 1
    %v4685 = vrot.slane %v4631, 1
    %v4686 = vsel %vm328, %v4684, %v4685
    %v4687 = vrot.slane %v4632, 1
    %v4688 = vrot.slane %v4633, 1
    %v4689 = vsel %vm328, %v4687, %v4688
    %v4690 = vrot.slane %v4634, 1
    %v4691 = vrot.slane %v4635, 1
    %v4692 = vsel %vm328, %v4690, %v4691
    %v4693 = vrot.slane %v4636, 1
    %v4694 = vrot.slane %v4637, 1
    %v4695 = vsel %vm328, %v4693, %v4694
    %v4696 = vrot.slane %v4638, 1
    %v4697 = vrot.slane %v4639, 1
    %v4698 = vsel %vm328, %v4696, %v4697
    %v4699 = vrot.slane %v4640, 1
    %v4700 = vrot.slane %v4641, 1
    %v4701 = vsel %vm328, %v4699, %v4700
    %v4702 = vrot.slane %v4642, 1
    %v4703 = vrot.slane %v4643, 1
    %v4704 = vsel %vm328, %v4702, %v4703
    %v4705 = vrot.slane %v4644, 1
    %v4706 = vrot.slane %v4645, 1
    %v4707 = vsel %vm328, %v4705, %v4706
    %v4708 = vrot.slane %v4646, 1
    %v4709 = vrot.slane %v4647, 1
    %v4710 = vsel %vm328, %v4708, %v4709
    %v4711 = vrot.slane %v4648, 1
    %v4712 = vrot.slane %v4649, 1
    %v4713 = vsel %vm328, %v4711, %v4712
    %v4714 = vrot.slane %v4650, 1
    %v4715 = vrot.slane %v4651, 1
    %v4716 = vsel %vm328, %v4714, %v4715
    %v4743 = vadd.f32 %v4163, %v4680
    %v4744 = vadd.f32 %v4164, %v4679
    %v4745 = vadd.f32 %v4165, %v4683
    %v4746 = vadd.f32 %v4166, %v4682
    %v4747 = vadd.f32 %v4167, %v4686
    %v4748 = vadd.f32 %v4168, %v4685
    %v4749 = vadd.f32 %v4169, %v4689
    %v4750 = vadd.f32 %v4170, %v4688
    %v4751 = vadd.f32 %v4171, %v4692
    %v4752 = vadd.f32 %v4172, %v4691
    %v4753 = vadd.f32 %v4173, %v4695
    %v4754 = vadd.f32 %v4174, %v4694
    %v4755 = vadd.f32 %v4175, %v4698
    %v4756 = vadd.f32 %v4176, %v4697
    %v4757 = vadd.f32 %v4177, %v4701
    %v4758 = vadd.f32 %v4178, %v4700
    %v4759 = vadd.f32 %v4179, %v4704
    %v4760 = vadd.f32 %v4180, %v4703
    %v4761 = vadd.f32 %v4181, %v4707
    %v4762 = vadd.f32 %v4182, %v4706
    %v4763 = vadd.f32 %v4183, %v4710
    %v4764 = vadd.f32 %v4184, %v4709
    %v4765 = vadd.f32 %v4185, %v4713
    %v4766 = vadd.f32 %v4186, %v4712
    %v4767 = vadd.f32 %v4187, %v4716
    %v4768 = vadd.f32 %v4188, %v4715
    %s4769 = sld [smem:[#allocation2 + $0xa]]
    %v4770 = vstv %s4769
    %v4771 = vmul.f32 %v30, %v4770
    %v4772 = vmul.f32 %v31, %v4770
    %v4773 = vmul.f32 %v32, %v4770
    %v4774 = vmul.f32 %v33, %v4770
    %v4775 = vmul.f32 %v34, %v4770
    %v4776 = vmul.f32 %v35, %v4770
    %v4777 = vmul.f32 %v36, %v4770
    %v4778 = vmul.f32 %v37, %v4770
    %v4779 = vmul.f32 %v38, %v4770
    %v4780 = vmul.f32 %v39, %v4770
    %v4781 = vmul.f32 %v40, %v4770
    %v4782 = vmul.f32 %v41, %v4770
    %v4783 = vmul.f32 %v42, %v4770
    %v4784 = vmul.f32 %v43, %v4770
    %v4785 = vmul.f32 %v44, %v4770
    %v4786 = vmul.f32 %v45, %v4770
    %v4787 = vmul.f32 %v46, %v4770
    %v4788 = vmul.f32 %v47, %v4770
    %v4789 = vmul.f32 %v48, %v4770
    %v4790 = vmul.f32 %v49, %v4770
    %v4791 = vmul.f32 %v50, %v4770
    %v4792 = vmul.f32 %v51, %v4770
    %v4793 = vmul.f32 %v52, %v4770
    %v4794 = vmul.f32 %v53, %v4770
    %v4795 = vmul.f32 %v54, %v4770
    %v4796 = vmul.f32 %v55, %v4770
    %v4823 = vrot.slane %v4771, 2
    %v4824 = vrot.slane %v4772, 2
    %v4825 = vsel %vm909, %v4823, %v4824
    %v4826 = vrot.slane %v4773, 2
    %v4827 = vrot.slane %v4774, 2
    %v4828 = vsel %vm909, %v4826, %v4827
    %v4829 = vrot.slane %v4775, 2
    %v4830 = vrot.slane %v4776, 2
    %v4831 = vsel %vm909, %v4829, %v4830
    %v4832 = vrot.slane %v4777, 2
    %v4833 = vrot.slane %v4778, 2
    %v4834 = vsel %vm909, %v4832, %v4833
    %v4835 = vrot.slane %v4779, 2
    %v4836 = vrot.slane %v4780, 2
    %v4837 = vsel %vm909, %v4835, %v4836
    %v4838 = vrot.slane %v4781, 2
    %v4839 = vrot.slane %v4782, 2
    %v4840 = vsel %vm909, %v4838, %v4839
    %v4841 = vrot.slane %v4783, 2
    %v4842 = vrot.slane %v4784, 2
    %v4843 = vsel %vm909, %v4841, %v4842
    %v4844 = vrot.slane %v4785, 2
    %v4845 = vrot.slane %v4786, 2
    %v4846 = vsel %vm909, %v4844, %v4845
    %v4847 = vrot.slane %v4787, 2
    %v4848 = vrot.slane %v4788, 2
    %v4849 = vsel %vm909, %v4847, %v4848
    %v4850 = vrot.slane %v4789, 2
    %v4851 = vrot.slane %v4790, 2
    %v4852 = vsel %vm909, %v4850, %v4851
    %v4853 = vrot.slane %v4791, 2
    %v4854 = vrot.slane %v4792, 2
    %v4855 = vsel %vm909, %v4853, %v4854
    %v4856 = vrot.slane %v4793, 2
    %v4857 = vrot.slane %v4794, 2
    %v4858 = vsel %vm909, %v4856, %v4857
    %v4859 = vrot.slane %v4795, 2
    %v4860 = vrot.slane %v4796, 2
    %v4861 = vsel %vm909, %v4859, %v4860
    %v4888 = vadd.f32 %v4308, %v4825
    %v4889 = vadd.f32 %v4309, %v4824
    %v4890 = vadd.f32 %v4310, %v4828
    %v4891 = vadd.f32 %v4311, %v4827
    %v4892 = vadd.f32 %v4312, %v4831
    %v4893 = vadd.f32 %v4313, %v4830
    %v4894 = vadd.f32 %v4314, %v4834
    %v4895 = vadd.f32 %v4315, %v4833
    %v4896 = vadd.f32 %v4316, %v4837
    %v4897 = vadd.f32 %v4317, %v4836
    %v4898 = vadd.f32 %v4318, %v4840
    %v4899 = vadd.f32 %v4319, %v4839
    %v4900 = vadd.f32 %v4320, %v4843
    %v4901 = vadd.f32 %v4321, %v4842
    %v4902 = vadd.f32 %v4322, %v4846
    %v4903 = vadd.f32 %v4323, %v4845
    %v4904 = vadd.f32 %v4324, %v4849
    %v4905 = vadd.f32 %v4325, %v4848
    %v4906 = vadd.f32 %v4326, %v4852
    %v4907 = vadd.f32 %v4327, %v4851
    %v4908 = vadd.f32 %v4328, %v4855
    %v4909 = vadd.f32 %v4329, %v4854
    %v4910 = vadd.f32 %v4330, %v4858
    %v4911 = vadd.f32 %v4331, %v4857
    %v4912 = vadd.f32 %v4332, %v4861
    %v4913 = vadd.f32 %v4333, %v4860
    %s4914 = sld [smem:[#allocation2 + $0x1a]]
    %v4915 = vstv %s4914
    %v4916 = vmul.f32 %v30, %v4915
    %v4917 = vmul.f32 %v31, %v4915
    %v4918 = vmul.f32 %v32, %v4915
    %v4919 = vmul.f32 %v33, %v4915
    %v4920 = vmul.f32 %v34, %v4915
    %v4921 = vmul.f32 %v35, %v4915
    %v4922 = vmul.f32 %v36, %v4915
    %v4923 = vmul.f32 %v37, %v4915
    %v4924 = vmul.f32 %v38, %v4915
    %v4925 = vmul.f32 %v39, %v4915
    %v4926 = vmul.f32 %v40, %v4915
    %v4927 = vmul.f32 %v41, %v4915
    %v4928 = vmul.f32 %v42, %v4915
    %v4929 = vmul.f32 %v43, %v4915
    %v4930 = vmul.f32 %v44, %v4915
    %v4931 = vmul.f32 %v45, %v4915
    %v4932 = vmul.f32 %v46, %v4915
    %v4933 = vmul.f32 %v47, %v4915
    %v4934 = vmul.f32 %v48, %v4915
    %v4935 = vmul.f32 %v49, %v4915
    %v4936 = vmul.f32 %v50, %v4915
    %v4937 = vmul.f32 %v51, %v4915
    %v4938 = vmul.f32 %v52, %v4915
    %v4939 = vmul.f32 %v53, %v4915
    %v4940 = vmul.f32 %v54, %v4915
    %v4941 = vmul.f32 %v55, %v4915
    %v4968 = vrot.slane %v4916, 2
    %v4969 = vrot.slane %v4917, 2
    %v4970 = vsel %vm909, %v4968, %v4969
    %v4971 = vrot.slane %v4918, 2
    %v4972 = vrot.slane %v4919, 2
    %v4973 = vsel %vm909, %v4971, %v4972
    %v4974 = vrot.slane %v4920, 2
    %v4975 = vrot.slane %v4921, 2
    %v4976 = vsel %vm909, %v4974, %v4975
    %v4977 = vrot.slane %v4922, 2
    %v4978 = vrot.slane %v4923, 2
    %v4979 = vsel %vm909, %v4977, %v4978
    %v4980 = vrot.slane %v4924, 2
    %v4981 = vrot.slane %v4925, 2
    %v4982 = vsel %vm909, %v4980, %v4981
    %v4983 = vrot.slane %v4926, 2
    %v4984 = vrot.slane %v4927, 2
    %v4985 = vsel %vm909, %v4983, %v4984
    %v4986 = vrot.slane %v4928, 2
    %v4987 = vrot.slane %v4929, 2
    %v4988 = vsel %vm909, %v4986, %v4987
    %v4989 = vrot.slane %v4930, 2
    %v4990 = vrot.slane %v4931, 2
    %v4991 = vsel %vm909, %v4989, %v4990
    %v4992 = vrot.slane %v4932, 2
    %v4993 = vrot.slane %v4933, 2
    %v4994 = vsel %vm909, %v4992, %v4993
    %v4995 = vrot.slane %v4934, 2
    %v4996 = vrot.slane %v4935, 2
    %v4997 = vsel %vm909, %v4995, %v4996
    %v4998 = vrot.slane %v4936, 2
    %v4999 = vrot.slane %v4937, 2
    %v5000 = vsel %vm909, %v4998, %v4999
    %v5001 = vrot.slane %v4938, 2
    %v5002 = vrot.slane %v4939, 2
    %v5003 = vsel %vm909, %v5001, %v5002
    %v5004 = vrot.slane %v4940, 2
    %v5005 = vrot.slane %v4941, 2
    %v5006 = vsel %vm909, %v5004, %v5005
    %v5033 = vadd.f32 %v4453, %v4970
    %v5034 = vadd.f32 %v4454, %v4969
    %v5035 = vadd.f32 %v4455, %v4973
    %v5036 = vadd.f32 %v4456, %v4972
    %v5037 = vadd.f32 %v4457, %v4976
    %v5038 = vadd.f32 %v4458, %v4975
    %v5039 = vadd.f32 %v4459, %v4979
    %v5040 = vadd.f32 %v4460, %v4978
    %v5041 = vadd.f32 %v4461, %v4982
    %v5042 = vadd.f32 %v4462, %v4981
    %v5043 = vadd.f32 %v4463, %v4985
    %v5044 = vadd.f32 %v4464, %v4984
    %v5045 = vadd.f32 %v4465, %v4988
    %v5046 = vadd.f32 %v4466, %v4987
    %v5047 = vadd.f32 %v4467, %v4991
    %v5048 = vadd.f32 %v4468, %v4990
    %v5049 = vadd.f32 %v4469, %v4994
    %v5050 = vadd.f32 %v4470, %v4993
    %v5051 = vadd.f32 %v4471, %v4997
    %v5052 = vadd.f32 %v4472, %v4996
    %v5053 = vadd.f32 %v4473, %v5000
    %v5054 = vadd.f32 %v4474, %v4999
    %v5055 = vadd.f32 %v4475, %v5003
    %v5056 = vadd.f32 %v4476, %v5002
    %v5057 = vadd.f32 %v4477, %v5006
    %v5058 = vadd.f32 %v4478, %v5005
    %s5059 = sld [smem:[#allocation2 + $0x2a]]
    %v5060 = vstv %s5059
    %v5061 = vmul.f32 %v30, %v5060
    %v5062 = vmul.f32 %v31, %v5060
    %v5063 = vmul.f32 %v32, %v5060
    %v5064 = vmul.f32 %v33, %v5060
    %v5065 = vmul.f32 %v34, %v5060
    %v5066 = vmul.f32 %v35, %v5060
    %v5067 = vmul.f32 %v36, %v5060
    %v5068 = vmul.f32 %v37, %v5060
    %v5069 = vmul.f32 %v38, %v5060
    %v5070 = vmul.f32 %v39, %v5060
    %v5071 = vmul.f32 %v40, %v5060
    %v5072 = vmul.f32 %v41, %v5060
    %v5073 = vmul.f32 %v42, %v5060
    %v5074 = vmul.f32 %v43, %v5060
    %v5075 = vmul.f32 %v44, %v5060
    %v5076 = vmul.f32 %v45, %v5060
    %v5077 = vmul.f32 %v46, %v5060
    %v5078 = vmul.f32 %v47, %v5060
    %v5079 = vmul.f32 %v48, %v5060
    %v5080 = vmul.f32 %v49, %v5060
    %v5081 = vmul.f32 %v50, %v5060
    %v5082 = vmul.f32 %v51, %v5060
    %v5083 = vmul.f32 %v52, %v5060
    %v5084 = vmul.f32 %v53, %v5060
    %v5085 = vmul.f32 %v54, %v5060
    %v5086 = vmul.f32 %v55, %v5060
    %v5113 = vrot.slane %v5061, 2
    %v5114 = vrot.slane %v5062, 2
    %v5115 = vsel %vm909, %v5113, %v5114
    %v5116 = vrot.slane %v5063, 2
    %v5117 = vrot.slane %v5064, 2
    %v5118 = vsel %vm909, %v5116, %v5117
    %v5119 = vrot.slane %v5065, 2
    %v5120 = vrot.slane %v5066, 2
    %v5121 = vsel %vm909, %v5119, %v5120
    %v5122 = vrot.slane %v5067, 2
    %v5123 = vrot.slane %v5068, 2
    %v5124 = vsel %vm909, %v5122, %v5123
    %v5125 = vrot.slane %v5069, 2
    %v5126 = vrot.slane %v5070, 2
    %v5127 = vsel %vm909, %v5125, %v5126
    %v5128 = vrot.slane %v5071, 2
    %v5129 = vrot.slane %v5072, 2
    %v5130 = vsel %vm909, %v5128, %v5129
    %v5131 = vrot.slane %v5073, 2
    %v5132 = vrot.slane %v5074, 2
    %v5133 = vsel %vm909, %v5131, %v5132
    %v5134 = vrot.slane %v5075, 2
    %v5135 = vrot.slane %v5076, 2
    %v5136 = vsel %vm909, %v5134, %v5135
    %v5137 = vrot.slane %v5077, 2
    %v5138 = vrot.slane %v5078, 2
    %v5139 = vsel %vm909, %v5137, %v5138
    %v5140 = vrot.slane %v5079, 2
    %v5141 = vrot.slane %v5080, 2
    %v5142 = vsel %vm909, %v5140, %v5141
    %v5143 = vrot.slane %v5081, 2
    %v5144 = vrot.slane %v5082, 2
    %v5145 = vsel %vm909, %v5143, %v5144
    %v5146 = vrot.slane %v5083, 2
    %v5147 = vrot.slane %v5084, 2
    %v5148 = vsel %vm909, %v5146, %v5147
    %v5149 = vrot.slane %v5085, 2
    %v5150 = vrot.slane %v5086, 2
    %v5151 = vsel %vm909, %v5149, %v5150
    %v5178 = vadd.f32 %v4598, %v5115
    %v5179 = vadd.f32 %v4599, %v5114
    %v5180 = vadd.f32 %v4600, %v5118
    %v5181 = vadd.f32 %v4601, %v5117
    %v5182 = vadd.f32 %v4602, %v5121
    %v5183 = vadd.f32 %v4603, %v5120
    %v5184 = vadd.f32 %v4604, %v5124
    %v5185 = vadd.f32 %v4605, %v5123
    %v5186 = vadd.f32 %v4606, %v5127
    %v5187 = vadd.f32 %v4607, %v5126
    %v5188 = vadd.f32 %v4608, %v5130
    %v5189 = vadd.f32 %v4609, %v5129
    %v5190 = vadd.f32 %v4610, %v5133
    %v5191 = vadd.f32 %v4611, %v5132
    %v5192 = vadd.f32 %v4612, %v5136
    %v5193 = vadd.f32 %v4613, %v5135
    %v5194 = vadd.f32 %v4614, %v5139
    %v5195 = vadd.f32 %v4615, %v5138
    %v5196 = vadd.f32 %v4616, %v5142
    %v5197 = vadd.f32 %v4617, %v5141
    %v5198 = vadd.f32 %v4618, %v5145
    %v5199 = vadd.f32 %v4619, %v5144
    %v5200 = vadd.f32 %v4620, %v5148
    %v5201 = vadd.f32 %v4621, %v5147
    %v5202 = vadd.f32 %v4622, %v5151
    %v5203 = vadd.f32 %v4623, %v5150
    %s5204 = sld [smem:[#allocation2 + $0x3a]]
    %v5205 = vstv %s5204
    %v5206 = vmul.f32 %v30, %v5205
    %v5207 = vmul.f32 %v31, %v5205
    %v5208 = vmul.f32 %v32, %v5205
    %v5209 = vmul.f32 %v33, %v5205
    %v5210 = vmul.f32 %v34, %v5205
    %v5211 = vmul.f32 %v35, %v5205
    %v5212 = vmul.f32 %v36, %v5205
    %v5213 = vmul.f32 %v37, %v5205
    %v5214 = vmul.f32 %v38, %v5205
    %v5215 = vmul.f32 %v39, %v5205
    %v5216 = vmul.f32 %v40, %v5205
    %v5217 = vmul.f32 %v41, %v5205
    %v5218 = vmul.f32 %v42, %v5205
    %v5219 = vmul.f32 %v43, %v5205
    %v5220 = vmul.f32 %v44, %v5205
    %v5221 = vmul.f32 %v45, %v5205
    %v5222 = vmul.f32 %v46, %v5205
    %v5223 = vmul.f32 %v47, %v5205
    %v5224 = vmul.f32 %v48, %v5205
    %v5225 = vmul.f32 %v49, %v5205
    %v5226 = vmul.f32 %v50, %v5205
    %v5227 = vmul.f32 %v51, %v5205
    %v5228 = vmul.f32 %v52, %v5205
    %v5229 = vmul.f32 %v53, %v5205
    %v5230 = vmul.f32 %v54, %v5205
    %v5231 = vmul.f32 %v55, %v5205
    %v5258 = vrot.slane %v5206, 2
    %v5259 = vrot.slane %v5207, 2
    %v5260 = vsel %vm909, %v5258, %v5259
    %v5261 = vrot.slane %v5208, 2
    %v5262 = vrot.slane %v5209, 2
    %v5263 = vsel %vm909, %v5261, %v5262
    %v5264 = vrot.slane %v5210, 2
    %v5265 = vrot.slane %v5211, 2
    %v5266 = vsel %vm909, %v5264, %v5265
    %v5267 = vrot.slane %v5212, 2
    %v5268 = vrot.slane %v5213, 2
    %v5269 = vsel %vm909, %v5267, %v5268
    %v5270 = vrot.slane %v5214, 2
    %v5271 = vrot.slane %v5215, 2
    %v5272 = vsel %vm909, %v5270, %v5271
    %v5273 = vrot.slane %v5216, 2
    %v5274 = vrot.slane %v5217, 2
    %v5275 = vsel %vm909, %v5273, %v5274
    %v5276 = vrot.slane %v5218, 2
    %v5277 = vrot.slane %v5219, 2
    %v5278 = vsel %vm909, %v5276, %v5277
    %v5279 = vrot.slane %v5220, 2
    %v5280 = vrot.slane %v5221, 2
    %v5281 = vsel %vm909, %v5279, %v5280
    %v5282 = vrot.slane %v5222, 2
    %v5283 = vrot.slane %v5223, 2
    %v5284 = vsel %vm909, %v5282, %v5283
    %v5285 = vrot.slane %v5224, 2
    %v5286 = vrot.slane %v5225, 2
    %v5287 = vsel %vm909, %v5285, %v5286
    %v5288 = vrot.slane %v5226, 2
    %v5289 = vrot.slane %v5227, 2
    %v5290 = vsel %vm909, %v5288, %v5289
    %v5291 = vrot.slane %v5228, 2
    %v5292 = vrot.slane %v5229, 2
    %v5293 = vsel %vm909, %v5291, %v5292
    %v5294 = vrot.slane %v5230, 2
    %v5295 = vrot.slane %v5231, 2
    %v5296 = vsel %vm909, %v5294, %v5295
    %v5323 = vadd.f32 %v4743, %v5260
    %v5324 = vadd.f32 %v4744, %v5259
    %v5325 = vadd.f32 %v4745, %v5263
    %v5326 = vadd.f32 %v4746, %v5262
    %v5327 = vadd.f32 %v4747, %v5266
    %v5328 = vadd.f32 %v4748, %v5265
    %v5329 = vadd.f32 %v4749, %v5269
    %v5330 = vadd.f32 %v4750, %v5268
    %v5331 = vadd.f32 %v4751, %v5272
    %v5332 = vadd.f32 %v4752, %v5271
    %v5333 = vadd.f32 %v4753, %v5275
    %v5334 = vadd.f32 %v4754, %v5274
    %v5335 = vadd.f32 %v4755, %v5278
    %v5336 = vadd.f32 %v4756, %v5277
    %v5337 = vadd.f32 %v4757, %v5281
    %v5338 = vadd.f32 %v4758, %v5280
    %v5339 = vadd.f32 %v4759, %v5284
    %v5340 = vadd.f32 %v4760, %v5283
    %v5341 = vadd.f32 %v4761, %v5287
    %v5342 = vadd.f32 %v4762, %v5286
    %v5343 = vadd.f32 %v4763, %v5290
    %v5344 = vadd.f32 %v4764, %v5289
    %v5345 = vadd.f32 %v4765, %v5293
    %v5346 = vadd.f32 %v4766, %v5292
    %v5347 = vadd.f32 %v4767, %v5296
    %v5348 = vadd.f32 %v4768, %v5295
    %s5349 = sld [smem:[#allocation2 + $0xb]]
    %v5350 = vstv %s5349
    %v5351 = vmul.f32 %v30, %v5350
    %v5352 = vmul.f32 %v31, %v5350
    %v5353 = vmul.f32 %v32, %v5350
    %v5354 = vmul.f32 %v33, %v5350
    %v5355 = vmul.f32 %v34, %v5350
    %v5356 = vmul.f32 %v35, %v5350
    %v5357 = vmul.f32 %v36, %v5350
    %v5358 = vmul.f32 %v37, %v5350
    %v5359 = vmul.f32 %v38, %v5350
    %v5360 = vmul.f32 %v39, %v5350
    %v5361 = vmul.f32 %v40, %v5350
    %v5362 = vmul.f32 %v41, %v5350
    %v5363 = vmul.f32 %v42, %v5350
    %v5364 = vmul.f32 %v43, %v5350
    %v5365 = vmul.f32 %v44, %v5350
    %v5366 = vmul.f32 %v45, %v5350
    %v5367 = vmul.f32 %v46, %v5350
    %v5368 = vmul.f32 %v47, %v5350
    %v5369 = vmul.f32 %v48, %v5350
    %v5370 = vmul.f32 %v49, %v5350
    %v5371 = vmul.f32 %v50, %v5350
    %v5372 = vmul.f32 %v51, %v5350
    %v5373 = vmul.f32 %v52, %v5350
    %v5374 = vmul.f32 %v53, %v5350
    %v5375 = vmul.f32 %v54, %v5350
    %v5376 = vmul.f32 %v55, %v5350
    %v5403 = vrot.slane %v5351, 3
    %v5404 = vrot.slane %v5352, 3
    %v5405 = vsel %vm1490, %v5403, %v5404
    %v5406 = vrot.slane %v5353, 3
    %v5407 = vrot.slane %v5354, 3
    %v5408 = vsel %vm1490, %v5406, %v5407
    %v5409 = vrot.slane %v5355, 3
    %v5410 = vrot.slane %v5356, 3
    %v5411 = vsel %vm1490, %v5409, %v5410
    %v5412 = vrot.slane %v5357, 3
    %v5413 = vrot.slane %v5358, 3
    %v5414 = vsel %vm1490, %v5412, %v5413
    %v5415 = vrot.slane %v5359, 3
    %v5416 = vrot.slane %v5360, 3
    %v5417 = vsel %vm1490, %v5415, %v5416
    %v5418 = vrot.slane %v5361, 3
    %v5419 = vrot.slane %v5362, 3
    %v5420 = vsel %vm1490, %v5418, %v5419
    %v5421 = vrot.slane %v5363, 3
    %v5422 = vrot.slane %v5364, 3
    %v5423 = vsel %vm1490, %v5421, %v5422
    %v5424 = vrot.slane %v5365, 3
    %v5425 = vrot.slane %v5366, 3
    %v5426 = vsel %vm1490, %v5424, %v5425
    %v5427 = vrot.slane %v5367, 3
    %v5428 = vrot.slane %v5368, 3
    %v5429 = vsel %vm1490, %v5427, %v5428
    %v5430 = vrot.slane %v5369, 3
    %v5431 = vrot.slane %v5370, 3
    %v5432 = vsel %vm1490, %v5430, %v5431
    %v5433 = vrot.slane %v5371, 3
    %v5434 = vrot.slane %v5372, 3
    %v5435 = vsel %vm1490, %v5433, %v5434
    %v5436 = vrot.slane %v5373, 3
    %v5437 = vrot.slane %v5374, 3
    %v5438 = vsel %vm1490, %v5436, %v5437
    %v5439 = vrot.slane %v5375, 3
    %v5440 = vrot.slane %v5376, 3
    %v5441 = vsel %vm1490, %v5439, %v5440
    %v5468 = vadd.f32 %v4888, %v5405
    %v5469 = vadd.f32 %v4889, %v5404
    %v5470 = vadd.f32 %v4890, %v5408
    %v5471 = vadd.f32 %v4891, %v5407
    %v5472 = vadd.f32 %v4892, %v5411
    %v5473 = vadd.f32 %v4893, %v5410
    %v5474 = vadd.f32 %v4894, %v5414
    %v5475 = vadd.f32 %v4895, %v5413
    %v5476 = vadd.f32 %v4896, %v5417
    %v5477 = vadd.f32 %v4897, %v5416
    %v5478 = vadd.f32 %v4898, %v5420
    %v5479 = vadd.f32 %v4899, %v5419
    %v5480 = vadd.f32 %v4900, %v5423
    %v5481 = vadd.f32 %v4901, %v5422
    %v5482 = vadd.f32 %v4902, %v5426
    %v5483 = vadd.f32 %v4903, %v5425
    %v5484 = vadd.f32 %v4904, %v5429
    %v5485 = vadd.f32 %v4905, %v5428
    %v5486 = vadd.f32 %v4906, %v5432
    %v5487 = vadd.f32 %v4907, %v5431
    %v5488 = vadd.f32 %v4908, %v5435
    %v5489 = vadd.f32 %v4909, %v5434
    %v5490 = vadd.f32 %v4910, %v5438
    %v5491 = vadd.f32 %v4911, %v5437
    %v5492 = vadd.f32 %v4912, %v5441
    %v5493 = vadd.f32 %v4913, %v5440
    %s5494 = sld [smem:[#allocation2 + $0x1b]]
    %v5495 = vstv %s5494
    %v5496 = vmul.f32 %v30, %v5495
    %v5497 = vmul.f32 %v31, %v5495
    %v5498 = vmul.f32 %v32, %v5495
    %v5499 = vmul.f32 %v33, %v5495
    %v5500 = vmul.f32 %v34, %v5495
    %v5501 = vmul.f32 %v35, %v5495
    %v5502 = vmul.f32 %v36, %v5495
    %v5503 = vmul.f32 %v37, %v5495
    %v5504 = vmul.f32 %v38, %v5495
    %v5505 = vmul.f32 %v39, %v5495
    %v5506 = vmul.f32 %v40, %v5495
    %v5507 = vmul.f32 %v41, %v5495
    %v5508 = vmul.f32 %v42, %v5495
    %v5509 = vmul.f32 %v43, %v5495
    %v5510 = vmul.f32 %v44, %v5495
    %v5511 = vmul.f32 %v45, %v5495
    %v5512 = vmul.f32 %v46, %v5495
    %v5513 = vmul.f32 %v47, %v5495
    %v5514 = vmul.f32 %v48, %v5495
    %v5515 = vmul.f32 %v49, %v5495
    %v5516 = vmul.f32 %v50, %v5495
    %v5517 = vmul.f32 %v51, %v5495
    %v5518 = vmul.f32 %v52, %v5495
    %v5519 = vmul.f32 %v53, %v5495
    %v5520 = vmul.f32 %v54, %v5495
    %v5521 = vmul.f32 %v55, %v5495
    %v5548 = vrot.slane %v5496, 3
    %v5549 = vrot.slane %v5497, 3
    %v5550 = vsel %vm1490, %v5548, %v5549
    %v5551 = vrot.slane %v5498, 3
    %v5552 = vrot.slane %v5499, 3
    %v5553 = vsel %vm1490, %v5551, %v5552
    %v5554 = vrot.slane %v5500, 3
    %v5555 = vrot.slane %v5501, 3
    %v5556 = vsel %vm1490, %v5554, %v5555
    %v5557 = vrot.slane %v5502, 3
    %v5558 = vrot.slane %v5503, 3
    %v5559 = vsel %vm1490, %v5557, %v5558
    %v5560 = vrot.slane %v5504, 3
    %v5561 = vrot.slane %v5505, 3
    %v5562 = vsel %vm1490, %v5560, %v5561
    %v5563 = vrot.slane %v5506, 3
    %v5564 = vrot.slane %v5507, 3
    %v5565 = vsel %vm1490, %v5563, %v5564
    %v5566 = vrot.slane %v5508, 3
    %v5567 = vrot.slane %v5509, 3
    %v5568 = vsel %vm1490, %v5566, %v5567
    %v5569 = vrot.slane %v5510, 3
    %v5570 = vrot.slane %v5511, 3
    %v5571 = vsel %vm1490, %v5569, %v5570
    %v5572 = vrot.slane %v5512, 3
    %v5573 = vrot.slane %v5513, 3
    %v5574 = vsel %vm1490, %v5572, %v5573
    %v5575 = vrot.slane %v5514, 3
    %v5576 = vrot.slane %v5515, 3
    %v5577 = vsel %vm1490, %v5575, %v5576
    %v5578 = vrot.slane %v5516, 3
    %v5579 = vrot.slane %v5517, 3
    %v5580 = vsel %vm1490, %v5578, %v5579
    %v5581 = vrot.slane %v5518, 3
    %v5582 = vrot.slane %v5519, 3
    %v5583 = vsel %vm1490, %v5581, %v5582
    %v5584 = vrot.slane %v5520, 3
    %v5585 = vrot.slane %v5521, 3
    %v5586 = vsel %vm1490, %v5584, %v5585
    %v5613 = vadd.f32 %v5033, %v5550
    %v5614 = vadd.f32 %v5034, %v5549
    %v5615 = vadd.f32 %v5035, %v5553
    %v5616 = vadd.f32 %v5036, %v5552
    %v5617 = vadd.f32 %v5037, %v5556
    %v5618 = vadd.f32 %v5038, %v5555
    %v5619 = vadd.f32 %v5039, %v5559
    %v5620 = vadd.f32 %v5040, %v5558
    %v5621 = vadd.f32 %v5041, %v5562
    %v5622 = vadd.f32 %v5042, %v5561
    %v5623 = vadd.f32 %v5043, %v5565
    %v5624 = vadd.f32 %v5044, %v5564
    %v5625 = vadd.f32 %v5045, %v5568
    %v5626 = vadd.f32 %v5046, %v5567
    %v5627 = vadd.f32 %v5047, %v5571
    %v5628 = vadd.f32 %v5048, %v5570
    %v5629 = vadd.f32 %v5049, %v5574
    %v5630 = vadd.f32 %v5050, %v5573
    %v5631 = vadd.f32 %v5051, %v5577
    %v5632 = vadd.f32 %v5052, %v5576
    %v5633 = vadd.f32 %v5053, %v5580
    %v5634 = vadd.f32 %v5054, %v5579
    %v5635 = vadd.f32 %v5055, %v5583
    %v5636 = vadd.f32 %v5056, %v5582
    %v5637 = vadd.f32 %v5057, %v5586
    %v5638 = vadd.f32 %v5058, %v5585
    %s5639 = sld [smem:[#allocation2 + $0x2b]]
    %v5640 = vstv %s5639
    %v5641 = vmul.f32 %v30, %v5640
    %v5642 = vmul.f32 %v31, %v5640
    %v5643 = vmul.f32 %v32, %v5640
    %v5644 = vmul.f32 %v33, %v5640
    %v5645 = vmul.f32 %v34, %v5640
    %v5646 = vmul.f32 %v35, %v5640
    %v5647 = vmul.f32 %v36, %v5640
    %v5648 = vmul.f32 %v37, %v5640
    %v5649 = vmul.f32 %v38, %v5640
    %v5650 = vmul.f32 %v39, %v5640
    %v5651 = vmul.f32 %v40, %v5640
    %v5652 = vmul.f32 %v41, %v5640
    %v5653 = vmul.f32 %v42, %v5640
    %v5654 = vmul.f32 %v43, %v5640
    %v5655 = vmul.f32 %v44, %v5640
    %v5656 = vmul.f32 %v45, %v5640
    %v5657 = vmul.f32 %v46, %v5640
    %v5658 = vmul.f32 %v47, %v5640
    %v5659 = vmul.f32 %v48, %v5640
    %v5660 = vmul.f32 %v49, %v5640
    %v5661 = vmul.f32 %v50, %v5640
    %v5662 = vmul.f32 %v51, %v5640
    %v5663 = vmul.f32 %v52, %v5640
    %v5664 = vmul.f32 %v53, %v5640
    %v5665 = vmul.f32 %v54, %v5640
    %v5666 = vmul.f32 %v55, %v5640
    %v5693 = vrot.slane %v5641, 3
    %v5694 = vrot.slane %v5642, 3
    %v5695 = vsel %vm1490, %v5693, %v5694
    %v5696 = vrot.slane %v5643, 3
    %v5697 = vrot.slane %v5644, 3
    %v5698 = vsel %vm1490, %v5696, %v5697
    %v5699 = vrot.slane %v5645, 3
    %v5700 = vrot.slane %v5646, 3
    %v5701 = vsel %vm1490, %v5699, %v5700
    %v5702 = vrot.slane %v5647, 3
    %v5703 = vrot.slane %v5648, 3
    %v5704 = vsel %vm1490, %v5702, %v5703
    %v5705 = vrot.slane %v5649, 3
    %v5706 = vrot.slane %v5650, 3
    %v5707 = vsel %vm1490, %v5705, %v5706
    %v5708 = vrot.slane %v5651, 3
    %v5709 = vrot.slane %v5652, 3
    %v5710 = vsel %vm1490, %v5708, %v5709
    %v5711 = vrot.slane %v5653, 3
    %v5712 = vrot.slane %v5654, 3
    %v5713 = vsel %vm1490, %v5711, %v5712
    %v5714 = vrot.slane %v5655, 3
    %v5715 = vrot.slane %v5656, 3
    %v5716 = vsel %vm1490, %v5714, %v5715
    %v5717 = vrot.slane %v5657, 3
    %v5718 = vrot.slane %v5658, 3
    %v5719 = vsel %vm1490, %v5717, %v5718
    %v5720 = vrot.slane %v5659, 3
    %v5721 = vrot.slane %v5660, 3
    %v5722 = vsel %vm1490, %v5720, %v5721
    %v5723 = vrot.slane %v5661, 3
    %v5724 = vrot.slane %v5662, 3
    %v5725 = vsel %vm1490, %v5723, %v5724
    %v5726 = vrot.slane %v5663, 3
    %v5727 = vrot.slane %v5664, 3
    %v5728 = vsel %vm1490, %v5726, %v5727
    %v5729 = vrot.slane %v5665, 3
    %v5730 = vrot.slane %v5666, 3
    %v5731 = vsel %vm1490, %v5729, %v5730
    %v5758 = vadd.f32 %v5178, %v5695
    %v5759 = vadd.f32 %v5179, %v5694
    %v5760 = vadd.f32 %v5180, %v5698
    %v5761 = vadd.f32 %v5181, %v5697
    %v5762 = vadd.f32 %v5182, %v5701
    %v5763 = vadd.f32 %v5183, %v5700
    %v5764 = vadd.f32 %v5184, %v5704
    %v5765 = vadd.f32 %v5185, %v5703
    %v5766 = vadd.f32 %v5186, %v5707
    %v5767 = vadd.f32 %v5187, %v5706
    %v5768 = vadd.f32 %v5188, %v5710
    %v5769 = vadd.f32 %v5189, %v5709
    %v5770 = vadd.f32 %v5190, %v5713
    %v5771 = vadd.f32 %v5191, %v5712
    %v5772 = vadd.f32 %v5192, %v5716
    %v5773 = vadd.f32 %v5193, %v5715
    %v5774 = vadd.f32 %v5194, %v5719
    %v5775 = vadd.f32 %v5195, %v5718
    %v5776 = vadd.f32 %v5196, %v5722
    %v5777 = vadd.f32 %v5197, %v5721
    %v5778 = vadd.f32 %v5198, %v5725
    %v5779 = vadd.f32 %v5199, %v5724
    %v5780 = vadd.f32 %v5200, %v5728
    %v5781 = vadd.f32 %v5201, %v5727
    %v5782 = vadd.f32 %v5202, %v5731
    %v5783 = vadd.f32 %v5203, %v5730
    %s5784 = sld [smem:[#allocation2 + $0x3b]]
    %v5785 = vstv %s5784
    %v5786 = vmul.f32 %v30, %v5785
    %v5787 = vmul.f32 %v31, %v5785
    %v5788 = vmul.f32 %v32, %v5785
    %v5789 = vmul.f32 %v33, %v5785
    %v5790 = vmul.f32 %v34, %v5785
    %v5791 = vmul.f32 %v35, %v5785
    %v5792 = vmul.f32 %v36, %v5785
    %v5793 = vmul.f32 %v37, %v5785
    %v5794 = vmul.f32 %v38, %v5785
    %v5795 = vmul.f32 %v39, %v5785
    %v5796 = vmul.f32 %v40, %v5785
    %v5797 = vmul.f32 %v41, %v5785
    %v5798 = vmul.f32 %v42, %v5785
    %v5799 = vmul.f32 %v43, %v5785
    %v5800 = vmul.f32 %v44, %v5785
    %v5801 = vmul.f32 %v45, %v5785
    %v5802 = vmul.f32 %v46, %v5785
    %v5803 = vmul.f32 %v47, %v5785
    %v5804 = vmul.f32 %v48, %v5785
    %v5805 = vmul.f32 %v49, %v5785
    %v5806 = vmul.f32 %v50, %v5785
    %v5807 = vmul.f32 %v51, %v5785
    %v5808 = vmul.f32 %v52, %v5785
    %v5809 = vmul.f32 %v53, %v5785
    %v5810 = vmul.f32 %v54, %v5785
    %v5811 = vmul.f32 %v55, %v5785
    %v5838 = vrot.slane %v5786, 3
    %v5839 = vrot.slane %v5787, 3
    %v5840 = vsel %vm1490, %v5838, %v5839
    %v5841 = vrot.slane %v5788, 3
    %v5842 = vrot.slane %v5789, 3
    %v5843 = vsel %vm1490, %v5841, %v5842
    %v5844 = vrot.slane %v5790, 3
    %v5845 = vrot.slane %v5791, 3
    %v5846 = vsel %vm1490, %v5844, %v5845
    %v5847 = vrot.slane %v5792, 3
    %v5848 = vrot.slane %v5793, 3
    %v5849 = vsel %vm1490, %v5847, %v5848
    %v5850 = vrot.slane %v5794, 3
    %v5851 = vrot.slane %v5795, 3
    %v5852 = vsel %vm1490, %v5850, %v5851
    %v5853 = vrot.slane %v5796, 3
    %v5854 = vrot.slane %v5797, 3
    %v5855 = vsel %vm1490, %v5853, %v5854
    %v5856 = vrot.slane %v5798, 3
    %v5857 = vrot.slane %v5799, 3
    %v5858 = vsel %vm1490, %v5856, %v5857
    %v5859 = vrot.slane %v5800, 3
    %v5860 = vrot.slane %v5801, 3
    %v5861 = vsel %vm1490, %v5859, %v5860
    %v5862 = vrot.slane %v5802, 3
    %v5863 = vrot.slane %v5803, 3
    %v5864 = vsel %vm1490, %v5862, %v5863
    %v5865 = vrot.slane %v5804, 3
    %v5866 = vrot.slane %v5805, 3
    %v5867 = vsel %vm1490, %v5865, %v5866
    %v5868 = vrot.slane %v5806, 3
    %v5869 = vrot.slane %v5807, 3
    %v5870 = vsel %vm1490, %v5868, %v5869
    %v5871 = vrot.slane %v5808, 3
    %v5872 = vrot.slane %v5809, 3
    %v5873 = vsel %vm1490, %v5871, %v5872
    %v5874 = vrot.slane %v5810, 3
    %v5875 = vrot.slane %v5811, 3
    %v5876 = vsel %vm1490, %v5874, %v5875
    %v5903 = vadd.f32 %v5323, %v5840
    %v5904 = vadd.f32 %v5324, %v5839
    %v5905 = vadd.f32 %v5325, %v5843
    %v5906 = vadd.f32 %v5326, %v5842
    %v5907 = vadd.f32 %v5327, %v5846
    %v5908 = vadd.f32 %v5328, %v5845
    %v5909 = vadd.f32 %v5329, %v5849
    %v5910 = vadd.f32 %v5330, %v5848
    %v5911 = vadd.f32 %v5331, %v5852
    %v5912 = vadd.f32 %v5332, %v5851
    %v5913 = vadd.f32 %v5333, %v5855
    %v5914 = vadd.f32 %v5334, %v5854
    %v5915 = vadd.f32 %v5335, %v5858
    %v5916 = vadd.f32 %v5336, %v5857
    %v5917 = vadd.f32 %v5337, %v5861
    %v5918 = vadd.f32 %v5338, %v5860
    %v5919 = vadd.f32 %v5339, %v5864
    %v5920 = vadd.f32 %v5340, %v5863
    %v5921 = vadd.f32 %v5341, %v5867
    %v5922 = vadd.f32 %v5342, %v5866
    %v5923 = vadd.f32 %v5343, %v5870
    %v5924 = vadd.f32 %v5344, %v5869
    %v5925 = vadd.f32 %v5345, %v5873
    %v5926 = vadd.f32 %v5346, %v5872
    %v5927 = vadd.f32 %v5347, %v5876
    %v5928 = vadd.f32 %v5348, %v5875
    %s5929 = sld [smem:[#allocation2 + $0xc]]
    %v5930 = vstv %s5929
    %v5931 = vmul.f32 %v32, %v5930
    %v5932 = vmul.f32 %v33, %v5930
    %v5933 = vmul.f32 %v34, %v5930
    %v5934 = vmul.f32 %v35, %v5930
    %v5935 = vmul.f32 %v36, %v5930
    %v5936 = vmul.f32 %v37, %v5930
    %v5937 = vmul.f32 %v38, %v5930
    %v5938 = vmul.f32 %v39, %v5930
    %v5939 = vmul.f32 %v40, %v5930
    %v5940 = vmul.f32 %v41, %v5930
    %v5941 = vmul.f32 %v42, %v5930
    %v5942 = vmul.f32 %v43, %v5930
    %v5943 = vmul.f32 %v44, %v5930
    %v5944 = vmul.f32 %v45, %v5930
    %v5945 = vmul.f32 %v46, %v5930
    %v5946 = vmul.f32 %v47, %v5930
    %v5947 = vmul.f32 %v48, %v5930
    %v5948 = vmul.f32 %v49, %v5930
    %v5949 = vmul.f32 %v50, %v5930
    %v5950 = vmul.f32 %v51, %v5930
    %v5951 = vmul.f32 %v52, %v5930
    %v5952 = vmul.f32 %v53, %v5930
    %v5953 = vmul.f32 %v54, %v5930
    %v5954 = vmul.f32 %v55, %v5930
    %v5955 = vmul.f32 %v56, %v5930
    %v5956 = vmul.f32 %v57, %v5930
    %v5957 = vadd.f32 %v5468, %v5931
    %v5958 = vadd.f32 %v5469, %v5932
    %v5959 = vadd.f32 %v5470, %v5933
    %v5960 = vadd.f32 %v5471, %v5934
    %v5961 = vadd.f32 %v5472, %v5935
    %v5962 = vadd.f32 %v5473, %v5936
    %v5963 = vadd.f32 %v5474, %v5937
    %v5964 = vadd.f32 %v5475, %v5938
    %v5965 = vadd.f32 %v5476, %v5939
    %v5966 = vadd.f32 %v5477, %v5940
    %v5967 = vadd.f32 %v5478, %v5941
    %v5968 = vadd.f32 %v5479, %v5942
    %v5969 = vadd.f32 %v5480, %v5943
    %v5970 = vadd.f32 %v5481, %v5944
    %v5971 = vadd.f32 %v5482, %v5945
    %v5972 = vadd.f32 %v5483, %v5946
    %v5973 = vadd.f32 %v5484, %v5947
    %v5974 = vadd.f32 %v5485, %v5948
    %v5975 = vadd.f32 %v5486, %v5949
    %v5976 = vadd.f32 %v5487, %v5950
    %v5977 = vadd.f32 %v5488, %v5951
    %v5978 = vadd.f32 %v5489, %v5952
    %v5979 = vadd.f32 %v5490, %v5953
    %v5980 = vadd.f32 %v5491, %v5954
    %v5981 = vadd.f32 %v5492, %v5955
    %v5982 = vadd.f32 %v5493, %v5956
    %s5983 = sld [smem:[#allocation2 + $0x1c]]
    %v5984 = vstv %s5983
    %v5985 = vmul.f32 %v32, %v5984
    %v5986 = vmul.f32 %v33, %v5984
    %v5987 = vmul.f32 %v34, %v5984
    %v5988 = vmul.f32 %v35, %v5984
    %v5989 = vmul.f32 %v36, %v5984
    %v5990 = vmul.f32 %v37, %v5984
    %v5991 = vmul.f32 %v38, %v5984
    %v5992 = vmul.f32 %v39, %v5984
    %v5993 = vmul.f32 %v40, %v5984
    %v5994 = vmul.f32 %v41, %v5984
    %v5995 = vmul.f32 %v42, %v5984
    %v5996 = vmul.f32 %v43, %v5984
    %v5997 = vmul.f32 %v44, %v5984
    %v5998 = vmul.f32 %v45, %v5984
    %v5999 = vmul.f32 %v46, %v5984
    %v6000 = vmul.f32 %v47, %v5984
    %v6001 = vmul.f32 %v48, %v5984
    %v6002 = vmul.f32 %v49, %v5984
    %v6003 = vmul.f32 %v50, %v5984
    %v6004 = vmul.f32 %v51, %v5984
    %v6005 = vmul.f32 %v52, %v5984
    %v6006 = vmul.f32 %v53, %v5984
    %v6007 = vmul.f32 %v54, %v5984
    %v6008 = vmul.f32 %v55, %v5984
    %v6009 = vmul.f32 %v56, %v5984
    %v6010 = vmul.f32 %v57, %v5984
    %v6011 = vadd.f32 %v5613, %v5985
    %v6012 = vadd.f32 %v5614, %v5986
    %v6013 = vadd.f32 %v5615, %v5987
    %v6014 = vadd.f32 %v5616, %v5988
    %v6015 = vadd.f32 %v5617, %v5989
    %v6016 = vadd.f32 %v5618, %v5990
    %v6017 = vadd.f32 %v5619, %v5991
    %v6018 = vadd.f32 %v5620, %v5992
    %v6019 = vadd.f32 %v5621, %v5993
    %v6020 = vadd.f32 %v5622, %v5994
    %v6021 = vadd.f32 %v5623, %v5995
    %v6022 = vadd.f32 %v5624, %v5996
    %v6023 = vadd.f32 %v5625, %v5997
    %v6024 = vadd.f32 %v5626, %v5998
    %v6025 = vadd.f32 %v5627, %v5999
    %v6026 = vadd.f32 %v5628, %v6000
    %v6027 = vadd.f32 %v5629, %v6001
    %v6028 = vadd.f32 %v5630, %v6002
    %v6029 = vadd.f32 %v5631, %v6003
    %v6030 = vadd.f32 %v5632, %v6004
    %v6031 = vadd.f32 %v5633, %v6005
    %v6032 = vadd.f32 %v5634, %v6006
    %v6033 = vadd.f32 %v5635, %v6007
    %v6034 = vadd.f32 %v5636, %v6008
    %v6035 = vadd.f32 %v5637, %v6009
    %v6036 = vadd.f32 %v5638, %v6010
    %s6037 = sld [smem:[#allocation2 + $0x2c]]
    %v6038 = vstv %s6037
    %v6039 = vmul.f32 %v32, %v6038
    %v6040 = vmul.f32 %v33, %v6038
    %v6041 = vmul.f32 %v34, %v6038
    %v6042 = vmul.f32 %v35, %v6038
    %v6043 = vmul.f32 %v36, %v6038
    %v6044 = vmul.f32 %v37, %v6038
    %v6045 = vmul.f32 %v38, %v6038
    %v6046 = vmul.f32 %v39, %v6038
    %v6047 = vmul.f32 %v40, %v6038
    %v6048 = vmul.f32 %v41, %v6038
    %v6049 = vmul.f32 %v42, %v6038
    %v6050 = vmul.f32 %v43, %v6038
    %v6051 = vmul.f32 %v44, %v6038
    %v6052 = vmul.f32 %v45, %v6038
    %v6053 = vmul.f32 %v46, %v6038
    %v6054 = vmul.f32 %v47, %v6038
    %v6055 = vmul.f32 %v48, %v6038
    %v6056 = vmul.f32 %v49, %v6038
    %v6057 = vmul.f32 %v50, %v6038
    %v6058 = vmul.f32 %v51, %v6038
    %v6059 = vmul.f32 %v52, %v6038
    %v6060 = vmul.f32 %v53, %v6038
    %v6061 = vmul.f32 %v54, %v6038
    %v6062 = vmul.f32 %v55, %v6038
    %v6063 = vmul.f32 %v56, %v6038
    %v6064 = vmul.f32 %v57, %v6038
    %v6065 = vadd.f32 %v5758, %v6039
    %v6066 = vadd.f32 %v5759, %v6040
    %v6067 = vadd.f32 %v5760, %v6041
    %v6068 = vadd.f32 %v5761, %v6042
    %v6069 = vadd.f32 %v5762, %v6043
    %v6070 = vadd.f32 %v5763, %v6044
    %v6071 = vadd.f32 %v5764, %v6045
    %v6072 = vadd.f32 %v5765, %v6046
    %v6073 = vadd.f32 %v5766, %v6047
    %v6074 = vadd.f32 %v5767, %v6048
    %v6075 = vadd.f32 %v5768, %v6049
    %v6076 = vadd.f32 %v5769, %v6050
    %v6077 = vadd.f32 %v5770, %v6051
    %v6078 = vadd.f32 %v5771, %v6052
    %v6079 = vadd.f32 %v5772, %v6053
    %v6080 = vadd.f32 %v5773, %v6054
    %v6081 = vadd.f32 %v5774, %v6055
    %v6082 = vadd.f32 %v5775, %v6056
    %v6083 = vadd.f32 %v5776, %v6057
    %v6084 = vadd.f32 %v5777, %v6058
    %v6085 = vadd.f32 %v5778, %v6059
    %v6086 = vadd.f32 %v5779, %v6060
    %v6087 = vadd.f32 %v5780, %v6061
    %v6088 = vadd.f32 %v5781, %v6062
    %v6089 = vadd.f32 %v5782, %v6063
    %v6090 = vadd.f32 %v5783, %v6064
    %s6091 = sld [smem:[#allocation2 + $0x3c]]
    %v6092 = vstv %s6091
    %v6093 = vmul.f32 %v32, %v6092
    %v6094 = vmul.f32 %v33, %v6092
    %v6095 = vmul.f32 %v34, %v6092
    %v6096 = vmul.f32 %v35, %v6092
    %v6097 = vmul.f32 %v36, %v6092
    %v6098 = vmul.f32 %v37, %v6092
    %v6099 = vmul.f32 %v38, %v6092
    %v6100 = vmul.f32 %v39, %v6092
    %v6101 = vmul.f32 %v40, %v6092
    %v6102 = vmul.f32 %v41, %v6092
    %v6103 = vmul.f32 %v42, %v6092
    %v6104 = vmul.f32 %v43, %v6092
    %v6105 = vmul.f32 %v44, %v6092
    %v6106 = vmul.f32 %v45, %v6092
    %v6107 = vmul.f32 %v46, %v6092
    %v6108 = vmul.f32 %v47, %v6092
    %v6109 = vmul.f32 %v48, %v6092
    %v6110 = vmul.f32 %v49, %v6092
    %v6111 = vmul.f32 %v50, %v6092
    %v6112 = vmul.f32 %v51, %v6092
    %v6113 = vmul.f32 %v52, %v6092
    %v6114 = vmul.f32 %v53, %v6092
    %v6115 = vmul.f32 %v54, %v6092
    %v6116 = vmul.f32 %v55, %v6092
    %v6117 = vmul.f32 %v56, %v6092
    %v6118 = vmul.f32 %v57, %v6092
    %v6119 = vadd.f32 %v5903, %v6093
    %v6120 = vadd.f32 %v5904, %v6094
    %v6121 = vadd.f32 %v5905, %v6095
    %v6122 = vadd.f32 %v5906, %v6096
    %v6123 = vadd.f32 %v5907, %v6097
    %v6124 = vadd.f32 %v5908, %v6098
    %v6125 = vadd.f32 %v5909, %v6099
    %v6126 = vadd.f32 %v5910, %v6100
    %v6127 = vadd.f32 %v5911, %v6101
    %v6128 = vadd.f32 %v5912, %v6102
    %v6129 = vadd.f32 %v5913, %v6103
    %v6130 = vadd.f32 %v5914, %v6104
    %v6131 = vadd.f32 %v5915, %v6105
    %v6132 = vadd.f32 %v5916, %v6106
    %v6133 = vadd.f32 %v5917, %v6107
    %v6134 = vadd.f32 %v5918, %v6108
    %v6135 = vadd.f32 %v5919, %v6109
    %v6136 = vadd.f32 %v5920, %v6110
    %v6137 = vadd.f32 %v5921, %v6111
    %v6138 = vadd.f32 %v5922, %v6112
    %v6139 = vadd.f32 %v5923, %v6113
    %v6140 = vadd.f32 %v5924, %v6114
    %v6141 = vadd.f32 %v5925, %v6115
    %v6142 = vadd.f32 %v5926, %v6116
    %v6143 = vadd.f32 %v5927, %v6117
    %v6144 = vadd.f32 %v5928, %v6118
    %s6145 = sld [smem:[#allocation2 + $0xd]]
    %v6146 = vstv %s6145
    %v6147 = vmul.f32 %v32, %v6146
    %v6148 = vmul.f32 %v33, %v6146
    %v6149 = vmul.f32 %v34, %v6146
    %v6150 = vmul.f32 %v35, %v6146
    %v6151 = vmul.f32 %v36, %v6146
    %v6152 = vmul.f32 %v37, %v6146
    %v6153 = vmul.f32 %v38, %v6146
    %v6154 = vmul.f32 %v39, %v6146
    %v6155 = vmul.f32 %v40, %v6146
    %v6156 = vmul.f32 %v41, %v6146
    %v6157 = vmul.f32 %v42, %v6146
    %v6158 = vmul.f32 %v43, %v6146
    %v6159 = vmul.f32 %v44, %v6146
    %v6160 = vmul.f32 %v45, %v6146
    %v6161 = vmul.f32 %v46, %v6146
    %v6162 = vmul.f32 %v47, %v6146
    %v6163 = vmul.f32 %v48, %v6146
    %v6164 = vmul.f32 %v49, %v6146
    %v6165 = vmul.f32 %v50, %v6146
    %v6166 = vmul.f32 %v51, %v6146
    %v6167 = vmul.f32 %v52, %v6146
    %v6168 = vmul.f32 %v53, %v6146
    %v6169 = vmul.f32 %v54, %v6146
    %v6170 = vmul.f32 %v55, %v6146
    %v6171 = vmul.f32 %v56, %v6146
    %v6172 = vmul.f32 %v57, %v6146
    %v6199 = vrot.slane %v6147, 1
    %v6200 = vrot.slane %v6148, 1
    %v6201 = vsel %vm328, %v6199, %v6200
    %v6202 = vrot.slane %v6149, 1
    %v6203 = vrot.slane %v6150, 1
    %v6204 = vsel %vm328, %v6202, %v6203
    %v6205 = vrot.slane %v6151, 1
    %v6206 = vrot.slane %v6152, 1
    %v6207 = vsel %vm328, %v6205, %v6206
    %v6208 = vrot.slane %v6153, 1
    %v6209 = vrot.slane %v6154, 1
    %v6210 = vsel %vm328, %v6208, %v6209
    %v6211 = vrot.slane %v6155, 1
    %v6212 = vrot.slane %v6156, 1
    %v6213 = vsel %vm328, %v6211, %v6212
    %v6214 = vrot.slane %v6157, 1
    %v6215 = vrot.slane %v6158, 1
    %v6216 = vsel %vm328, %v6214, %v6215
    %v6217 = vrot.slane %v6159, 1
    %v6218 = vrot.slane %v6160, 1
    %v6219 = vsel %vm328, %v6217, %v6218
    %v6220 = vrot.slane %v6161, 1
    %v6221 = vrot.slane %v6162, 1
    %v6222 = vsel %vm328, %v6220, %v6221
    %v6223 = vrot.slane %v6163, 1
    %v6224 = vrot.slane %v6164, 1
    %v6225 = vsel %vm328, %v6223, %v6224
    %v6226 = vrot.slane %v6165, 1
    %v6227 = vrot.slane %v6166, 1
    %v6228 = vsel %vm328, %v6226, %v6227
    %v6229 = vrot.slane %v6167, 1
    %v6230 = vrot.slane %v6168, 1
    %v6231 = vsel %vm328, %v6229, %v6230
    %v6232 = vrot.slane %v6169, 1
    %v6233 = vrot.slane %v6170, 1
    %v6234 = vsel %vm328, %v6232, %v6233
    %v6235 = vrot.slane %v6171, 1
    %v6236 = vrot.slane %v6172, 1
    %v6237 = vsel %vm328, %v6235, %v6236
    %v6264 = vadd.f32 %v5957, %v6201
    %v6265 = vadd.f32 %v5958, %v6200
    %v6266 = vadd.f32 %v5959, %v6204
    %v6267 = vadd.f32 %v5960, %v6203
    %v6268 = vadd.f32 %v5961, %v6207
    %v6269 = vadd.f32 %v5962, %v6206
    %v6270 = vadd.f32 %v5963, %v6210
    %v6271 = vadd.f32 %v5964, %v6209
    %v6272 = vadd.f32 %v5965, %v6213
    %v6273 = vadd.f32 %v5966, %v6212
    %v6274 = vadd.f32 %v5967, %v6216
    %v6275 = vadd.f32 %v5968, %v6215
    %v6276 = vadd.f32 %v5969, %v6219
    %v6277 = vadd.f32 %v5970, %v6218
    %v6278 = vadd.f32 %v5971, %v6222
    %v6279 = vadd.f32 %v5972, %v6221
    %v6280 = vadd.f32 %v5973, %v6225
    %v6281 = vadd.f32 %v5974, %v6224
    %v6282 = vadd.f32 %v5975, %v6228
    %v6283 = vadd.f32 %v5976, %v6227
    %v6284 = vadd.f32 %v5977, %v6231
    %v6285 = vadd.f32 %v5978, %v6230
    %v6286 = vadd.f32 %v5979, %v6234
    %v6287 = vadd.f32 %v5980, %v6233
    %v6288 = vadd.f32 %v5981, %v6237
    %v6289 = vadd.f32 %v5982, %v6236
    %s6290 = sld [smem:[#allocation2 + $0x1d]]
    %v6291 = vstv %s6290
    %v6292 = vmul.f32 %v32, %v6291
    %v6293 = vmul.f32 %v33, %v6291
    %v6294 = vmul.f32 %v34, %v6291
    %v6295 = vmul.f32 %v35, %v6291
    %v6296 = vmul.f32 %v36, %v6291
    %v6297 = vmul.f32 %v37, %v6291
    %v6298 = vmul.f32 %v38, %v6291
    %v6299 = vmul.f32 %v39, %v6291
    %v6300 = vmul.f32 %v40, %v6291
    %v6301 = vmul.f32 %v41, %v6291
    %v6302 = vmul.f32 %v42, %v6291
    %v6303 = vmul.f32 %v43, %v6291
    %v6304 = vmul.f32 %v44, %v6291
    %v6305 = vmul.f32 %v45, %v6291
    %v6306 = vmul.f32 %v46, %v6291
    %v6307 = vmul.f32 %v47, %v6291
    %v6308 = vmul.f32 %v48, %v6291
    %v6309 = vmul.f32 %v49, %v6291
    %v6310 = vmul.f32 %v50, %v6291
    %v6311 = vmul.f32 %v51, %v6291
    %v6312 = vmul.f32 %v52, %v6291
    %v6313 = vmul.f32 %v53, %v6291
    %v6314 = vmul.f32 %v54, %v6291
    %v6315 = vmul.f32 %v55, %v6291
    %v6316 = vmul.f32 %v56, %v6291
    %v6317 = vmul.f32 %v57, %v6291
    %v6344 = vrot.slane %v6292, 1
    %v6345 = vrot.slane %v6293, 1
    %v6346 = vsel %vm328, %v6344, %v6345
    %v6347 = vrot.slane %v6294, 1
    %v6348 = vrot.slane %v6295, 1
    %v6349 = vsel %vm328, %v6347, %v6348
    %v6350 = vrot.slane %v6296, 1
    %v6351 = vrot.slane %v6297, 1
    %v6352 = vsel %vm328, %v6350, %v6351
    %v6353 = vrot.slane %v6298, 1
    %v6354 = vrot.slane %v6299, 1
    %v6355 = vsel %vm328, %v6353, %v6354
    %v6356 = vrot.slane %v6300, 1
    %v6357 = vrot.slane %v6301, 1
    %v6358 = vsel %vm328, %v6356, %v6357
    %v6359 = vrot.slane %v6302, 1
    %v6360 = vrot.slane %v6303, 1
    %v6361 = vsel %vm328, %v6359, %v6360
    %v6362 = vrot.slane %v6304, 1
    %v6363 = vrot.slane %v6305, 1
    %v6364 = vsel %vm328, %v6362, %v6363
    %v6365 = vrot.slane %v6306, 1
    %v6366 = vrot.slane %v6307, 1
    %v6367 = vsel %vm328, %v6365, %v6366
    %v6368 = vrot.slane %v6308, 1
    %v6369 = vrot.slane %v6309, 1
    %v6370 = vsel %vm328, %v6368, %v6369
    %v6371 = vrot.slane %v6310, 1
    %v6372 = vrot.slane %v6311, 1
    %v6373 = vsel %vm328, %v6371, %v6372
    %v6374 = vrot.slane %v6312, 1
    %v6375 = vrot.slane %v6313, 1
    %v6376 = vsel %vm328, %v6374, %v6375
    %v6377 = vrot.slane %v6314, 1
    %v6378 = vrot.slane %v6315, 1
    %v6379 = vsel %vm328, %v6377, %v6378
    %v6380 = vrot.slane %v6316, 1
    %v6381 = vrot.slane %v6317, 1
    %v6382 = vsel %vm328, %v6380, %v6381
    %v6409 = vadd.f32 %v6011, %v6346
    %v6410 = vadd.f32 %v6012, %v6345
    %v6411 = vadd.f32 %v6013, %v6349
    %v6412 = vadd.f32 %v6014, %v6348
    %v6413 = vadd.f32 %v6015, %v6352
    %v6414 = vadd.f32 %v6016, %v6351
    %v6415 = vadd.f32 %v6017, %v6355
    %v6416 = vadd.f32 %v6018, %v6354
    %v6417 = vadd.f32 %v6019, %v6358
    %v6418 = vadd.f32 %v6020, %v6357
    %v6419 = vadd.f32 %v6021, %v6361
    %v6420 = vadd.f32 %v6022, %v6360
    %v6421 = vadd.f32 %v6023, %v6364
    %v6422 = vadd.f32 %v6024, %v6363
    %v6423 = vadd.f32 %v6025, %v6367
    %v6424 = vadd.f32 %v6026, %v6366
    %v6425 = vadd.f32 %v6027, %v6370
    %v6426 = vadd.f32 %v6028, %v6369
    %v6427 = vadd.f32 %v6029, %v6373
    %v6428 = vadd.f32 %v6030, %v6372
    %v6429 = vadd.f32 %v6031, %v6376
    %v6430 = vadd.f32 %v6032, %v6375
    %v6431 = vadd.f32 %v6033, %v6379
    %v6432 = vadd.f32 %v6034, %v6378
    %v6433 = vadd.f32 %v6035, %v6382
    %v6434 = vadd.f32 %v6036, %v6381
    %s6435 = sld [smem:[#allocation2 + $0x2d]]
    %v6436 = vstv %s6435
    %v6437 = vmul.f32 %v32, %v6436
    %v6438 = vmul.f32 %v33, %v6436
    %v6439 = vmul.f32 %v34, %v6436
    %v6440 = vmul.f32 %v35, %v6436
    %v6441 = vmul.f32 %v36, %v6436
    %v6442 = vmul.f32 %v37, %v6436
    %v6443 = vmul.f32 %v38, %v6436
    %v6444 = vmul.f32 %v39, %v6436
    %v6445 = vmul.f32 %v40, %v6436
    %v6446 = vmul.f32 %v41, %v6436
    %v6447 = vmul.f32 %v42, %v6436
    %v6448 = vmul.f32 %v43, %v6436
    %v6449 = vmul.f32 %v44, %v6436
    %v6450 = vmul.f32 %v45, %v6436
    %v6451 = vmul.f32 %v46, %v6436
    %v6452 = vmul.f32 %v47, %v6436
    %v6453 = vmul.f32 %v48, %v6436
    %v6454 = vmul.f32 %v49, %v6436
    %v6455 = vmul.f32 %v50, %v6436
    %v6456 = vmul.f32 %v51, %v6436
    %v6457 = vmul.f32 %v52, %v6436
    %v6458 = vmul.f32 %v53, %v6436
    %v6459 = vmul.f32 %v54, %v6436
    %v6460 = vmul.f32 %v55, %v6436
    %v6461 = vmul.f32 %v56, %v6436
    %v6462 = vmul.f32 %v57, %v6436
    %v6489 = vrot.slane %v6437, 1
    %v6490 = vrot.slane %v6438, 1
    %v6491 = vsel %vm328, %v6489, %v6490
    %v6492 = vrot.slane %v6439, 1
    %v6493 = vrot.slane %v6440, 1
    %v6494 = vsel %vm328, %v6492, %v6493
    %v6495 = vrot.slane %v6441, 1
    %v6496 = vrot.slane %v6442, 1
    %v6497 = vsel %vm328, %v6495, %v6496
    %v6498 = vrot.slane %v6443, 1
    %v6499 = vrot.slane %v6444, 1
    %v6500 = vsel %vm328, %v6498, %v6499
    %v6501 = vrot.slane %v6445, 1
    %v6502 = vrot.slane %v6446, 1
    %v6503 = vsel %vm328, %v6501, %v6502
    %v6504 = vrot.slane %v6447, 1
    %v6505 = vrot.slane %v6448, 1
    %v6506 = vsel %vm328, %v6504, %v6505
    %v6507 = vrot.slane %v6449, 1
    %v6508 = vrot.slane %v6450, 1
    %v6509 = vsel %vm328, %v6507, %v6508
    %v6510 = vrot.slane %v6451, 1
    %v6511 = vrot.slane %v6452, 1
    %v6512 = vsel %vm328, %v6510, %v6511
    %v6513 = vrot.slane %v6453, 1
    %v6514 = vrot.slane %v6454, 1
    %v6515 = vsel %vm328, %v6513, %v6514
    %v6516 = vrot.slane %v6455, 1
    %v6517 = vrot.slane %v6456, 1
    %v6518 = vsel %vm328, %v6516, %v6517
    %v6519 = vrot.slane %v6457, 1
    %v6520 = vrot.slane %v6458, 1
    %v6521 = vsel %vm328, %v6519, %v6520
    %v6522 = vrot.slane %v6459, 1
    %v6523 = vrot.slane %v6460, 1
    %v6524 = vsel %vm328, %v6522, %v6523
    %v6525 = vrot.slane %v6461, 1
    %v6526 = vrot.slane %v6462, 1
    %v6527 = vsel %vm328, %v6525, %v6526
    %v6554 = vadd.f32 %v6065, %v6491
    %v6555 = vadd.f32 %v6066, %v6490
    %v6556 = vadd.f32 %v6067, %v6494
    %v6557 = vadd.f32 %v6068, %v6493
    %v6558 = vadd.f32 %v6069, %v6497
    %v6559 = vadd.f32 %v6070, %v6496
    %v6560 = vadd.f32 %v6071, %v6500
    %v6561 = vadd.f32 %v6072, %v6499
    %v6562 = vadd.f32 %v6073, %v6503
    %v6563 = vadd.f32 %v6074, %v6502
    %v6564 = vadd.f32 %v6075, %v6506
    %v6565 = vadd.f32 %v6076, %v6505
    %v6566 = vadd.f32 %v6077, %v6509
    %v6567 = vadd.f32 %v6078, %v6508
    %v6568 = vadd.f32 %v6079, %v6512
    %v6569 = vadd.f32 %v6080, %v6511
    %v6570 = vadd.f32 %v6081, %v6515
    %v6571 = vadd.f32 %v6082, %v6514
    %v6572 = vadd.f32 %v6083, %v6518
    %v6573 = vadd.f32 %v6084, %v6517
    %v6574 = vadd.f32 %v6085, %v6521
    %v6575 = vadd.f32 %v6086, %v6520
    %v6576 = vadd.f32 %v6087, %v6524
    %v6577 = vadd.f32 %v6088, %v6523
    %v6578 = vadd.f32 %v6089, %v6527
    %v6579 = vadd.f32 %v6090, %v6526
    %s6580 = sld [smem:[#allocation2 + $0x3d]]
    %v6581 = vstv %s6580
    %v6582 = vmul.f32 %v32, %v6581
    %v6583 = vmul.f32 %v33, %v6581
    %v6584 = vmul.f32 %v34, %v6581
    %v6585 = vmul.f32 %v35, %v6581
    %v6586 = vmul.f32 %v36, %v6581
    %v6587 = vmul.f32 %v37, %v6581
    %v6588 = vmul.f32 %v38, %v6581
    %v6589 = vmul.f32 %v39, %v6581
    %v6590 = vmul.f32 %v40, %v6581
    %v6591 = vmul.f32 %v41, %v6581
    %v6592 = vmul.f32 %v42, %v6581
    %v6593 = vmul.f32 %v43, %v6581
    %v6594 = vmul.f32 %v44, %v6581
    %v6595 = vmul.f32 %v45, %v6581
    %v6596 = vmul.f32 %v46, %v6581
    %v6597 = vmul.f32 %v47, %v6581
    %v6598 = vmul.f32 %v48, %v6581
    %v6599 = vmul.f32 %v49, %v6581
    %v6600 = vmul.f32 %v50, %v6581
    %v6601 = vmul.f32 %v51, %v6581
    %v6602 = vmul.f32 %v52, %v6581
    %v6603 = vmul.f32 %v53, %v6581
    %v6604 = vmul.f32 %v54, %v6581
    %v6605 = vmul.f32 %v55, %v6581
    %v6606 = vmul.f32 %v56, %v6581
    %v6607 = vmul.f32 %v57, %v6581
    %v6634 = vrot.slane %v6582, 1
    %v6635 = vrot.slane %v6583, 1
    %v6636 = vsel %vm328, %v6634, %v6635
    %v6637 = vrot.slane %v6584, 1
    %v6638 = vrot.slane %v6585, 1
    %v6639 = vsel %vm328, %v6637, %v6638
    %v6640 = vrot.slane %v6586, 1
    %v6641 = vrot.slane %v6587, 1
    %v6642 = vsel %vm328, %v6640, %v6641
    %v6643 = vrot.slane %v6588, 1
    %v6644 = vrot.slane %v6589, 1
    %v6645 = vsel %vm328, %v6643, %v6644
    %v6646 = vrot.slane %v6590, 1
    %v6647 = vrot.slane %v6591, 1
    %v6648 = vsel %vm328, %v6646, %v6647
    %v6649 = vrot.slane %v6592, 1
    %v6650 = vrot.slane %v6593, 1
    %v6651 = vsel %vm328, %v6649, %v6650
    %v6652 = vrot.slane %v6594, 1
    %v6653 = vrot.slane %v6595, 1
    %v6654 = vsel %vm328, %v6652, %v6653
    %v6655 = vrot.slane %v6596, 1
    %v6656 = vrot.slane %v6597, 1
    %v6657 = vsel %vm328, %v6655, %v6656
    %v6658 = vrot.slane %v6598, 1
    %v6659 = vrot.slane %v6599, 1
    %v6660 = vsel %vm328, %v6658, %v6659
    %v6661 = vrot.slane %v6600, 1
    %v6662 = vrot.slane %v6601, 1
    %v6663 = vsel %vm328, %v6661, %v6662
    %v6664 = vrot.slane %v6602, 1
    %v6665 = vrot.slane %v6603, 1
    %v6666 = vsel %vm328, %v6664, %v6665
    %v6667 = vrot.slane %v6604, 1
    %v6668 = vrot.slane %v6605, 1
    %v6669 = vsel %vm328, %v6667, %v6668
    %v6670 = vrot.slane %v6606, 1
    %v6671 = vrot.slane %v6607, 1
    %v6672 = vsel %vm328, %v6670, %v6671
    %v6699 = vadd.f32 %v6119, %v6636
    %v6700 = vadd.f32 %v6120, %v6635
    %v6701 = vadd.f32 %v6121, %v6639
    %v6702 = vadd.f32 %v6122, %v6638
    %v6703 = vadd.f32 %v6123, %v6642
    %v6704 = vadd.f32 %v6124, %v6641
    %v6705 = vadd.f32 %v6125, %v6645
    %v6706 = vadd.f32 %v6126, %v6644
    %v6707 = vadd.f32 %v6127, %v6648
    %v6708 = vadd.f32 %v6128, %v6647
    %v6709 = vadd.f32 %v6129, %v6651
    %v6710 = vadd.f32 %v6130, %v6650
    %v6711 = vadd.f32 %v6131, %v6654
    %v6712 = vadd.f32 %v6132, %v6653
    %v6713 = vadd.f32 %v6133, %v6657
    %v6714 = vadd.f32 %v6134, %v6656
    %v6715 = vadd.f32 %v6135, %v6660
    %v6716 = vadd.f32 %v6136, %v6659
    %v6717 = vadd.f32 %v6137, %v6663
    %v6718 = vadd.f32 %v6138, %v6662
    %v6719 = vadd.f32 %v6139, %v6666
    %v6720 = vadd.f32 %v6140, %v6665
    %v6721 = vadd.f32 %v6141, %v6669
    %v6722 = vadd.f32 %v6142, %v6668
    %v6723 = vadd.f32 %v6143, %v6672
    %v6724 = vadd.f32 %v6144, %v6671
    %s6725 = sld [smem:[#allocation2 + $0xe]]
    %v6726 = vstv %s6725
    %v6727 = vmul.f32 %v32, %v6726
    %v6728 = vmul.f32 %v33, %v6726
    %v6729 = vmul.f32 %v34, %v6726
    %v6730 = vmul.f32 %v35, %v6726
    %v6731 = vmul.f32 %v36, %v6726
    %v6732 = vmul.f32 %v37, %v6726
    %v6733 = vmul.f32 %v38, %v6726
    %v6734 = vmul.f32 %v39, %v6726
    %v6735 = vmul.f32 %v40, %v6726
    %v6736 = vmul.f32 %v41, %v6726
    %v6737 = vmul.f32 %v42, %v6726
    %v6738 = vmul.f32 %v43, %v6726
    %v6739 = vmul.f32 %v44, %v6726
    %v6740 = vmul.f32 %v45, %v6726
    %v6741 = vmul.f32 %v46, %v6726
    %v6742 = vmul.f32 %v47, %v6726
    %v6743 = vmul.f32 %v48, %v6726
    %v6744 = vmul.f32 %v49, %v6726
    %v6745 = vmul.f32 %v50, %v6726
    %v6746 = vmul.f32 %v51, %v6726
    %v6747 = vmul.f32 %v52, %v6726
    %v6748 = vmul.f32 %v53, %v6726
    %v6749 = vmul.f32 %v54, %v6726
    %v6750 = vmul.f32 %v55, %v6726
    %v6751 = vmul.f32 %v56, %v6726
    %v6752 = vmul.f32 %v57, %v6726
    %v6779 = vrot.slane %v6727, 2
    %v6780 = vrot.slane %v6728, 2
    %v6781 = vsel %vm909, %v6779, %v6780
    %v6782 = vrot.slane %v6729, 2
    %v6783 = vrot.slane %v6730, 2
    %v6784 = vsel %vm909, %v6782, %v6783
    %v6785 = vrot.slane %v6731, 2
    %v6786 = vrot.slane %v6732, 2
    %v6787 = vsel %vm909, %v6785, %v6786
    %v6788 = vrot.slane %v6733, 2
    %v6789 = vrot.slane %v6734, 2
    %v6790 = vsel %vm909, %v6788, %v6789
    %v6791 = vrot.slane %v6735, 2
    %v6792 = vrot.slane %v6736, 2
    %v6793 = vsel %vm909, %v6791, %v6792
    %v6794 = vrot.slane %v6737, 2
    %v6795 = vrot.slane %v6738, 2
    %v6796 = vsel %vm909, %v6794, %v6795
    %v6797 = vrot.slane %v6739, 2
    %v6798 = vrot.slane %v6740, 2
    %v6799 = vsel %vm909, %v6797, %v6798
    %v6800 = vrot.slane %v6741, 2
    %v6801 = vrot.slane %v6742, 2
    %v6802 = vsel %vm909, %v6800, %v6801
    %v6803 = vrot.slane %v6743, 2
    %v6804 = vrot.slane %v6744, 2
    %v6805 = vsel %vm909, %v6803, %v6804
    %v6806 = vrot.slane %v6745, 2
    %v6807 = vrot.slane %v6746, 2
    %v6808 = vsel %vm909, %v6806, %v6807
    %v6809 = vrot.slane %v6747, 2
    %v6810 = vrot.slane %v6748, 2
    %v6811 = vsel %vm909, %v6809, %v6810
    %v6812 = vrot.slane %v6749, 2
    %v6813 = vrot.slane %v6750, 2
    %v6814 = vsel %vm909, %v6812, %v6813
    %v6815 = vrot.slane %v6751, 2
    %v6816 = vrot.slane %v6752, 2
    %v6817 = vsel %vm909, %v6815, %v6816
    %v6844 = vadd.f32 %v6264, %v6781
    %v6845 = vadd.f32 %v6265, %v6780
    %v6846 = vadd.f32 %v6266, %v6784
    %v6847 = vadd.f32 %v6267, %v6783
    %v6848 = vadd.f32 %v6268, %v6787
    %v6849 = vadd.f32 %v6269, %v6786
    %v6850 = vadd.f32 %v6270, %v6790
    %v6851 = vadd.f32 %v6271, %v6789
    %v6852 = vadd.f32 %v6272, %v6793
    %v6853 = vadd.f32 %v6273, %v6792
    %v6854 = vadd.f32 %v6274, %v6796
    %v6855 = vadd.f32 %v6275, %v6795
    %v6856 = vadd.f32 %v6276, %v6799
    %v6857 = vadd.f32 %v6277, %v6798
    %v6858 = vadd.f32 %v6278, %v6802
    %v6859 = vadd.f32 %v6279, %v6801
    %v6860 = vadd.f32 %v6280, %v6805
    %v6861 = vadd.f32 %v6281, %v6804
    %v6862 = vadd.f32 %v6282, %v6808
    %v6863 = vadd.f32 %v6283, %v6807
    %v6864 = vadd.f32 %v6284, %v6811
    %v6865 = vadd.f32 %v6285, %v6810
    %v6866 = vadd.f32 %v6286, %v6814
    %v6867 = vadd.f32 %v6287, %v6813
    %v6868 = vadd.f32 %v6288, %v6817
    %v6869 = vadd.f32 %v6289, %v6816
    %s6870 = sld [smem:[#allocation2 + $0x1e]]
    %v6871 = vstv %s6870
    %v6872 = vmul.f32 %v32, %v6871
    %v6873 = vmul.f32 %v33, %v6871
    %v6874 = vmul.f32 %v34, %v6871
    %v6875 = vmul.f32 %v35, %v6871
    %v6876 = vmul.f32 %v36, %v6871
    %v6877 = vmul.f32 %v37, %v6871
    %v6878 = vmul.f32 %v38, %v6871
    %v6879 = vmul.f32 %v39, %v6871
    %v6880 = vmul.f32 %v40, %v6871
    %v6881 = vmul.f32 %v41, %v6871
    %v6882 = vmul.f32 %v42, %v6871
    %v6883 = vmul.f32 %v43, %v6871
    %v6884 = vmul.f32 %v44, %v6871
    %v6885 = vmul.f32 %v45, %v6871
    %v6886 = vmul.f32 %v46, %v6871
    %v6887 = vmul.f32 %v47, %v6871
    %v6888 = vmul.f32 %v48, %v6871
    %v6889 = vmul.f32 %v49, %v6871
    %v6890 = vmul.f32 %v50, %v6871
    %v6891 = vmul.f32 %v51, %v6871
    %v6892 = vmul.f32 %v52, %v6871
    %v6893 = vmul.f32 %v53, %v6871
    %v6894 = vmul.f32 %v54, %v6871
    %v6895 = vmul.f32 %v55, %v6871
    %v6896 = vmul.f32 %v56, %v6871
    %v6897 = vmul.f32 %v57, %v6871
    %v6924 = vrot.slane %v6872, 2
    %v6925 = vrot.slane %v6873, 2
    %v6926 = vsel %vm909, %v6924, %v6925
    %v6927 = vrot.slane %v6874, 2
    %v6928 = vrot.slane %v6875, 2
    %v6929 = vsel %vm909, %v6927, %v6928
    %v6930 = vrot.slane %v6876, 2
    %v6931 = vrot.slane %v6877, 2
    %v6932 = vsel %vm909, %v6930, %v6931
    %v6933 = vrot.slane %v6878, 2
    %v6934 = vrot.slane %v6879, 2
    %v6935 = vsel %vm909, %v6933, %v6934
    %v6936 = vrot.slane %v6880, 2
    %v6937 = vrot.slane %v6881, 2
    %v6938 = vsel %vm909, %v6936, %v6937
    %v6939 = vrot.slane %v6882, 2
    %v6940 = vrot.slane %v6883, 2
    %v6941 = vsel %vm909, %v6939, %v6940
    %v6942 = vrot.slane %v6884, 2
    %v6943 = vrot.slane %v6885, 2
    %v6944 = vsel %vm909, %v6942, %v6943
    %v6945 = vrot.slane %v6886, 2
    %v6946 = vrot.slane %v6887, 2
    %v6947 = vsel %vm909, %v6945, %v6946
    %v6948 = vrot.slane %v6888, 2
    %v6949 = vrot.slane %v6889, 2
    %v6950 = vsel %vm909, %v6948, %v6949
    %v6951 = vrot.slane %v6890, 2
    %v6952 = vrot.slane %v6891, 2
    %v6953 = vsel %vm909, %v6951, %v6952
    %v6954 = vrot.slane %v6892, 2
    %v6955 = vrot.slane %v6893, 2
    %v6956 = vsel %vm909, %v6954, %v6955
    %v6957 = vrot.slane %v6894, 2
    %v6958 = vrot.slane %v6895, 2
    %v6959 = vsel %vm909, %v6957, %v6958
    %v6960 = vrot.slane %v6896, 2
    %v6961 = vrot.slane %v6897, 2
    %v6962 = vsel %vm909, %v6960, %v6961
    %v6989 = vadd.f32 %v6409, %v6926
    %v6990 = vadd.f32 %v6410, %v6925
    %v6991 = vadd.f32 %v6411, %v6929
    %v6992 = vadd.f32 %v6412, %v6928
    %v6993 = vadd.f32 %v6413, %v6932
    %v6994 = vadd.f32 %v6414, %v6931
    %v6995 = vadd.f32 %v6415, %v6935
    %v6996 = vadd.f32 %v6416, %v6934
    %v6997 = vadd.f32 %v6417, %v6938
    %v6998 = vadd.f32 %v6418, %v6937
    %v6999 = vadd.f32 %v6419, %v6941
    %v7000 = vadd.f32 %v6420, %v6940
    %v7001 = vadd.f32 %v6421, %v6944
    %v7002 = vadd.f32 %v6422, %v6943
    %v7003 = vadd.f32 %v6423, %v6947
    %v7004 = vadd.f32 %v6424, %v6946
    %v7005 = vadd.f32 %v6425, %v6950
    %v7006 = vadd.f32 %v6426, %v6949
    %v7007 = vadd.f32 %v6427, %v6953
    %v7008 = vadd.f32 %v6428, %v6952
    %v7009 = vadd.f32 %v6429, %v6956
    %v7010 = vadd.f32 %v6430, %v6955
    %v7011 = vadd.f32 %v6431, %v6959
    %v7012 = vadd.f32 %v6432, %v6958
    %v7013 = vadd.f32 %v6433, %v6962
    %v7014 = vadd.f32 %v6434, %v6961
    %s7015 = sld [smem:[#allocation2 + $0x2e]]
    %v7016 = vstv %s7015
    %v7017 = vmul.f32 %v32, %v7016
    %v7018 = vmul.f32 %v33, %v7016
    %v7019 = vmul.f32 %v34, %v7016
    %v7020 = vmul.f32 %v35, %v7016
    %v7021 = vmul.f32 %v36, %v7016
    %v7022 = vmul.f32 %v37, %v7016
    %v7023 = vmul.f32 %v38, %v7016
    %v7024 = vmul.f32 %v39, %v7016
    %v7025 = vmul.f32 %v40, %v7016
    %v7026 = vmul.f32 %v41, %v7016
    %v7027 = vmul.f32 %v42, %v7016
    %v7028 = vmul.f32 %v43, %v7016
    %v7029 = vmul.f32 %v44, %v7016
    %v7030 = vmul.f32 %v45, %v7016
    %v7031 = vmul.f32 %v46, %v7016
    %v7032 = vmul.f32 %v47, %v7016
    %v7033 = vmul.f32 %v48, %v7016
    %v7034 = vmul.f32 %v49, %v7016
    %v7035 = vmul.f32 %v50, %v7016
    %v7036 = vmul.f32 %v51, %v7016
    %v7037 = vmul.f32 %v52, %v7016
    %v7038 = vmul.f32 %v53, %v7016
    %v7039 = vmul.f32 %v54, %v7016
    %v7040 = vmul.f32 %v55, %v7016
    %v7041 = vmul.f32 %v56, %v7016
    %v7042 = vmul.f32 %v57, %v7016
    %v7069 = vrot.slane %v7017, 2
    %v7070 = vrot.slane %v7018, 2
    %v7071 = vsel %vm909, %v7069, %v7070
    %v7072 = vrot.slane %v7019, 2
    %v7073 = vrot.slane %v7020, 2
    %v7074 = vsel %vm909, %v7072, %v7073
    %v7075 = vrot.slane %v7021, 2
    %v7076 = vrot.slane %v7022, 2
    %v7077 = vsel %vm909, %v7075, %v7076
    %v7078 = vrot.slane %v7023, 2
    %v7079 = vrot.slane %v7024, 2
    %v7080 = vsel %vm909, %v7078, %v7079
    %v7081 = vrot.slane %v7025, 2
    %v7082 = vrot.slane %v7026, 2
    %v7083 = vsel %vm909, %v7081, %v7082
    %v7084 = vrot.slane %v7027, 2
    %v7085 = vrot.slane %v7028, 2
    %v7086 = vsel %vm909, %v7084, %v7085
    %v7087 = vrot.slane %v7029, 2
    %v7088 = vrot.slane %v7030, 2
    %v7089 = vsel %vm909, %v7087, %v7088
    %v7090 = vrot.slane %v7031, 2
    %v7091 = vrot.slane %v7032, 2
    %v7092 = vsel %vm909, %v7090, %v7091
    %v7093 = vrot.slane %v7033, 2
    %v7094 = vrot.slane %v7034, 2
    %v7095 = vsel %vm909, %v7093, %v7094
    %v7096 = vrot.slane %v7035, 2
    %v7097 = vrot.slane %v7036, 2
    %v7098 = vsel %vm909, %v7096, %v7097
    %v7099 = vrot.slane %v7037, 2
    %v7100 = vrot.slane %v7038, 2
    %v7101 = vsel %vm909, %v7099, %v7100
    %v7102 = vrot.slane %v7039, 2
    %v7103 = vrot.slane %v7040, 2
    %v7104 = vsel %vm909, %v7102, %v7103
    %v7105 = vrot.slane %v7041, 2
    %v7106 = vrot.slane %v7042, 2
    %v7107 = vsel %vm909, %v7105, %v7106
    %v7134 = vadd.f32 %v6554, %v7071
    %v7135 = vadd.f32 %v6555, %v7070
    %v7136 = vadd.f32 %v6556, %v7074
    %v7137 = vadd.f32 %v6557, %v7073
    %v7138 = vadd.f32 %v6558, %v7077
    %v7139 = vadd.f32 %v6559, %v7076
    %v7140 = vadd.f32 %v6560, %v7080
    %v7141 = vadd.f32 %v6561, %v7079
    %v7142 = vadd.f32 %v6562, %v7083
    %v7143 = vadd.f32 %v6563, %v7082
    %v7144 = vadd.f32 %v6564, %v7086
    %v7145 = vadd.f32 %v6565, %v7085
    %v7146 = vadd.f32 %v6566, %v7089
    %v7147 = vadd.f32 %v6567, %v7088
    %v7148 = vadd.f32 %v6568, %v7092
    %v7149 = vadd.f32 %v6569, %v7091
    %v7150 = vadd.f32 %v6570, %v7095
    %v7151 = vadd.f32 %v6571, %v7094
    %v7152 = vadd.f32 %v6572, %v7098
    %v7153 = vadd.f32 %v6573, %v7097
    %v7154 = vadd.f32 %v6574, %v7101
    %v7155 = vadd.f32 %v6575, %v7100
    %v7156 = vadd.f32 %v6576, %v7104
    %v7157 = vadd.f32 %v6577, %v7103
    %v7158 = vadd.f32 %v6578, %v7107
    %v7159 = vadd.f32 %v6579, %v7106
    %s7160 = sld [smem:[#allocation2 + $0x3e]]
    %v7161 = vstv %s7160
    %v7162 = vmul.f32 %v32, %v7161
    %v7163 = vmul.f32 %v33, %v7161
    %v7164 = vmul.f32 %v34, %v7161
    %v7165 = vmul.f32 %v35, %v7161
    %v7166 = vmul.f32 %v36, %v7161
    %v7167 = vmul.f32 %v37, %v7161
    %v7168 = vmul.f32 %v38, %v7161
    %v7169 = vmul.f32 %v39, %v7161
    %v7170 = vmul.f32 %v40, %v7161
    %v7171 = vmul.f32 %v41, %v7161
    %v7172 = vmul.f32 %v42, %v7161
    %v7173 = vmul.f32 %v43, %v7161
    %v7174 = vmul.f32 %v44, %v7161
    %v7175 = vmul.f32 %v45, %v7161
    %v7176 = vmul.f32 %v46, %v7161
    %v7177 = vmul.f32 %v47, %v7161
    %v7178 = vmul.f32 %v48, %v7161
    %v7179 = vmul.f32 %v49, %v7161
    %v7180 = vmul.f32 %v50, %v7161
    %v7181 = vmul.f32 %v51, %v7161
    %v7182 = vmul.f32 %v52, %v7161
    %v7183 = vmul.f32 %v53, %v7161
    %v7184 = vmul.f32 %v54, %v7161
    %v7185 = vmul.f32 %v55, %v7161
    %v7186 = vmul.f32 %v56, %v7161
    %v7187 = vmul.f32 %v57, %v7161
    %v7214 = vrot.slane %v7162, 2
    %v7215 = vrot.slane %v7163, 2
    %v7216 = vsel %vm909, %v7214, %v7215
    %v7217 = vrot.slane %v7164, 2
    %v7218 = vrot.slane %v7165, 2
    %v7219 = vsel %vm909, %v7217, %v7218
    %v7220 = vrot.slane %v7166, 2
    %v7221 = vrot.slane %v7167, 2
    %v7222 = vsel %vm909, %v7220, %v7221
    %v7223 = vrot.slane %v7168, 2
    %v7224 = vrot.slane %v7169, 2
    %v7225 = vsel %vm909, %v7223, %v7224
    %v7226 = vrot.slane %v7170, 2
    %v7227 = vrot.slane %v7171, 2
    %v7228 = vsel %vm909, %v7226, %v7227
    %v7229 = vrot.slane %v7172, 2
    %v7230 = vrot.slane %v7173, 2
    %v7231 = vsel %vm909, %v7229, %v7230
    %v7232 = vrot.slane %v7174, 2
    %v7233 = vrot.slane %v7175, 2
    %v7234 = vsel %vm909, %v7232, %v7233
    %v7235 = vrot.slane %v7176, 2
    %v7236 = vrot.slane %v7177, 2
    %v7237 = vsel %vm909, %v7235, %v7236
    %v7238 = vrot.slane %v7178, 2
    %v7239 = vrot.slane %v7179, 2
    %v7240 = vsel %vm909, %v7238, %v7239
    %v7241 = vrot.slane %v7180, 2
    %v7242 = vrot.slane %v7181, 2
    %v7243 = vsel %vm909, %v7241, %v7242
    %v7244 = vrot.slane %v7182, 2
    %v7245 = vrot.slane %v7183, 2
    %v7246 = vsel %vm909, %v7244, %v7245
    %v7247 = vrot.slane %v7184, 2
    %v7248 = vrot.slane %v7185, 2
    %v7249 = vsel %vm909, %v7247, %v7248
    %v7250 = vrot.slane %v7186, 2
    %v7251 = vrot.slane %v7187, 2
    %v7252 = vsel %vm909, %v7250, %v7251
    %v7279 = vadd.f32 %v6699, %v7216
    %v7280 = vadd.f32 %v6700, %v7215
    %v7281 = vadd.f32 %v6701, %v7219
    %v7282 = vadd.f32 %v6702, %v7218
    %v7283 = vadd.f32 %v6703, %v7222
    %v7284 = vadd.f32 %v6704, %v7221
    %v7285 = vadd.f32 %v6705, %v7225
    %v7286 = vadd.f32 %v6706, %v7224
    %v7287 = vadd.f32 %v6707, %v7228
    %v7288 = vadd.f32 %v6708, %v7227
    %v7289 = vadd.f32 %v6709, %v7231
    %v7290 = vadd.f32 %v6710, %v7230
    %v7291 = vadd.f32 %v6711, %v7234
    %v7292 = vadd.f32 %v6712, %v7233
    %v7293 = vadd.f32 %v6713, %v7237
    %v7294 = vadd.f32 %v6714, %v7236
    %v7295 = vadd.f32 %v6715, %v7240
    %v7296 = vadd.f32 %v6716, %v7239
    %v7297 = vadd.f32 %v6717, %v7243
    %v7298 = vadd.f32 %v6718, %v7242
    %v7299 = vadd.f32 %v6719, %v7246
    %v7300 = vadd.f32 %v6720, %v7245
    %v7301 = vadd.f32 %v6721, %v7249
    %v7302 = vadd.f32 %v6722, %v7248
    %v7303 = vadd.f32 %v6723, %v7252
    %v7304 = vadd.f32 %v6724, %v7251
    %s7305 = sld [smem:[#allocation2 + $0xf]]
    %v7306 = vstv %s7305
    %v7307 = vmul.f32 %v32, %v7306
    %v7308 = vmul.f32 %v33, %v7306
    %v7309 = vmul.f32 %v34, %v7306
    %v7310 = vmul.f32 %v35, %v7306
    %v7311 = vmul.f32 %v36, %v7306
    %v7312 = vmul.f32 %v37, %v7306
    %v7313 = vmul.f32 %v38, %v7306
    %v7314 = vmul.f32 %v39, %v7306
    %v7315 = vmul.f32 %v40, %v7306
    %v7316 = vmul.f32 %v41, %v7306
    %v7317 = vmul.f32 %v42, %v7306
    %v7318 = vmul.f32 %v43, %v7306
    %v7319 = vmul.f32 %v44, %v7306
    %v7320 = vmul.f32 %v45, %v7306
    %v7321 = vmul.f32 %v46, %v7306
    %v7322 = vmul.f32 %v47, %v7306
    %v7323 = vmul.f32 %v48, %v7306
    %v7324 = vmul.f32 %v49, %v7306
    %v7325 = vmul.f32 %v50, %v7306
    %v7326 = vmul.f32 %v51, %v7306
    %v7327 = vmul.f32 %v52, %v7306
    %v7328 = vmul.f32 %v53, %v7306
    %v7329 = vmul.f32 %v54, %v7306
    %v7330 = vmul.f32 %v55, %v7306
    %v7331 = vmul.f32 %v56, %v7306
    %v7332 = vmul.f32 %v57, %v7306
    %v7359 = vrot.slane %v7307, 3
    %v7360 = vrot.slane %v7308, 3
    %v7361 = vsel %vm1490, %v7359, %v7360
    %v7362 = vrot.slane %v7309, 3
    %v7363 = vrot.slane %v7310, 3
    %v7364 = vsel %vm1490, %v7362, %v7363
    %v7365 = vrot.slane %v7311, 3
    %v7366 = vrot.slane %v7312, 3
    %v7367 = vsel %vm1490, %v7365, %v7366
    %v7368 = vrot.slane %v7313, 3
    %v7369 = vrot.slane %v7314, 3
    %v7370 = vsel %vm1490, %v7368, %v7369
    %v7371 = vrot.slane %v7315, 3
    %v7372 = vrot.slane %v7316, 3
    %v7373 = vsel %vm1490, %v7371, %v7372
    %v7374 = vrot.slane %v7317, 3
    %v7375 = vrot.slane %v7318, 3
    %v7376 = vsel %vm1490, %v7374, %v7375
    %v7377 = vrot.slane %v7319, 3
    %v7378 = vrot.slane %v7320, 3
    %v7379 = vsel %vm1490, %v7377, %v7378
    %v7380 = vrot.slane %v7321, 3
    %v7381 = vrot.slane %v7322, 3
    %v7382 = vsel %vm1490, %v7380, %v7381
    %v7383 = vrot.slane %v7323, 3
    %v7384 = vrot.slane %v7324, 3
    %v7385 = vsel %vm1490, %v7383, %v7384
    %v7386 = vrot.slane %v7325, 3
    %v7387 = vrot.slane %v7326, 3
    %v7388 = vsel %vm1490, %v7386, %v7387
    %v7389 = vrot.slane %v7327, 3
    %v7390 = vrot.slane %v7328, 3
    %v7391 = vsel %vm1490, %v7389, %v7390
    %v7392 = vrot.slane %v7329, 3
    %v7393 = vrot.slane %v7330, 3
    %v7394 = vsel %vm1490, %v7392, %v7393
    %v7395 = vrot.slane %v7331, 3
    %v7396 = vrot.slane %v7332, 3
    %v7397 = vsel %vm1490, %v7395, %v7396
    %v7424 = vadd.f32 %v6844, %v7361
    %v7425 = vadd.f32 %v6845, %v7360
    %v7426 = vadd.f32 %v6846, %v7364
    %v7427 = vadd.f32 %v6847, %v7363
    %v7428 = vadd.f32 %v6848, %v7367
    %v7429 = vadd.f32 %v6849, %v7366
    %v7430 = vadd.f32 %v6850, %v7370
    %v7431 = vadd.f32 %v6851, %v7369
    %v7432 = vadd.f32 %v6852, %v7373
    %v7433 = vadd.f32 %v6853, %v7372
    %v7434 = vadd.f32 %v6854, %v7376
    %v7435 = vadd.f32 %v6855, %v7375
    %v7436 = vadd.f32 %v6856, %v7379
    %v7437 = vadd.f32 %v6857, %v7378
    %v7438 = vadd.f32 %v6858, %v7382
    %v7439 = vadd.f32 %v6859, %v7381
    %v7440 = vadd.f32 %v6860, %v7385
    %v7441 = vadd.f32 %v6861, %v7384
    %v7442 = vadd.f32 %v6862, %v7388
    %v7443 = vadd.f32 %v6863, %v7387
    %v7444 = vadd.f32 %v6864, %v7391
    %v7445 = vadd.f32 %v6865, %v7390
    %v7446 = vadd.f32 %v6866, %v7394
    %v7447 = vadd.f32 %v6867, %v7393
    %v7448 = vadd.f32 %v6868, %v7397
    %v7449 = vadd.f32 %v6869, %v7396
    %s7450 = sld [smem:[#allocation2 + $0x1f]]
    %v7451 = vstv %s7450
    %v7452 = vmul.f32 %v32, %v7451
    %v7453 = vmul.f32 %v33, %v7451
    %v7454 = vmul.f32 %v34, %v7451
    %v7455 = vmul.f32 %v35, %v7451
    %v7456 = vmul.f32 %v36, %v7451
    %v7457 = vmul.f32 %v37, %v7451
    %v7458 = vmul.f32 %v38, %v7451
    %v7459 = vmul.f32 %v39, %v7451
    %v7460 = vmul.f32 %v40, %v7451
    %v7461 = vmul.f32 %v41, %v7451
    %v7462 = vmul.f32 %v42, %v7451
    %v7463 = vmul.f32 %v43, %v7451
    %v7464 = vmul.f32 %v44, %v7451
    %v7465 = vmul.f32 %v45, %v7451
    %v7466 = vmul.f32 %v46, %v7451
    %v7467 = vmul.f32 %v47, %v7451
    %v7468 = vmul.f32 %v48, %v7451
    %v7469 = vmul.f32 %v49, %v7451
    %v7470 = vmul.f32 %v50, %v7451
    %v7471 = vmul.f32 %v51, %v7451
    %v7472 = vmul.f32 %v52, %v7451
    %v7473 = vmul.f32 %v53, %v7451
    %v7474 = vmul.f32 %v54, %v7451
    %v7475 = vmul.f32 %v55, %v7451
    %v7476 = vmul.f32 %v56, %v7451
    %v7477 = vmul.f32 %v57, %v7451
    %v7504 = vrot.slane %v7452, 3
    %v7505 = vrot.slane %v7453, 3
    %v7506 = vsel %vm1490, %v7504, %v7505
    %v7507 = vrot.slane %v7454, 3
    %v7508 = vrot.slane %v7455, 3
    %v7509 = vsel %vm1490, %v7507, %v7508
    %v7510 = vrot.slane %v7456, 3
    %v7511 = vrot.slane %v7457, 3
    %v7512 = vsel %vm1490, %v7510, %v7511
    %v7513 = vrot.slane %v7458, 3
    %v7514 = vrot.slane %v7459, 3
    %v7515 = vsel %vm1490, %v7513, %v7514
    %v7516 = vrot.slane %v7460, 3
    %v7517 = vrot.slane %v7461, 3
    %v7518 = vsel %vm1490, %v7516, %v7517
    %v7519 = vrot.slane %v7462, 3
    %v7520 = vrot.slane %v7463, 3
    %v7521 = vsel %vm1490, %v7519, %v7520
    %v7522 = vrot.slane %v7464, 3
    %v7523 = vrot.slane %v7465, 3
    %v7524 = vsel %vm1490, %v7522, %v7523
    %v7525 = vrot.slane %v7466, 3
    %v7526 = vrot.slane %v7467, 3
    %v7527 = vsel %vm1490, %v7525, %v7526
    %v7528 = vrot.slane %v7468, 3
    %v7529 = vrot.slane %v7469, 3
    %v7530 = vsel %vm1490, %v7528, %v7529
    %v7531 = vrot.slane %v7470, 3
    %v7532 = vrot.slane %v7471, 3
    %v7533 = vsel %vm1490, %v7531, %v7532
    %v7534 = vrot.slane %v7472, 3
    %v7535 = vrot.slane %v7473, 3
    %v7536 = vsel %vm1490, %v7534, %v7535
    %v7537 = vrot.slane %v7474, 3
    %v7538 = vrot.slane %v7475, 3
    %v7539 = vsel %vm1490, %v7537, %v7538
    %v7540 = vrot.slane %v7476, 3
    %v7541 = vrot.slane %v7477, 3
    %v7542 = vsel %vm1490, %v7540, %v7541
    %v7569 = vadd.f32 %v6989, %v7506
    %v7570 = vadd.f32 %v6990, %v7505
    %v7571 = vadd.f32 %v6991, %v7509
    %v7572 = vadd.f32 %v6992, %v7508
    %v7573 = vadd.f32 %v6993, %v7512
    %v7574 = vadd.f32 %v6994, %v7511
    %v7575 = vadd.f32 %v6995, %v7515
    %v7576 = vadd.f32 %v6996, %v7514
    %v7577 = vadd.f32 %v6997, %v7518
    %v7578 = vadd.f32 %v6998, %v7517
    %v7579 = vadd.f32 %v6999, %v7521
    %v7580 = vadd.f32 %v7000, %v7520
    %v7581 = vadd.f32 %v7001, %v7524
    %v7582 = vadd.f32 %v7002, %v7523
    %v7583 = vadd.f32 %v7003, %v7527
    %v7584 = vadd.f32 %v7004, %v7526
    %v7585 = vadd.f32 %v7005, %v7530
    %v7586 = vadd.f32 %v7006, %v7529
    %v7587 = vadd.f32 %v7007, %v7533
    %v7588 = vadd.f32 %v7008, %v7532
    %v7589 = vadd.f32 %v7009, %v7536
    %v7590 = vadd.f32 %v7010, %v7535
    %v7591 = vadd.f32 %v7011, %v7539
    %v7592 = vadd.f32 %v7012, %v7538
    %v7593 = vadd.f32 %v7013, %v7542
    %v7594 = vadd.f32 %v7014, %v7541
    %s7595 = sld [smem:[#allocation2 + $0x2f]]
    %v7596 = vstv %s7595
    %v7597 = vmul.f32 %v32, %v7596
    %v7598 = vmul.f32 %v33, %v7596
    %v7599 = vmul.f32 %v34, %v7596
    %v7600 = vmul.f32 %v35, %v7596
    %v7601 = vmul.f32 %v36, %v7596
    %v7602 = vmul.f32 %v37, %v7596
    %v7603 = vmul.f32 %v38, %v7596
    %v7604 = vmul.f32 %v39, %v7596
    %v7605 = vmul.f32 %v40, %v7596
    %v7606 = vmul.f32 %v41, %v7596
    %v7607 = vmul.f32 %v42, %v7596
    %v7608 = vmul.f32 %v43, %v7596
    %v7609 = vmul.f32 %v44, %v7596
    %v7610 = vmul.f32 %v45, %v7596
    %v7611 = vmul.f32 %v46, %v7596
    %v7612 = vmul.f32 %v47, %v7596
    %v7613 = vmul.f32 %v48, %v7596
    %v7614 = vmul.f32 %v49, %v7596
    %v7615 = vmul.f32 %v50, %v7596
    %v7616 = vmul.f32 %v51, %v7596
    %v7617 = vmul.f32 %v52, %v7596
    %v7618 = vmul.f32 %v53, %v7596
    %v7619 = vmul.f32 %v54, %v7596
    %v7620 = vmul.f32 %v55, %v7596
    %v7621 = vmul.f32 %v56, %v7596
    %v7622 = vmul.f32 %v57, %v7596
    %v7649 = vrot.slane %v7597, 3
    %v7650 = vrot.slane %v7598, 3
    %v7651 = vsel %vm1490, %v7649, %v7650
    %v7652 = vrot.slane %v7599, 3
    %v7653 = vrot.slane %v7600, 3
    %v7654 = vsel %vm1490, %v7652, %v7653
    %v7655 = vrot.slane %v7601, 3
    %v7656 = vrot.slane %v7602, 3
    %v7657 = vsel %vm1490, %v7655, %v7656
    %v7658 = vrot.slane %v7603, 3
    %v7659 = vrot.slane %v7604, 3
    %v7660 = vsel %vm1490, %v7658, %v7659
    %v7661 = vrot.slane %v7605, 3
    %v7662 = vrot.slane %v7606, 3
    %v7663 = vsel %vm1490, %v7661, %v7662
    %v7664 = vrot.slane %v7607, 3
    %v7665 = vrot.slane %v7608, 3
    %v7666 = vsel %vm1490, %v7664, %v7665
    %v7667 = vrot.slane %v7609, 3
    %v7668 = vrot.slane %v7610, 3
    %v7669 = vsel %vm1490, %v7667, %v7668
    %v7670 = vrot.slane %v7611, 3
    %v7671 = vrot.slane %v7612, 3
    %v7672 = vsel %vm1490, %v7670, %v7671
    %v7673 = vrot.slane %v7613, 3
    %v7674 = vrot.slane %v7614, 3
    %v7675 = vsel %vm1490, %v7673, %v7674
    %v7676 = vrot.slane %v7615, 3
    %v7677 = vrot.slane %v7616, 3
    %v7678 = vsel %vm1490, %v7676, %v7677
    %v7679 = vrot.slane %v7617, 3
    %v7680 = vrot.slane %v7618, 3
    %v7681 = vsel %vm1490, %v7679, %v7680
    %v7682 = vrot.slane %v7619, 3
    %v7683 = vrot.slane %v7620, 3
    %v7684 = vsel %vm1490, %v7682, %v7683
    %v7685 = vrot.slane %v7621, 3
    %v7686 = vrot.slane %v7622, 3
    %v7687 = vsel %vm1490, %v7685, %v7686
    %v7714 = vadd.f32 %v7134, %v7651
    %v7715 = vadd.f32 %v7135, %v7650
    %v7716 = vadd.f32 %v7136, %v7654
    %v7717 = vadd.f32 %v7137, %v7653
    %v7718 = vadd.f32 %v7138, %v7657
    %v7719 = vadd.f32 %v7139, %v7656
    %v7720 = vadd.f32 %v7140, %v7660
    %v7721 = vadd.f32 %v7141, %v7659
    %v7722 = vadd.f32 %v7142, %v7663
    %v7723 = vadd.f32 %v7143, %v7662
    %v7724 = vadd.f32 %v7144, %v7666
    %v7725 = vadd.f32 %v7145, %v7665
    %v7726 = vadd.f32 %v7146, %v7669
    %v7727 = vadd.f32 %v7147, %v7668
    %v7728 = vadd.f32 %v7148, %v7672
    %v7729 = vadd.f32 %v7149, %v7671
    %v7730 = vadd.f32 %v7150, %v7675
    %v7731 = vadd.f32 %v7151, %v7674
    %v7732 = vadd.f32 %v7152, %v7678
    %v7733 = vadd.f32 %v7153, %v7677
    %v7734 = vadd.f32 %v7154, %v7681
    %v7735 = vadd.f32 %v7155, %v7680
    %v7736 = vadd.f32 %v7156, %v7684
    %v7737 = vadd.f32 %v7157, %v7683
    %v7738 = vadd.f32 %v7158, %v7687
    %v7739 = vadd.f32 %v7159, %v7686
    %s7740 = sld [smem:[#allocation2 + $0x3f]]
    %v7741 = vstv %s7740
    %v7742 = vmul.f32 %v32, %v7741
    %v7743 = vmul.f32 %v33, %v7741
    %v7744 = vmul.f32 %v34, %v7741
    %v7745 = vmul.f32 %v35, %v7741
    %v7746 = vmul.f32 %v36, %v7741
    %v7747 = vmul.f32 %v37, %v7741
    %v7748 = vmul.f32 %v38, %v7741
    %v7749 = vmul.f32 %v39, %v7741
    %v7750 = vmul.f32 %v40, %v7741
    %v7751 = vmul.f32 %v41, %v7741
    %v7752 = vmul.f32 %v42, %v7741
    %v7753 = vmul.f32 %v43, %v7741
    %v7754 = vmul.f32 %v44, %v7741
    %v7755 = vmul.f32 %v45, %v7741
    %v7756 = vmul.f32 %v46, %v7741
    %v7757 = vmul.f32 %v47, %v7741
    %v7758 = vmul.f32 %v48, %v7741
    %v7759 = vmul.f32 %v49, %v7741
    %v7760 = vmul.f32 %v50, %v7741
    %v7761 = vmul.f32 %v51, %v7741
    %v7762 = vmul.f32 %v52, %v7741
    %v7763 = vmul.f32 %v53, %v7741
    %v7764 = vmul.f32 %v54, %v7741
    %v7765 = vmul.f32 %v55, %v7741
    %v7766 = vmul.f32 %v56, %v7741
    %v7767 = vmul.f32 %v57, %v7741
    %v7794 = vrot.slane %v7742, 3
    %v7795 = vrot.slane %v7743, 3
    %v7796 = vsel %vm1490, %v7794, %v7795
    %v7797 = vrot.slane %v7744, 3
    %v7798 = vrot.slane %v7745, 3
    %v7799 = vsel %vm1490, %v7797, %v7798
    %v7800 = vrot.slane %v7746, 3
    %v7801 = vrot.slane %v7747, 3
    %v7802 = vsel %vm1490, %v7800, %v7801
    %v7803 = vrot.slane %v7748, 3
    %v7804 = vrot.slane %v7749, 3
    %v7805 = vsel %vm1490, %v7803, %v7804
    %v7806 = vrot.slane %v7750, 3
    %v7807 = vrot.slane %v7751, 3
    %v7808 = vsel %vm1490, %v7806, %v7807
    %v7809 = vrot.slane %v7752, 3
    %v7810 = vrot.slane %v7753, 3
    %v7811 = vsel %vm1490, %v7809, %v7810
    %v7812 = vrot.slane %v7754, 3
    %v7813 = vrot.slane %v7755, 3
    %v7814 = vsel %vm1490, %v7812, %v7813
    %v7815 = vrot.slane %v7756, 3
    %v7816 = vrot.slane %v7757, 3
    %v7817 = vsel %vm1490, %v7815, %v7816
    %v7818 = vrot.slane %v7758, 3
    %v7819 = vrot.slane %v7759, 3
    %v7820 = vsel %vm1490, %v7818, %v7819
    %v7821 = vrot.slane %v7760, 3
    %v7822 = vrot.slane %v7761, 3
    %v7823 = vsel %vm1490, %v7821, %v7822
    %v7824 = vrot.slane %v7762, 3
    %v7825 = vrot.slane %v7763, 3
    %v7826 = vsel %vm1490, %v7824, %v7825
    %v7827 = vrot.slane %v7764, 3
    %v7828 = vrot.slane %v7765, 3
    %v7829 = vsel %vm1490, %v7827, %v7828
    %v7830 = vrot.slane %v7766, 3
    %v7831 = vrot.slane %v7767, 3
    %v7832 = vsel %vm1490, %v7830, %v7831
    %v7859 = vadd.f32 %v7279, %v7796
    %v7860 = vadd.f32 %v7280, %v7795
    %v7861 = vadd.f32 %v7281, %v7799
    %v7862 = vadd.f32 %v7282, %v7798
    %v7863 = vadd.f32 %v7283, %v7802
    %v7864 = vadd.f32 %v7284, %v7801
    %v7865 = vadd.f32 %v7285, %v7805
    %v7866 = vadd.f32 %v7286, %v7804
    %v7867 = vadd.f32 %v7287, %v7808
    %v7868 = vadd.f32 %v7288, %v7807
    %v7869 = vadd.f32 %v7289, %v7811
    %v7870 = vadd.f32 %v7290, %v7810
    %v7871 = vadd.f32 %v7291, %v7814
    %v7872 = vadd.f32 %v7292, %v7813
    %v7873 = vadd.f32 %v7293, %v7817
    %v7874 = vadd.f32 %v7294, %v7816
    %v7875 = vadd.f32 %v7295, %v7820
    %v7876 = vadd.f32 %v7296, %v7819
    %v7877 = vadd.f32 %v7297, %v7823
    %v7878 = vadd.f32 %v7298, %v7822
    %v7879 = vadd.f32 %v7299, %v7826
    %v7880 = vadd.f32 %v7300, %v7825
    %v7881 = vadd.f32 %v7301, %v7829
    %v7882 = vadd.f32 %v7302, %v7828
    %v7883 = vadd.f32 %v7303, %v7832
    %v7884 = vadd.f32 %v7304, %v7831
    %vm7885 = vcmask 15360
    %7886 = vst.msk [vmem:[%s2] sm:$0xff] %vm7885, %v7424
    %vm7887 = vcmask 12288
    %7888 = vst.msk [vmem:[%s2 + $0x8] sm:$0x1f] %vm7887, %v7425
    %7889 = vst.msk [vmem:[%s2 + $0x10] sm:$0xff] %vm7885, %v7426
    %7890 = vst.msk [vmem:[%s2 + $0x18] sm:$0x1f] %vm7887, %v7427
    %7891 = vst.msk [vmem:[%s2 + $0x20] sm:$0xff] %vm7885, %v7428
    %7892 = vst.msk [vmem:[%s2 + $0x28] sm:$0x1f] %vm7887, %v7429
    %7893 = vst.msk [vmem:[%s2 + $0x30] sm:$0xff] %vm7885, %v7430
    %7894 = vst.msk [vmem:[%s2 + $0x38] sm:$0x1f] %vm7887, %v7431
    %7895 = vst.msk [vmem:[%s2 + $0x40] sm:$0xff] %vm7885, %v7432
    %7896 = vst.msk [vmem:[%s2 + $0x48] sm:$0x1f] %vm7887, %v7433
    %7897 = vst.msk [vmem:[%s2 + $0x50] sm:$0xff] %vm7885, %v7434
    %7898 = vst.msk [vmem:[%s2 + $0x58] sm:$0x1f] %vm7887, %v7435
    %7899 = vst.msk [vmem:[%s2 + $0x60] sm:$0xff] %vm7885, %v7436
    %7900 = vst.msk [vmem:[%s2 + $0x68] sm:$0x1f] %vm7887, %v7437
    %7901 = vst.msk [vmem:[%s2 + $0x70] sm:$0xff] %vm7885, %v7438
    %7902 = vst.msk [vmem:[%s2 + $0x78] sm:$0x1f] %vm7887, %v7439
    %7903 = vst.msk [vmem:[%s2 + $0x80] sm:$0xff] %vm7885, %v7440
    %7904 = vst.msk [vmem:[%s2 + $0x88] sm:$0x1f] %vm7887, %v7441
    %7905 = vst.msk [vmem:[%s2 + $0x90] sm:$0xff] %vm7885, %v7442
    %7906 = vst.msk [vmem:[%s2 + $0x98] sm:$0x1f] %vm7887, %v7443
    %7907 = vst.msk [vmem:[%s2 + $0xa0] sm:$0xff] %vm7885, %v7444
    %7908 = vst.msk [vmem:[%s2 + $0xa8] sm:$0x1f] %vm7887, %v7445
    %7909 = vst.msk [vmem:[%s2 + $0xb0] sm:$0xff] %vm7885, %v7446
    %7910 = vst.msk [vmem:[%s2 + $0xb8] sm:$0x1f] %vm7887, %v7447
    %7911 = vst.msk [vmem:[%s2 + $0xc0] sm:$0xff] %vm7885, %v7448
    %7912 = vst.msk [vmem:[%s2 + $0xc8] sm:$0x1f] %vm7887, %v7449
    %v7913 = vmax.f32 %v7424, 0.0
    %v7914 = vmax.f32 %v7425, 0.0
    %v7915 = vmax.f32 %v7426, 0.0
    %v7916 = vmax.f32 %v7427, 0.0
    %v7917 = vmax.f32 %v7428, 0.0
    %v7918 = vmax.f32 %v7429, 0.0
    %v7919 = vmax.f32 %v7430, 0.0
    %v7920 = vmax.f32 %v7431, 0.0
    %v7921 = vmax.f32 %v7432, 0.0
    %v7922 = vmax.f32 %v7433, 0.0
    %v7923 = vmax.f32 %v7434, 0.0
    %v7924 = vmax.f32 %v7435, 0.0
    %v7925 = vmax.f32 %v7436, 0.0
    %v7926 = vmax.f32 %v7437, 0.0
    %v7927 = vmax.f32 %v7438, 0.0
    %v7928 = vmax.f32 %v7439, 0.0
    %v7929 = vmax.f32 %v7440, 0.0
    %v7930 = vmax.f32 %v7441, 0.0
    %v7931 = vmax.f32 %v7442, 0.0
    %v7932 = vmax.f32 %v7443, 0.0
    %v7933 = vmax.f32 %v7444, 0.0
    %v7934 = vmax.f32 %v7445, 0.0
    %v7935 = vmax.f32 %v7446, 0.0
    %v7936 = vmax.f32 %v7447, 0.0
    %v7937 = vmax.f32 %v7448, 0.0
    %v7938 = vmax.f32 %v7449, 0.0
    %7939 = vst.msk [vmem:[%s3] sm:$0xff] %vm7885, %v7913
    %7940 = vst.msk [vmem:[%s3 + $0x8] sm:$0x1f] %vm7887, %v7914
    %7941 = vst.msk [vmem:[%s3 + $0x10] sm:$0xff] %vm7885, %v7915
    %7942 = vst.msk [vmem:[%s3 + $0x18] sm:$0x1f] %vm7887, %v7916
    %7943 = vst.msk [vmem:[%s3 + $0x20] sm:$0xff] %vm7885, %v7917
    %7944 = vst.msk [vmem:[%s3 + $0x28] sm:$0x1f] %vm7887, %v7918
    %7945 = vst.msk [vmem:[%s3 + $0x30] sm:$0xff] %vm7885, %v7919
    %7946 = vst.msk [vmem:[%s3 + $0x38] sm:$0x1f] %vm7887, %v7920
    %7947 = vst.msk [vmem:[%s3 + $0x40] sm:$0xff] %vm7885, %v7921
    %7948 = vst.msk [vmem:[%s3 + $0x48] sm:$0x1f] %vm7887, %v7922
    %7949 = vst.msk [vmem:[%s3 + $0x50] sm:$0xff] %vm7885, %v7923
    %7950 = vst.msk [vmem:[%s3 + $0x58] sm:$0x1f] %vm7887, %v7924
    %7951 = vst.msk [vmem:[%s3 + $0x60] sm:$0xff] %vm7885, %v7925
    %7952 = vst.msk [vmem:[%s3 + $0x68] sm:$0x1f] %vm7887, %v7926
    %7953 = vst.msk [vmem:[%s3 + $0x70] sm:$0xff] %vm7885, %v7927
    %7954 = vst.msk [vmem:[%s3 + $0x78] sm:$0x1f] %vm7887, %v7928
    %7955 = vst.msk [vmem:[%s3 + $0x80] sm:$0xff] %vm7885, %v7929
    %7956 = vst.msk [vmem:[%s3 + $0x88] sm:$0x1f] %vm7887, %v7930
    %7957 = vst.msk [vmem:[%s3 + $0x90] sm:$0xff] %vm7885, %v7931
    %7958 = vst.msk [vmem:[%s3 + $0x98] sm:$0x1f] %vm7887, %v7932
    %7959 = vst.msk [vmem:[%s3 + $0xa0] sm:$0xff] %vm7885, %v7933
    %7960 = vst.msk [vmem:[%s3 + $0xa8] sm:$0x1f] %vm7887, %v7934
    %7961 = vst.msk [vmem:[%s3 + $0xb0] sm:$0xff] %vm7885, %v7935
    %7962 = vst.msk [vmem:[%s3 + $0xb8] sm:$0x1f] %vm7887, %v7936
    %7963 = vst.msk [vmem:[%s3 + $0xc0] sm:$0xff] %vm7885, %v7937
    %7964 = vst.msk [vmem:[%s3 + $0xc8] sm:$0x1f] %vm7887, %v7938
    %s7965 = scalar_lea.vmem %s2, 208
    %7966 = vst.msk [vmem:[%s7965] sm:$0xff] %vm7885, %v7569
    %7967 = vst.msk [vmem:[%s7965 + $0x8] sm:$0x1f] %vm7887, %v7570
    %7968 = vst.msk [vmem:[%s7965 + $0x10] sm:$0xff] %vm7885, %v7571
    %7969 = vst.msk [vmem:[%s7965 + $0x18] sm:$0x1f] %vm7887, %v7572
    %7970 = vst.msk [vmem:[%s7965 + $0x20] sm:$0xff] %vm7885, %v7573
    %7971 = vst.msk [vmem:[%s7965 + $0x28] sm:$0x1f] %vm7887, %v7574
    %7972 = vst.msk [vmem:[%s7965 + $0x30] sm:$0xff] %vm7885, %v7575
    %7973 = vst.msk [vmem:[%s7965 + $0x38] sm:$0x1f] %vm7887, %v7576
    %7974 = vst.msk [vmem:[%s7965 + $0x40] sm:$0xff] %vm7885, %v7577
    %7975 = vst.msk [vmem:[%s7965 + $0x48] sm:$0x1f] %vm7887, %v7578
    %7976 = vst.msk [vmem:[%s7965 + $0x50] sm:$0xff] %vm7885, %v7579
    %7977 = vst.msk [vmem:[%s7965 + $0x58] sm:$0x1f] %vm7887, %v7580
    %7978 = vst.msk [vmem:[%s7965 + $0x60] sm:$0xff] %vm7885, %v7581
    %7979 = vst.msk [vmem:[%s7965 + $0x68] sm:$0x1f] %vm7887, %v7582
    %7980 = vst.msk [vmem:[%s7965 + $0x70] sm:$0xff] %vm7885, %v7583
    %7981 = vst.msk [vmem:[%s7965 + $0x78] sm:$0x1f] %vm7887, %v7584
    %7982 = vst.msk [vmem:[%s7965 + $0x80] sm:$0xff] %vm7885, %v7585
    %7983 = vst.msk [vmem:[%s7965 + $0x88] sm:$0x1f] %vm7887, %v7586
    %7984 = vst.msk [vmem:[%s7965 + $0x90] sm:$0xff] %vm7885, %v7587
    %7985 = vst.msk [vmem:[%s7965 + $0x98] sm:$0x1f] %vm7887, %v7588
    %7986 = vst.msk [vmem:[%s7965 + $0xa0] sm:$0xff] %vm7885, %v7589
    %7987 = vst.msk [vmem:[%s7965 + $0xa8] sm:$0x1f] %vm7887, %v7590
    %7988 = vst.msk [vmem:[%s7965 + $0xb0] sm:$0xff] %vm7885, %v7591
    %7989 = vst.msk [vmem:[%s7965 + $0xb8] sm:$0x1f] %vm7887, %v7592
    %7990 = vst.msk [vmem:[%s7965 + $0xc0] sm:$0xff] %vm7885, %v7593
    %7991 = vst.msk [vmem:[%s7965 + $0xc8] sm:$0x1f] %vm7887, %v7594
    %v7992 = vmax.f32 %v7569, 0.0
    %v7993 = vmax.f32 %v7570, 0.0
    %v7994 = vmax.f32 %v7571, 0.0
    %v7995 = vmax.f32 %v7572, 0.0
    %v7996 = vmax.f32 %v7573, 0.0
    %v7997 = vmax.f32 %v7574, 0.0
    %v7998 = vmax.f32 %v7575, 0.0
    %v7999 = vmax.f32 %v7576, 0.0
    %v8000 = vmax.f32 %v7577, 0.0
    %v8001 = vmax.f32 %v7578, 0.0
    %v8002 = vmax.f32 %v7579, 0.0
    %v8003 = vmax.f32 %v7580, 0.0
    %v8004 = vmax.f32 %v7581, 0.0
    %v8005 = vmax.f32 %v7582, 0.0
    %v8006 = vmax.f32 %v7583, 0.0
    %v8007 = vmax.f32 %v7584, 0.0
    %v8008 = vmax.f32 %v7585, 0.0
    %v8009 = vmax.f32 %v7586, 0.0
    %v8010 = vmax.f32 %v7587, 0.0
    %v8011 = vmax.f32 %v7588, 0.0
    %v8012 = vmax.f32 %v7589, 0.0
    %v8013 = vmax.f32 %v7590, 0.0
    %v8014 = vmax.f32 %v7591, 0.0
    %v8015 = vmax.f32 %v7592, 0.0
    %v8016 = vmax.f32 %v7593, 0.0
    %v8017 = vmax.f32 %v7594, 0.0
    %s8018 = scalar_lea.vmem %s3, 208
    %8019 = vst.msk [vmem:[%s8018] sm:$0xff] %vm7885, %v7992
    %8020 = vst.msk [vmem:[%s8018 + $0x8] sm:$0x1f] %vm7887, %v7993
    %8021 = vst.msk [vmem:[%s8018 + $0x10] sm:$0xff] %vm7885, %v7994
    %8022 = vst.msk [vmem:[%s8018 + $0x18] sm:$0x1f] %vm7887, %v7995
    %8023 = vst.msk [vmem:[%s8018 + $0x20] sm:$0xff] %vm7885, %v7996
    %8024 = vst.msk [vmem:[%s8018 + $0x28] sm:$0x1f] %vm7887, %v7997
    %8025 = vst.msk [vmem:[%s8018 + $0x30] sm:$0xff] %vm7885, %v7998
    %8026 = vst.msk [vmem:[%s8018 + $0x38] sm:$0x1f] %vm7887, %v7999
    %8027 = vst.msk [vmem:[%s8018 + $0x40] sm:$0xff] %vm7885, %v8000
    %8028 = vst.msk [vmem:[%s8018 + $0x48] sm:$0x1f] %vm7887, %v8001
    %8029 = vst.msk [vmem:[%s8018 + $0x50] sm:$0xff] %vm7885, %v8002
    %8030 = vst.msk [vmem:[%s8018 + $0x58] sm:$0x1f] %vm7887, %v8003
    %8031 = vst.msk [vmem:[%s8018 + $0x60] sm:$0xff] %vm7885, %v8004
    %8032 = vst.msk [vmem:[%s8018 + $0x68] sm:$0x1f] %vm7887, %v8005
    %8033 = vst.msk [vmem:[%s8018 + $0x70] sm:$0xff] %vm7885, %v8006
    %8034 = vst.msk [vmem:[%s8018 + $0x78] sm:$0x1f] %vm7887, %v8007
    %8035 = vst.msk [vmem:[%s8018 + $0x80] sm:$0xff] %vm7885, %v8008
    %8036 = vst.msk [vmem:[%s8018 + $0x88] sm:$0x1f] %vm7887, %v8009
    %8037 = vst.msk [vmem:[%s8018 + $0x90] sm:$0xff] %vm7885, %v8010
    %8038 = vst.msk [vmem:[%s8018 + $0x98] sm:$0x1f] %vm7887, %v8011
    %8039 = vst.msk [vmem:[%s8018 + $0xa0] sm:$0xff] %vm7885, %v8012
    %8040 = vst.msk [vmem:[%s8018 + $0xa8] sm:$0x1f] %vm7887, %v8013
    %8041 = vst.msk [vmem:[%s8018 + $0xb0] sm:$0xff] %vm7885, %v8014
    %8042 = vst.msk [vmem:[%s8018 + $0xb8] sm:$0x1f] %vm7887, %v8015
    %8043 = vst.msk [vmem:[%s8018 + $0xc0] sm:$0xff] %vm7885, %v8016
    %8044 = vst.msk [vmem:[%s8018 + $0xc8] sm:$0x1f] %vm7887, %v8017
    %s8045 = scalar_lea.vmem %s2, 416
    %8046 = vst.msk [vmem:[%s8045] sm:$0xff] %vm7885, %v7714
    %8047 = vst.msk [vmem:[%s8045 + $0x8] sm:$0x1f] %vm7887, %v7715
    %8048 = vst.msk [vmem:[%s8045 + $0x10] sm:$0xff] %vm7885, %v7716
    %8049 = vst.msk [vmem:[%s8045 + $0x18] sm:$0x1f] %vm7887, %v7717
    %8050 = vst.msk [vmem:[%s8045 + $0x20] sm:$0xff] %vm7885, %v7718
    %8051 = vst.msk [vmem:[%s8045 + $0x28] sm:$0x1f] %vm7887, %v7719
    %8052 = vst.msk [vmem:[%s8045 + $0x30] sm:$0xff] %vm7885, %v7720
    %8053 = vst.msk [vmem:[%s8045 + $0x38] sm:$0x1f] %vm7887, %v7721
    %8054 = vst.msk [vmem:[%s8045 + $0x40] sm:$0xff] %vm7885, %v7722
    %8055 = vst.msk [vmem:[%s8045 + $0x48] sm:$0x1f] %vm7887, %v7723
    %8056 = vst.msk [vmem:[%s8045 + $0x50] sm:$0xff] %vm7885, %v7724
    %8057 = vst.msk [vmem:[%s8045 + $0x58] sm:$0x1f] %vm7887, %v7725
    %8058 = vst.msk [vmem:[%s8045 + $0x60] sm:$0xff] %vm7885, %v7726
    %8059 = vst.msk [vmem:[%s8045 + $0x68] sm:$0x1f] %vm7887, %v7727
    %8060 = vst.msk [vmem:[%s8045 + $0x70] sm:$0xff] %vm7885, %v7728
    %8061 = vst.msk [vmem:[%s8045 + $0x78] sm:$0x1f] %vm7887, %v7729
    %8062 = vst.msk [vmem:[%s8045 + $0x80] sm:$0xff] %vm7885, %v7730
    %8063 = vst.msk [vmem:[%s8045 + $0x88] sm:$0x1f] %vm7887, %v7731
    %8064 = vst.msk [vmem:[%s8045 + $0x90] sm:$0xff] %vm7885, %v7732
    %8065 = vst.msk [vmem:[%s8045 + $0x98] sm:$0x1f] %vm7887, %v7733
    %8066 = vst.msk [vmem:[%s8045 + $0xa0] sm:$0xff] %vm7885, %v7734
    %8067 = vst.msk [vmem:[%s8045 + $0xa8] sm:$0x1f] %vm7887, %v7735
    %8068 = vst.msk [vmem:[%s8045 + $0xb0] sm:$0xff] %vm7885, %v7736
    %8069 = vst.msk [vmem:[%s8045 + $0xb8] sm:$0x1f] %vm7887, %v7737
    %8070 = vst.msk [vmem:[%s8045 + $0xc0] sm:$0xff] %vm7885, %v7738
    %8071 = vst.msk [vmem:[%s8045 + $0xc8] sm:$0x1f] %vm7887, %v7739
    %v8072 = vmax.f32 %v7714, 0.0
    %v8073 = vmax.f32 %v7715, 0.0
    %v8074 = vmax.f32 %v7716, 0.0
    %v8075 = vmax.f32 %v7717, 0.0
    %v8076 = vmax.f32 %v7718, 0.0
    %v8077 = vmax.f32 %v7719, 0.0
    %v8078 = vmax.f32 %v7720, 0.0
    %v8079 = vmax.f32 %v7721, 0.0
    %v8080 = vmax.f32 %v7722, 0.0
    %v8081 = vmax.f32 %v7723, 0.0
    %v8082 = vmax.f32 %v7724, 0.0
    %v8083 = vmax.f32 %v7725, 0.0
    %v8084 = vmax.f32 %v7726, 0.0
    %v8085 = vmax.f32 %v7727, 0.0
    %v8086 = vmax.f32 %v7728, 0.0
    %v8087 = vmax.f32 %v7729, 0.0
    %v8088 = vmax.f32 %v7730, 0.0
    %v8089 = vmax.f32 %v7731, 0.0
    %v8090 = vmax.f32 %v7732, 0.0
    %v8091 = vmax.f32 %v7733, 0.0
    %v8092 = vmax.f32 %v7734, 0.0
    %v8093 = vmax.f32 %v7735, 0.0
    %v8094 = vmax.f32 %v7736, 0.0
    %v8095 = vmax.f32 %v7737, 0.0
    %v8096 = vmax.f32 %v7738, 0.0
    %v8097 = vmax.f32 %v7739, 0.0
    %s8098 = scalar_lea.vmem %s3, 416
    %8099 = vst.msk [vmem:[%s8098] sm:$0xff] %vm7885, %v8072
    %8100 = vst.msk [vmem:[%s8098 + $0x8] sm:$0x1f] %vm7887, %v8073
    %8101 = vst.msk [vmem:[%s8098 + $0x10] sm:$0xff] %vm7885, %v8074
    %8102 = vst.msk [vmem:[%s8098 + $0x18] sm:$0x1f] %vm7887, %v8075
    %8103 = vst.msk [vmem:[%s8098 + $0x20] sm:$0xff] %vm7885, %v8076
    %8104 = vst.msk [vmem:[%s8098 + $0x28] sm:$0x1f] %vm7887, %v8077
    %8105 = vst.msk [vmem:[%s8098 + $0x30] sm:$0xff] %vm7885, %v8078
    %8106 = vst.msk [vmem:[%s8098 + $0x38] sm:$0x1f] %vm7887, %v8079
    %8107 = vst.msk [vmem:[%s8098 + $0x40] sm:$0xff] %vm7885, %v8080
    %8108 = vst.msk [vmem:[%s8098 + $0x48] sm:$0x1f] %vm7887, %v8081
    %8109 = vst.msk [vmem:[%s8098 + $0x50] sm:$0xff] %vm7885, %v8082
    %8110 = vst.msk [vmem:[%s8098 + $0x58] sm:$0x1f] %vm7887, %v8083
    %8111 = vst.msk [vmem:[%s8098 + $0x60] sm:$0xff] %vm7885, %v8084
    %8112 = vst.msk [vmem:[%s8098 + $0x68] sm:$0x1f] %vm7887, %v8085
    %8113 = vst.msk [vmem:[%s8098 + $0x70] sm:$0xff] %vm7885, %v8086
    %8114 = vst.msk [vmem:[%s8098 + $0x78] sm:$0x1f] %vm7887, %v8087
    %8115 = vst.msk [vmem:[%s8098 + $0x80] sm:$0xff] %vm7885, %v8088
    %8116 = vst.msk [vmem:[%s8098 + $0x88] sm:$0x1f] %vm7887, %v8089
    %8117 = vst.msk [vmem:[%s8098 + $0x90] sm:$0xff] %vm7885, %v8090
    %8118 = vst.msk [vmem:[%s8098 + $0x98] sm:$0x1f] %vm7887, %v8091
    %8119 = vst.msk [vmem:[%s8098 + $0xa0] sm:$0xff] %vm7885, %v8092
    %8120 = vst.msk [vmem:[%s8098 + $0xa8] sm:$0x1f] %vm7887, %v8093
    %8121 = vst.msk [vmem:[%s8098 + $0xb0] sm:$0xff] %vm7885, %v8094
    %8122 = vst.msk [vmem:[%s8098 + $0xb8] sm:$0x1f] %vm7887, %v8095
    %8123 = vst.msk [vmem:[%s8098 + $0xc0] sm:$0xff] %vm7885, %v8096
    %8124 = vst.msk [vmem:[%s8098 + $0xc8] sm:$0x1f] %vm7887, %v8097
    %s8125 = scalar_lea.vmem %s2, 624
    %8126 = vst.msk [vmem:[%s8125] sm:$0xff] %vm7885, %v7859
    %8127 = vst.msk [vmem:[%s8125 + $0x8] sm:$0x1f] %vm7887, %v7860
    %8128 = vst.msk [vmem:[%s8125 + $0x10] sm:$0xff] %vm7885, %v7861
    %8129 = vst.msk [vmem:[%s8125 + $0x18] sm:$0x1f] %vm7887, %v7862
    %8130 = vst.msk [vmem:[%s8125 + $0x20] sm:$0xff] %vm7885, %v7863
    %8131 = vst.msk [vmem:[%s8125 + $0x28] sm:$0x1f] %vm7887, %v7864
    %8132 = vst.msk [vmem:[%s8125 + $0x30] sm:$0xff] %vm7885, %v7865
    %8133 = vst.msk [vmem:[%s8125 + $0x38] sm:$0x1f] %vm7887, %v7866
    %8134 = vst.msk [vmem:[%s8125 + $0x40] sm:$0xff] %vm7885, %v7867
    %8135 = vst.msk [vmem:[%s8125 + $0x48] sm:$0x1f] %vm7887, %v7868
    %8136 = vst.msk [vmem:[%s8125 + $0x50] sm:$0xff] %vm7885, %v7869
    %8137 = vst.msk [vmem:[%s8125 + $0x58] sm:$0x1f] %vm7887, %v7870
    %8138 = vst.msk [vmem:[%s8125 + $0x60] sm:$0xff] %vm7885, %v7871
    %8139 = vst.msk [vmem:[%s8125 + $0x68] sm:$0x1f] %vm7887, %v7872
    %8140 = vst.msk [vmem:[%s8125 + $0x70] sm:$0xff] %vm7885, %v7873
    %8141 = vst.msk [vmem:[%s8125 + $0x78] sm:$0x1f] %vm7887, %v7874
    %8142 = vst.msk [vmem:[%s8125 + $0x80] sm:$0xff] %vm7885, %v7875
    %8143 = vst.msk [vmem:[%s8125 + $0x88] sm:$0x1f] %vm7887, %v7876
    %8144 = vst.msk [vmem:[%s8125 + $0x90] sm:$0xff] %vm7885, %v7877
    %8145 = vst.msk [vmem:[%s8125 + $0x98] sm:$0x1f] %vm7887, %v7878
    %8146 = vst.msk [vmem:[%s8125 + $0xa0] sm:$0xff] %vm7885, %v7879
    %8147 = vst.msk [vmem:[%s8125 + $0xa8] sm:$0x1f] %vm7887, %v7880
    %8148 = vst.msk [vmem:[%s8125 + $0xb0] sm:$0xff] %vm7885, %v7881
    %8149 = vst.msk [vmem:[%s8125 + $0xb8] sm:$0x1f] %vm7887, %v7882
    %8150 = vst.msk [vmem:[%s8125 + $0xc0] sm:$0xff] %vm7885, %v7883
    %8151 = vst.msk [vmem:[%s8125 + $0xc8] sm:$0x1f] %vm7887, %v7884
    %v8152 = vmax.f32 %v7859, 0.0
    %v8153 = vmax.f32 %v7860, 0.0
    %v8154 = vmax.f32 %v7861, 0.0
    %v8155 = vmax.f32 %v7862, 0.0
    %v8156 = vmax.f32 %v7863, 0.0
    %v8157 = vmax.f32 %v7864, 0.0
    %v8158 = vmax.f32 %v7865, 0.0
    %v8159 = vmax.f32 %v7866, 0.0
    %v8160 = vmax.f32 %v7867, 0.0
    %v8161 = vmax.f32 %v7868, 0.0
    %v8162 = vmax.f32 %v7869, 0.0
    %v8163 = vmax.f32 %v7870, 0.0
    %v8164 = vmax.f32 %v7871, 0.0
    %v8165 = vmax.f32 %v7872, 0.0
    %v8166 = vmax.f32 %v7873, 0.0
    %v8167 = vmax.f32 %v7874, 0.0
    %v8168 = vmax.f32 %v7875, 0.0
    %v8169 = vmax.f32 %v7876, 0.0
    %v8170 = vmax.f32 %v7877, 0.0
    %v8171 = vmax.f32 %v7878, 0.0
    %v8172 = vmax.f32 %v7879, 0.0
    %v8173 = vmax.f32 %v7880, 0.0
    %v8174 = vmax.f32 %v7881, 0.0
    %v8175 = vmax.f32 %v7882, 0.0
    %v8176 = vmax.f32 %v7883, 0.0
    %v8177 = vmax.f32 %v7884, 0.0
    %s8178 = scalar_lea.vmem %s3, 624
    %8179 = vst.msk [vmem:[%s8178] sm:$0xff] %vm7885, %v8152
    %8180 = vst.msk [vmem:[%s8178 + $0x8] sm:$0x1f] %vm7887, %v8153
    %8181 = vst.msk [vmem:[%s8178 + $0x10] sm:$0xff] %vm7885, %v8154
    %8182 = vst.msk [vmem:[%s8178 + $0x18] sm:$0x1f] %vm7887, %v8155
    %8183 = vst.msk [vmem:[%s8178 + $0x20] sm:$0xff] %vm7885, %v8156
    %8184 = vst.msk [vmem:[%s8178 + $0x28] sm:$0x1f] %vm7887, %v8157
    %8185 = vst.msk [vmem:[%s8178 + $0x30] sm:$0xff] %vm7885, %v8158
    %8186 = vst.msk [vmem:[%s8178 + $0x38] sm:$0x1f] %vm7887, %v8159
    %8187 = vst.msk [vmem:[%s8178 + $0x40] sm:$0xff] %vm7885, %v8160
    %8188 = vst.msk [vmem:[%s8178 + $0x48] sm:$0x1f] %vm7887, %v8161
    %8189 = vst.msk [vmem:[%s8178 + $0x50] sm:$0xff] %vm7885, %v8162
    %8190 = vst.msk [vmem:[%s8178 + $0x58] sm:$0x1f] %vm7887, %v8163
    %8191 = vst.msk [vmem:[%s8178 + $0x60] sm:$0xff] %vm7885, %v8164
    %8192 = vst.msk [vmem:[%s8178 + $0x68] sm:$0x1f] %vm7887, %v8165
    %8193 = vst.msk [vmem:[%s8178 + $0x70] sm:$0xff] %vm7885, %v8166
    %8194 = vst.msk [vmem:[%s8178 + $0x78] sm:$0x1f] %vm7887, %v8167
    %8195 = vst.msk [vmem:[%s8178 + $0x80] sm:$0xff] %vm7885, %v8168
    %8196 = vst.msk [vmem:[%s8178 + $0x88] sm:$0x1f] %vm7887, %v8169
    %8197 = vst.msk [vmem:[%s8178 + $0x90] sm:$0xff] %vm7885, %v8170
    %8198 = vst.msk [vmem:[%s8178 + $0x98] sm:$0x1f] %vm7887, %v8171
    %8199 = vst.msk [vmem:[%s8178 + $0xa0] sm:$0xff] %vm7885, %v8172
    %8200 = vst.msk [vmem:[%s8178 + $0xa8] sm:$0x1f] %vm7887, %v8173
    %8201 = vst.msk [vmem:[%s8178 + $0xb0] sm:$0xff] %vm7885, %v8174
    %8202 = vst.msk [vmem:[%s8178 + $0xb8] sm:$0x1f] %vm7887, %v8175
    %8203 = vst.msk [vmem:[%s8178 + $0xc0] sm:$0xff] %vm7885, %v8176
    %8204 = vst.msk [vmem:[%s8178 + $0xc8] sm:$0x1f] %vm7887, %v8177
    // Predicated region
    $region14: #{tpu_custom_call.1} parent=1 // pred_check
      _
    $region15: #{tpu_custom_call.1} parent=1 // pred_check_branch
      %8206 = sbr.rel (0) target = $region17
    $region16: #{tpu_custom_call.1} parent=1 // pred_region
      _
    $region17: #{tpu_custom_call.1} parent=1 // pred_fallthru
      _
    // Predicated region
    $region18: #{tpu_custom_call.1} parent=1 // pred_check
      _
    $region19: #{tpu_custom_call.1} parent=1 // pred_check_branch
      %8208 = sbr.rel (0) target = $region21
    $region20: #{tpu_custom_call.1} parent=1 // pred_region
      _
    $region21: #{tpu_custom_call.1} parent=1 // pred_fallthru
      _
    // Predicated region
    $region22: #{tpu_custom_call.1} parent=1 // pred_check
      _
    $region23: #{tpu_custom_call.1} parent=1 // pred_check_branch
      %8210 = sbr.rel (0) target = $region25
    $region24: #{tpu_custom_call.1} parent=1 // pred_region
      _
    $region25: #{tpu_custom_call.1} parent=1 // pred_fallthru
      _
    // Predicated region
    $region26: #{tpu_custom_call.1} parent=1 // pred_check
      _
    $region27: #{tpu_custom_call.1} parent=1 // pred_check_branch
      %8212 = sbr.rel (0) target = $region29
    $region28: #{tpu_custom_call.1} parent=1 // pred_region
      _
    $region29: #{tpu_custom_call.1} parent=1 // pred_fallthru
      _
    %8213 = vsyncpa [#allocation3], 1

</llo_original>
